<compile_context>
chip_gen: v7x
topology: tpu7x:2x2x1
jax: 0.10.0
libtpu: 0.0.40
codegen_flags: <defaults>
</compile_context>

<pallas_src>
import functools

import jax
import jax.numpy as jnp
import numpy as np
from jax import lax
from jax.experimental import pallas as pl
from jax.experimental.pallas import tpu as pltpu

SHIFT_X = 0   # eval-mode shifts from the module
SHIFT_Y = 9
BN_EPS = 1e-5


def _round_up(x, m):
    return (x + m - 1) // m * m


def _conv3x3_dense(xp, w2, n_out, H, W, P, mask_m1, mask_p1):
    """3x3 SAME conv of a zero-halo padded (C, HW + 2P) value with dense VPU taps.

    xp : (C, HW + 2P) f32; image interior at [:, P:P+HW], zero halo elsewhere.
    w2 : (C, 9 * n_out) f32 weight columns; column k*n_out + co = w[tap k, ci, co].
    Returns a list of n_out (1, HW) f32 accumulators (bias not added).

    The dx=+-1 validity masks are applied once per dx group to the reduced
    partial sum (they only depend on the lane's column), not per tap view.
    """
    HW = H * W
    C = xp.shape[0]
    f32 = jnp.float32
    accs = [jnp.zeros((1, HW), f32) for _ in range(n_out)]
    for dx in (-1, 0, 1):
        mask = mask_m1 if dx == -1 else (mask_p1 if dx == 1 else None)
        parts = [jnp.zeros((C, HW), f32) for _ in range(n_out)]
        for dy in (-1, 0, 1):
            k = (dy + 1) * 3 + (dx + 1)
            start = P + dy * W + dx                 # static slice start
            t = xp[:, start:start + HW]             # (C, HW), loaded once per tap
            for co in range(n_out):
                col = w2[:, k * n_out + co:k * n_out + co + 1]   # (C, 1) weight column
                parts[co] = parts[co] + t * col
        # TODO(synk): when W % 128 == 0 (production BEV), hoist the three
        #             dx-shifted copies so the dy*W slices become lane-aligned.
        for co in range(n_out):
            red = jnp.sum(parts[co], axis=0, keepdims=True)      # sublane reduce (XLU)
            accs[co] = accs[co] + (red if mask is None else red * mask)
    return accs


def _stage1_kernel(img_ref, lid_ref, mask_ref, wmm_ref, woff_ref,
                   bmm_ref, boff_ref,
                   mm_ref, idx_ref, wt_ref,
                   *, H, W, P, c_img, c_lid, c_out, shift):
    """mm_bev = ReLU(folded-BN conv) and offset conv -> bilinear corner idx/wt."""
    HW = H * W
    c_in = c_img + c_lid
    f32 = jnp.float32

    img = img_ref[0]          # (c_img, HW)
    lid = lid_ref[0]          # (c_lid, HW)

    # In-kernel zero-halo padding + eval-mode circular roll (shift_x == 0, so
    # the H roll is a flat circular shift by shift = (shift_y % H) * W lanes).
    halo = jnp.zeros((c_in, P), f32)
    cat = jnp.concatenate(
        [halo, jnp.concatenate([img, lid], axis=0), halo], axis=1)       # (c_in, HWp)
    if shift == 0:
        rimg = img
    else:
        rimg = jnp.concatenate([img[:, HW - shift:], img[:, :HW - shift]], axis=1)
    rcat = jnp.concatenate(
        [halo, jnp.concatenate([rimg, lid], axis=0), halo], axis=1)      # (c_in, HWp)

    mask_m1 = mask_ref[0:1]   # (1, HW)
    mask_p1 = mask_ref[1:2]
    wmm2 = wmm_ref[...]       # (c_in, 9*c_out)
    woff2 = woff_ref[...]     # (c_in, 18)

    mm_acc = _conv3x3_dense(cat, wmm2, c_out, H, W, P, mask_m1, mask_p1)
    off_acc = _conv3x3_dense(rcat, woff2, 2, H, W, P, mask_m1, mask_p1)

    # ---- mm_bev = ReLU(BN(conv(cat(img, lidar)))), BN folded into wmm/bmm ----
    mm = jnp.concatenate(
        [jnp.maximum(mm_acc[co] + bmm_ref[co], 0.0) for co in range(c_out)], axis=0)
    mm_ref[0] = mm.astype(mm_ref.dtype)

    # ---- offset -> bilinear corner indices / weights for F.grid_sample ----
    # (mode='bilinear', padding_mode='zeros', align_corners=False)
    gx = off_acc[0] + boff_ref[0]
    gy = off_acc[1] + boff_ref[1]
    ix = (gx + 1.0) * (W * 0.5) - 0.5
    iy = (gy + 1.0) * (H * 0.5) - 0.5
    x0f = jnp.floor(ix)
    y0f = jnp.floor(iy)
    wx1 = ix - x0f
    wx0 = 1.0 - wx1
    wy1 = iy - y0f
    wy0 = 1.0 - wy1
    x0 = x0f.astype(jnp.int32)
    y0 = y0f.astype(jnp.int32)
    x1 = x0 + 1
    y1 = y0 + 1

    def corner(yc, xc, wc):
        valid = (xc >= 0) & (xc < W) & (yc >= 0) & (yc < H)
        flat = jnp.clip(yc, 0, H - 1) * W + jnp.clip(xc, 0, W - 1)
        return flat, jnp.where(valid, wc, 0.0)

    i00, w00 = corner(y0, x0, wy0 * wx0)
    i01, w01 = corner(y0, x1, wy0 * wx1)
    i10, w10 = corner(y1, x0, wy1 * wx0)
    i11, w11 = corner(y1, x1, wy1 * wx1)
    idx_ref[0] = jnp.concatenate([i00, i01, i10, i11], axis=0)   # (4, HW) int32
    wt_ref[0] = jnp.concatenate([w00, w01, w10, w11], axis=0)    # (4, HW) f32


def _stage2_kernel(mod_ref, mask_ref, wdef_ref, bdef_ref, out_ref,
                   *, H, W, P, c_lid, c_out):
    """3x3 deform conv on the already-modulated lidar features."""
    HW = H * W
    f32 = jnp.float32

    halo = jnp.zeros((c_lid, P), f32)
    modp = jnp.concatenate([halo, mod_ref[0], halo], axis=1)     # (c_lid, HWp)

    mask_m1 = mask_ref[0:1]
    mask_p1 = mask_ref[1:2]
    w2 = wdef_ref[...]                                           # (c_lid, 9*c_out)

    accs = _conv3x3_dense(modp, w2, c_out, H, W, P, mask_m1, mask_p1)
    out = jnp.concatenate([accs[co] + bdef_ref[co] for co in range(c_out)], axis=0)
    out_ref[0] = out.astype(out_ref.dtype)


def global_align_forward(img_nchw, lidar_nchw, params):
    """Eval-mode GlobalAlign forward (NCHW in / NCHW out, like the module)."""
    B, C_img, H, W = img_nchw.shape
    _, C_lid, _, _ = lidar_nchw.shape
    HW = H * W
    C_in = C_img + C_lid
    C_out = params['conv_w'].shape[0]
    f32 = jnp.float32

    if SHIFT_X % W != 0:
        # TODO(synk): training-mode random shift_x needs a per-row roll path.
        raise NotImplementedError("only shift_x % W == 0 (eval mode) is supported")
    shift_flat = (SHIFT_Y % H) * W

    # zero halo >= W+1 on each side of the flattened HW axis, lane-tile aligned.
    P = _round_up(W + 1, 128)

    def to_cols(w):   # PyTorch (O, I, 3, 3) -> (I, 9*O); column = tap_k*O + o
        O, I = w.shape[0], w.shape[1]
        return jnp.transpose(w, (1, 2, 3, 0)).reshape(I, 9 * O)

    bn_scale = params['bn_gamma'] / jnp.sqrt(params['bn_var'] + BN_EPS)
    bn_bias = params['bn_beta'] - params['bn_mean'] * bn_scale

    # Fold BN into the fused conv; weights become (C_in, 9*C_out) VMEM columns so
    # the kernel can vector-load a (C_in, 1) column per (tap, out-channel).
    wmm2 = to_cols(params['conv_w'] * bn_scale[:, None, None, None]).astype(f32)
    bmm = bn_bias.astype(f32)
    woff2 = to_cols(params['off_w']).astype(f32)
    boff = params['off_b'].astype(f32)
    wdef2 = to_cols(params['def_w']).astype(f32)
    bdef = params['def_b'].astype(f32)

    # dx = -1 / +1 tap validity masks, computed once (avoids per-step iota / %W).
    col = jnp.arange(HW, dtype=jnp.int32) % W
    masks = jnp.stack([(col >= 1).astype(f32), (col <= W - 2).astype(f32)], axis=0)

    # NCHW -> (B, C, HW): HW lands on the lane axis; no transpose / pad / roll here.
    img_cf = img_nchw.reshape(B, C_img, HW).astype(f32)
    lidar_cf = lidar_nchw.reshape(B, C_lid, HW).astype(f32)

    smem = pl.BlockSpec(memory_space=pltpu.MemorySpace.SMEM)
    act = lambda c: pl.BlockSpec((1, c, HW), lambda b: (b, 0, 0))
    const2d = lambda r, c: pl.BlockSpec((r, c), lambda b: (0, 0))
    cparams = pltpu.CompilerParams(
        dimension_semantics=("parallel",),
        vmem_limit_bytes=64 * 1024 * 1024)

    stage1 = functools.partial(_stage1_kernel, H=H, W=W, P=P, c_img=C_img,
                               c_lid=C_lid, c_out=C_out, shift=shift_flat)
    mm_cf, idx4, wt4 = pl.pallas_call(
        stage1,
        out_shape=(jax.ShapeDtypeStruct((B, C_out, HW), f32),
                   jax.ShapeDtypeStruct((B, 4, HW), jnp.int32),
                   jax.ShapeDtypeStruct((B, 4, HW), f32)),
        grid_spec=pltpu.PrefetchScalarGridSpec(
            num_scalar_prefetch=0,
            grid=(B,),
            in_specs=[act(C_img), act(C_lid), const2d(2, HW),
                      const2d(C_in, 9 * C_out), const2d(C_in, 9 * 2),
                      smem, smem],
            out_specs=[act(C_out), act(4), act(4)],
        ),
        compiler_params=cparams,
    )(img_cf, lidar_cf, masks, wmm2, woff2, bmm, boff)

    # grid_sample: 4-corner row gather of lidar + bilinear combine + modulation.
    # XLA fuses the weighted sum into the gather so the 4x corners intermediate
    # never round-trips HBM.
    # TODO(synk): fold this gather into stage 2 (in-kernel jnp.take / DMA gather)
    #             once Mosaic's dynamic-gather lowering covers this operand shape.
    corners = jnp.take_along_axis(
        lidar_cf[:, None, :, :], idx4[:, :, None, :], axis=3,
        mode="promise_in_bounds")                                # (B, 4, C_lid, HW)
    deform_weight = jnp.sum(wt4[:, :, None, :] * corners, axis=1)  # (B, C_lid, HW)
    mod_cf = lidar_cf * deform_weight

    stage2 = functools.partial(_stage2_kernel, H=H, W=W, P=P,
                               c_lid=C_lid, c_out=C_out)
    deformed_cf = pl.pallas_call(
        stage2,
        out_shape=jax.ShapeDtypeStruct((B, C_out, HW), f32),
        grid_spec=pltpu.PrefetchScalarGridSpec(
            num_scalar_prefetch=0,
            grid=(B,),
            in_specs=[act(C_lid), const2d(2, HW),
                      const2d(C_lid, 9 * C_out), smem],
            out_specs=act(C_out),
        ),
        compiler_params=cparams,
    )(mod_cf, masks, wdef2, bdef)

    return {'spatial_features': deformed_cf.reshape(B, C_out, H, W),
            'mm_bev_features': mm_cf.reshape(B, C_out, H, W)}


def reference_forward(img, lidar, params):
    """Pure-JAX reference of the PyTorch eval-mode forward (for correctness)."""
    dn = ('NCHW', 'OIHW', 'NCHW')
    prec = jax.lax.Precision.HIGHEST
    conv = lambda x, w: lax.conv_general_dilated(
        x, w, window_strides=(1, 1), padding='SAME',
        dimension_numbers=dn, precision=prec)
    _, _, H, W = lidar.shape

    cat = jnp.concatenate([img, lidar], axis=1)
    scale = params['bn_gamma'] / jnp.sqrt(params['bn_var'] + BN_EPS)
    shift = params['bn_beta'] - params['bn_mean'] * scale
    mm = conv(cat, params['conv_w'])
    mm = mm * scale[None, :, None, None] + shift[None, :, None, None]
    mm = jnp.maximum(mm, 0.0)

    rolled = jnp.roll(img, (SHIFT_X, SHIFT_Y), (3, 2))
    off = conv(jnp.concatenate([rolled, lidar], axis=1), params['off_w'])
    off = off + params['off_b'][None, :, None, None]
    gx, gy = off[:, 0], off[:, 1]                 # (B, H, W)
    ix = (gx + 1.0) * (W * 0.5) - 0.5
    iy = (gy + 1.0) * (H * 0.5) - 0.5

    def sample_one(chan2d, iy2d, ix2d):
        return jax.scipy.ndimage.map_coordinates(
            chan2d, [iy2d, ix2d], order=1, mode='constant', cval=0.0)

    dwt = jax.vmap(lambda lb, iy2, ix2:
                   jax.vmap(lambda ch: sample_one(ch, iy2, ix2))(lb))(lidar, iy, ix)
    mod = lidar * dwt
    out = conv(mod, params['def_w']) + params['def_b'][None, :, None, None]
    return out, mm


if __name__ == "__main__":
    B, C_IMG, C_LID, H, W = 2, 4, 4, 16, 16
    OUT = C_LID               # deform_conv requires lidar channels == OUT_CHANNEL
    IN = C_IMG + C_LID        # model_cfg.IN_CHANNEL

    key = jax.random.PRNGKey(0)
    ks = jax.random.split(key, 11)
    params = {
        'conv_w':  jax.random.normal(ks[0], (OUT, IN, 3, 3), jnp.float32) * 0.1,
        'bn_gamma': jax.random.uniform(ks[1], (OUT,), jnp.float32, 0.5, 1.5),
        'bn_beta': jax.random.normal(ks[2], (OUT,), jnp.float32) * 0.1,
        'bn_mean': jax.random.normal(ks[3], (OUT,), jnp.float32) * 0.1,
        'bn_var':  jax.random.uniform(ks[4], (OUT,), jnp.float32, 0.5, 1.5),
        'off_w':   jax.random.normal(ks[5], (2, IN, 3, 3), jnp.float32) * 0.05,
        'off_b':   jax.random.normal(ks[6], (2,), jnp.float32) * 0.05,
        'def_w':   jax.random.normal(ks[7], (OUT, OUT, 3, 3), jnp.float32) * 0.1,
        'def_b':   jax.random.normal(ks[8], (OUT,), jnp.float32) * 0.1,
    }
    img = jax.random.normal(ks[9], (B, C_IMG, H, W), jnp.float32)
    lidar = jax.random.normal(ks[10], (B, C_LID, H, W), jnp.float32)

    out = global_align_forward(img, lidar, params)
    jax.block_until_ready(out)

    ref_def, ref_mm = reference_forward(img, lidar, params)
    np.testing.assert_allclose(np.asarray(out['spatial_features']),
                               np.asarray(ref_def), rtol=1e-3, atol=1e-3)
    np.testing.assert_allclose(np.asarray(out['mm_bev_features']),
                               np.asarray(ref_mm), rtol=1e-3, atol=1e-3)
    print("KERNEL_OK")
</pallas_src>

<mosaic_0001>
module attributes {stable_mosaic.version = 11 : i64} {
  func.func @_stage1_kernel(%arg0: i32, %arg1: memref<1x4x256xf32, #tpu.memory_space<vmem>>, %arg2: memref<1x4x256xf32, #tpu.memory_space<vmem>>, %arg3: memref<2x256xf32, #tpu.memory_space<vmem>>, %arg4: memref<8x36xf32, #tpu.memory_space<vmem>>, %arg5: memref<8x18xf32, #tpu.memory_space<vmem>>, %arg6: memref<4xf32, #tpu.memory_space<smem>>, %arg7: memref<2xf32, #tpu.memory_space<smem>>, %arg8: memref<1x4x256xf32, #tpu.memory_space<vmem>>, %arg9: memref<1x4x256xi32, #tpu.memory_space<vmem>>, %arg10: memref<1x4x256xf32, #tpu.memory_space<vmem>>) attributes {dimension_semantics = [#tpu.dimension_semantics<parallel>], iteration_bounds = array<i64: 2>, scalar_prefetch = 0 : i64, scratch_operands = 0 : i64, tpu.core_type = #tpu.core_type<tc>, window_params = [{transform_indices = @transform_0, window_bounds = array<i64: 1, 4, 256>}, {transform_indices = @transform_1, window_bounds = array<i64: 1, 4, 256>}, {pipeline_mode = #tpu.pipeline_mode<synchronous>, transform_indices = @transform_2, window_bounds = array<i64: 2, 256>}, {pipeline_mode = #tpu.pipeline_mode<synchronous>, transform_indices = @transform_3, window_bounds = array<i64: 8, 36>}, {pipeline_mode = #tpu.pipeline_mode<synchronous>, transform_indices = @transform_4, window_bounds = array<i64: 8, 18>}, {transform_indices = @transform_5, window_bounds = array<i64: 4>}, {transform_indices = @transform_6, window_bounds = array<i64: 2>}, {transform_indices = @transform_7, window_bounds = array<i64: 1, 4, 256>}, {transform_indices = @transform_8, window_bounds = array<i64: 1, 4, 256>}, {transform_indices = @transform_9, window_bounds = array<i64: 1, 4, 256>}]} {
    %c0 = arith.constant 0 : index
    %c0_0 = arith.constant 0 : index
    %c0_1 = arith.constant 0 : index
    %0 = vector.load %arg1[%c0, %c0_0, %c0_1] : memref<1x4x256xf32, #tpu.memory_space<vmem>>, vector<1x4x256xf32>
    %1 = vector.shape_cast %0 : vector<1x4x256xf32> to vector<4x256xf32>
    %c0_2 = arith.constant 0 : index
    %c0_3 = arith.constant 0 : index
    %c0_4 = arith.constant 0 : index
    %2 = vector.load %arg2[%c0_2, %c0_3, %c0_4] : memref<1x4x256xf32, #tpu.memory_space<vmem>>, vector<1x4x256xf32>
    %3 = vector.shape_cast %2 : vector<1x4x256xf32> to vector<4x256xf32>
    %cst = arith.constant 0.000000e+00 : f32
    %4 = vector.broadcast %cst : f32 to vector<8x128xf32>
    %5 = tpu.concatenate %1, %3 in 0 : vector<4x256xf32>, vector<4x256xf32> -> vector<8x256xf32>
    %6 = tpu.concatenate %4, %5, %4 in 1 : vector<8x128xf32>, vector<8x256xf32>, vector<8x128xf32> -> vector<8x512xf32>
    %7 = vector.extract_strided_slice %1 {offsets = [0, 112], sizes = [4, 144], strides = [1, 1]} : vector<4x256xf32> to vector<4x144xf32>
    %8 = vector.extract_strided_slice %1 {offsets = [0, 0], sizes = [4, 112], strides = [1, 1]} : vector<4x256xf32> to vector<4x112xf32>
    %9 = tpu.concatenate %7, %8 in 1 : vector<4x144xf32>, vector<4x112xf32> -> vector<4x256xf32>
    %10 = tpu.concatenate %9, %3 in 0 : vector<4x256xf32>, vector<4x256xf32> -> vector<8x256xf32>
    %11 = tpu.concatenate %4, %10, %4 in 1 : vector<8x128xf32>, vector<8x256xf32>, vector<8x128xf32> -> vector<8x512xf32>
    %c0_5 = arith.constant 0 : index
    %c0_6 = arith.constant 0 : index
    %12 = vector.load %arg3[%c0_5, %c0_6] : memref<2x256xf32, #tpu.memory_space<vmem>>, vector<1x256xf32>
    %c1 = arith.constant 1 : index
    %c0_7 = arith.constant 0 : index
    %13 = vector.load %arg3[%c1, %c0_7] : memref<2x256xf32, #tpu.memory_space<vmem>>, vector<1x256xf32>
    %c0_8 = arith.constant 0 : index
    %c0_9 = arith.constant 0 : index
    %14 = vector.load %arg4[%c0_8, %c0_9] : memref<8x36xf32, #tpu.memory_space<vmem>>, vector<8x36xf32>
    %c0_10 = arith.constant 0 : index
    %c0_11 = arith.constant 0 : index
    %15 = vector.load %arg5[%c0_10, %c0_11] : memref<8x18xf32, #tpu.memory_space<vmem>>, vector<8x18xf32>
    %cst_12 = arith.constant 0.000000e+00 : f32
    %16 = vector.broadcast %cst_12 : f32 to vector<1x256xf32>
    %cst_13 = arith.constant 0.000000e+00 : f32
    %17 = vector.broadcast %cst_13 : f32 to vector<1x256xf32>
    %cst_14 = arith.constant 0.000000e+00 : f32
    %18 = vector.broadcast %cst_14 : f32 to vector<1x256xf32>
    %cst_15 = arith.constant 0.000000e+00 : f32
    %19 = vector.broadcast %cst_15 : f32 to vector<1x256xf32>
    %cst_16 = arith.constant 0.000000e+00 : f32
    %20 = vector.broadcast %cst_16 : f32 to vector<8x256xf32>
    %cst_17 = arith.constant 0.000000e+00 : f32
    %21 = vector.broadcast %cst_17 : f32 to vector<8x256xf32>
    %cst_18 = arith.constant 0.000000e+00 : f32
    %22 = vector.broadcast %cst_18 : f32 to vector<8x256xf32>
    %cst_19 = arith.constant 0.000000e+00 : f32
    %23 = vector.broadcast %cst_19 : f32 to vector<8x256xf32>
    %24 = vector.extract_strided_slice %6 {offsets = [0, 111], sizes = [8, 256], strides = [1, 1]} : vector<8x512xf32> to vector<8x256xf32>
    %25 = vector.extract_strided_slice %14 {offsets = [0, 0], sizes = [8, 1], strides = [1, 1]} : vector<8x36xf32> to vector<8x1xf32>
    %26 = vector.broadcast %25 : vector<8x1xf32> to vector<8x256xf32>
    %27 = arith.mulf %24, %26 : vector<8x256xf32>
    %28 = arith.addf %20, %27 : vector<8x256xf32>
    %29 = vector.extract_strided_slice %14 {offsets = [0, 1], sizes = [8, 1], strides = [1, 1]} : vector<8x36xf32> to vector<8x1xf32>
    %30 = vector.broadcast %29 : vector<8x1xf32> to vector<8x256xf32>
    %31 = arith.mulf %24, %30 : vector<8x256xf32>
    %32 = arith.addf %21, %31 : vector<8x256xf32>
    %33 = vector.extract_strided_slice %14 {offsets = [0, 2], sizes = [8, 1], strides = [1, 1]} : vector<8x36xf32> to vector<8x1xf32>
    %34 = vector.broadcast %33 : vector<8x1xf32> to vector<8x256xf32>
    %35 = arith.mulf %24, %34 : vector<8x256xf32>
    %36 = arith.addf %22, %35 : vector<8x256xf32>
    %37 = vector.extract_strided_slice %14 {offsets = [0, 3], sizes = [8, 1], strides = [1, 1]} : vector<8x36xf32> to vector<8x1xf32>
    %38 = vector.broadcast %37 : vector<8x1xf32> to vector<8x256xf32>
    %39 = arith.mulf %24, %38 : vector<8x256xf32>
    %40 = arith.addf %23, %39 : vector<8x256xf32>
    %41 = vector.extract_strided_slice %6 {offsets = [0, 127], sizes = [8, 256], strides = [1, 1]} : vector<8x512xf32> to vector<8x256xf32>
    %42 = vector.extract_strided_slice %14 {offsets = [0, 12], sizes = [8, 1], strides = [1, 1]} : vector<8x36xf32> to vector<8x1xf32>
    %43 = vector.broadcast %42 : vector<8x1xf32> to vector<8x256xf32>
    %44 = arith.mulf %41, %43 : vector<8x256xf32>
    %45 = arith.addf %28, %44 : vector<8x256xf32>
    %46 = vector.extract_strided_slice %14 {offsets = [0, 13], sizes = [8, 1], strides = [1, 1]} : vector<8x36xf32> to vector<8x1xf32>
    %47 = vector.broadcast %46 : vector<8x1xf32> to vector<8x256xf32>
    %48 = arith.mulf %41, %47 : vector<8x256xf32>
    %49 = arith.addf %32, %48 : vector<8x256xf32>
    %50 = vector.extract_strided_slice %14 {offsets = [0, 14], sizes = [8, 1], strides = [1, 1]} : vector<8x36xf32> to vector<8x1xf32>
    %51 = vector.broadcast %50 : vector<8x1xf32> to vector<8x256xf32>
    %52 = arith.mulf %41, %51 : vector<8x256xf32>
    %53 = arith.addf %36, %52 : vector<8x256xf32>
    %54 = vector.extract_strided_slice %14 {offsets = [0, 15], sizes = [8, 1], strides = [1, 1]} : vector<8x36xf32> to vector<8x1xf32>
    %55 = vector.broadcast %54 : vector<8x1xf32> to vector<8x256xf32>
    %56 = arith.mulf %41, %55 : vector<8x256xf32>
    %57 = arith.addf %40, %56 : vector<8x256xf32>
    %58 = vector.extract_strided_slice %6 {offsets = [0, 143], sizes = [8, 256], strides = [1, 1]} : vector<8x512xf32> to vector<8x256xf32>
    %59 = vector.extract_strided_slice %14 {offsets = [0, 24], sizes = [8, 1], strides = [1, 1]} : vector<8x36xf32> to vector<8x1xf32>
    %60 = vector.broadcast %59 : vector<8x1xf32> to vector<8x256xf32>
    %61 = arith.mulf %58, %60 : vector<8x256xf32>
    %62 = arith.addf %45, %61 : vector<8x256xf32>
    %63 = vector.extract_strided_slice %14 {offsets = [0, 25], sizes = [8, 1], strides = [1, 1]} : vector<8x36xf32> to vector<8x1xf32>
    %64 = vector.broadcast %63 : vector<8x1xf32> to vector<8x256xf32>
    %65 = arith.mulf %58, %64 : vector<8x256xf32>
    %66 = arith.addf %49, %65 : vector<8x256xf32>
    %67 = vector.extract_strided_slice %14 {offsets = [0, 26], sizes = [8, 1], strides = [1, 1]} : vector<8x36xf32> to vector<8x1xf32>
    %68 = vector.broadcast %67 : vector<8x1xf32> to vector<8x256xf32>
    %69 = arith.mulf %58, %68 : vector<8x256xf32>
    %70 = arith.addf %53, %69 : vector<8x256xf32>
    %71 = vector.extract_strided_slice %14 {offsets = [0, 27], sizes = [8, 1], strides = [1, 1]} : vector<8x36xf32> to vector<8x1xf32>
    %72 = vector.broadcast %71 : vector<8x1xf32> to vector<8x256xf32>
    %73 = arith.mulf %58, %72 : vector<8x256xf32>
    %74 = arith.addf %57, %73 : vector<8x256xf32>
    %cst_20 = arith.constant dense<0.000000e+00> : vector<256xf32>
    %75 = vector.multi_reduction <add>, %62, %cst_20 [0] : vector<8x256xf32> to vector<256xf32>
    %76 = vector.shape_cast %75 : vector<256xf32> to vector<1x256xf32>
    %77 = arith.mulf %76, %12 : vector<1x256xf32>
    %78 = arith.addf %16, %77 : vector<1x256xf32>
    %cst_21 = arith.constant dense<0.000000e+00> : vector<256xf32>
    %79 = vector.multi_reduction <add>, %66, %cst_21 [0] : vector<8x256xf32> to vector<256xf32>
    %80 = vector.shape_cast %79 : vector<256xf32> to vector<1x256xf32>
    %81 = arith.mulf %80, %12 : vector<1x256xf32>
    %82 = arith.addf %17, %81 : vector<1x256xf32>
    %cst_22 = arith.constant dense<0.000000e+00> : vector<256xf32>
    %83 = vector.multi_reduction <add>, %70, %cst_22 [0] : vector<8x256xf32> to vector<256xf32>
    %84 = vector.shape_cast %83 : vector<256xf32> to vector<1x256xf32>
    %85 = arith.mulf %84, %12 : vector<1x256xf32>
    %86 = arith.addf %18, %85 : vector<1x256xf32>
    %cst_23 = arith.constant dense<0.000000e+00> : vector<256xf32>
    %87 = vector.multi_reduction <add>, %74, %cst_23 [0] : vector<8x256xf32> to vector<256xf32>
    %88 = vector.shape_cast %87 : vector<256xf32> to vector<1x256xf32>
    %89 = arith.mulf %88, %12 : vector<1x256xf32>
    %90 = arith.addf %19, %89 : vector<1x256xf32>
    %cst_24 = arith.constant 0.000000e+00 : f32
    %91 = vector.broadcast %cst_24 : f32 to vector<8x256xf32>
    %cst_25 = arith.constant 0.000000e+00 : f32
    %92 = vector.broadcast %cst_25 : f32 to vector<8x256xf32>
    %cst_26 = arith.constant 0.000000e+00 : f32
    %93 = vector.broadcast %cst_26 : f32 to vector<8x256xf32>
    %cst_27 = arith.constant 0.000000e+00 : f32
    %94 = vector.broadcast %cst_27 : f32 to vector<8x256xf32>
    %95 = vector.extract_strided_slice %6 {offsets = [0, 112], sizes = [8, 256], strides = [1, 1]} : vector<8x512xf32> to vector<8x256xf32>
    %96 = vector.extract_strided_slice %14 {offsets = [0, 4], sizes = [8, 1], strides = [1, 1]} : vector<8x36xf32> to vector<8x1xf32>
    %97 = vector.broadcast %96 : vector<8x1xf32> to vector<8x256xf32>
    %98 = arith.mulf %95, %97 : vector<8x256xf32>
    %99 = arith.addf %91, %98 : vector<8x256xf32>
    %100 = vector.extract_strided_slice %14 {offsets = [0, 5], sizes = [8, 1], strides = [1, 1]} : vector<8x36xf32> to vector<8x1xf32>
    %101 = vector.broadcast %100 : vector<8x1xf32> to vector<8x256xf32>
    %102 = arith.mulf %95, %101 : vector<8x256xf32>
    %103 = arith.addf %92, %102 : vector<8x256xf32>
    %104 = vector.extract_strided_slice %14 {offsets = [0, 6], sizes = [8, 1], strides = [1, 1]} : vector<8x36xf32> to vector<8x1xf32>
    %105 = vector.broadcast %104 : vector<8x1xf32> to vector<8x256xf32>
    %106 = arith.mulf %95, %105 : vector<8x256xf32>
    %107 = arith.addf %93, %106 : vector<8x256xf32>
    %108 = vector.extract_strided_slice %14 {offsets = [0, 7], sizes = [8, 1], strides = [1, 1]} : vector<8x36xf32> to vector<8x1xf32>
    %109 = vector.broadcast %108 : vector<8x1xf32> to vector<8x256xf32>
    %110 = arith.mulf %95, %109 : vector<8x256xf32>
    %111 = arith.addf %94, %110 : vector<8x256xf32>
    %112 = vector.extract_strided_slice %6 {offsets = [0, 128], sizes = [8, 256], strides = [1, 1]} : vector<8x512xf32> to vector<8x256xf32>
    %113 = vector.extract_strided_slice %14 {offsets = [0, 16], sizes = [8, 1], strides = [1, 1]} : vector<8x36xf32> to vector<8x1xf32>
    %114 = vector.broadcast %113 : vector<8x1xf32> to vector<8x256xf32>
    %115 = arith.mulf %112, %114 : vector<8x256xf32>
    %116 = arith.addf %99, %115 : vector<8x256xf32>
    %117 = vector.extract_strided_slice %14 {offsets = [0, 17], sizes = [8, 1], strides = [1, 1]} : vector<8x36xf32> to vector<8x1xf32>
    %118 = vector.broadcast %117 : vector<8x1xf32> to vector<8x256xf32>
    %119 = arith.mulf %112, %118 : vector<8x256xf32>
    %120 = arith.addf %103, %119 : vector<8x256xf32>
    %121 = vector.extract_strided_slice %14 {offsets = [0, 18], sizes = [8, 1], strides = [1, 1]} : vector<8x36xf32> to vector<8x1xf32>
    %122 = vector.broadcast %121 : vector<8x1xf32> to vector<8x256xf32>
    %123 = arith.mulf %112, %122 : vector<8x256xf32>
    %124 = arith.addf %107, %123 : vector<8x256xf32>
    %125 = vector.extract_strided_slice %14 {offsets = [0, 19], sizes = [8, 1], strides = [1, 1]} : vector<8x36xf32> to vector<8x1xf32>
    %126 = vector.broadcast %125 : vector<8x1xf32> to vector<8x256xf32>
    %127 = arith.mulf %112, %126 : vector<8x256xf32>
    %128 = arith.addf %111, %127 : vector<8x256xf32>
    %129 = vector.extract_strided_slice %6 {offsets = [0, 144], sizes = [8, 256], strides = [1, 1]} : vector<8x512xf32> to vector<8x256xf32>
    %130 = vector.extract_strided_slice %14 {offsets = [0, 28], sizes = [8, 1], strides = [1, 1]} : vector<8x36xf32> to vector<8x1xf32>
    %131 = vector.broadcast %130 : vector<8x1xf32> to vector<8x256xf32>
    %132 = arith.mulf %129, %131 : vector<8x256xf32>
    %133 = arith.addf %116, %132 : vector<8x256xf32>
    %134 = vector.extract_strided_slice %14 {offsets = [0, 29], sizes = [8, 1], strides = [1, 1]} : vector<8x36xf32> to vector<8x1xf32>
    %135 = vector.broadcast %134 : vector<8x1xf32> to vector<8x256xf32>
    %136 = arith.mulf %129, %135 : vector<8x256xf32>
    %137 = arith.addf %120, %136 : vector<8x256xf32>
    %138 = vector.extract_strided_slice %14 {offsets = [0, 30], sizes = [8, 1], strides = [1, 1]} : vector<8x36xf32> to vector<8x1xf32>
    %139 = vector.broadcast %138 : vector<8x1xf32> to vector<8x256xf32>
    %140 = arith.mulf %129, %139 : vector<8x256xf32>
    %141 = arith.addf %124, %140 : vector<8x256xf32>
    %142 = vector.extract_strided_slice %14 {offsets = [0, 31], sizes = [8, 1], strides = [1, 1]} : vector<8x36xf32> to vector<8x1xf32>
    %143 = vector.broadcast %142 : vector<8x1xf32> to vector<8x256xf32>
    %144 = arith.mulf %129, %143 : vector<8x256xf32>
    %145 = arith.addf %128, %144 : vector<8x256xf32>
    %cst_28 = arith.constant dense<0.000000e+00> : vector<256xf32>
    %146 = vector.multi_reduction <add>, %133, %cst_28 [0] : vector<8x256xf32> to vector<256xf32>
    %147 = vector.shape_cast %146 : vector<256xf32> to vector<1x256xf32>
    %148 = arith.addf %78, %147 : vector<1x256xf32>
    %cst_29 = arith.constant dense<0.000000e+00> : vector<256xf32>
    %149 = vector.multi_reduction <add>, %137, %cst_29 [0] : vector<8x256xf32> to vector<256xf32>
    %150 = vector.shape_cast %149 : vector<256xf32> to vector<1x256xf32>
    %151 = arith.addf %82, %150 : vector<1x256xf32>
    %cst_30 = arith.constant dense<0.000000e+00> : vector<256xf32>
    %152 = vector.multi_reduction <add>, %141, %cst_30 [0] : vector<8x256xf32> to vector<256xf32>
    %153 = vector.shape_cast %152 : vector<256xf32> to vector<1x256xf32>
    %154 = arith.addf %86, %153 : vector<1x256xf32>
    %cst_31 = arith.constant dense<0.000000e+00> : vector<256xf32>
    %155 = vector.multi_reduction <add>, %145, %cst_31 [0] : vector<8x256xf32> to vector<256xf32>
    %156 = vector.shape_cast %155 : vector<256xf32> to vector<1x256xf32>
    %157 = arith.addf %90, %156 : vector<1x256xf32>
    %cst_32 = arith.constant 0.000000e+00 : f32
    %158 = vector.broadcast %cst_32 : f32 to vector<8x256xf32>
    %cst_33 = arith.constant 0.000000e+00 : f32
    %159 = vector.broadcast %cst_33 : f32 to vector<8x256xf32>
    %cst_34 = arith.constant 0.000000e+00 : f32
    %160 = vector.broadcast %cst_34 : f32 to vector<8x256xf32>
    %cst_35 = arith.constant 0.000000e+00 : f32
    %161 = vector.broadcast %cst_35 : f32 to vector<8x256xf32>
    %162 = vector.extract_strided_slice %6 {offsets = [0, 113], sizes = [8, 256], strides = [1, 1]} : vector<8x512xf32> to vector<8x256xf32>
    %163 = vector.extract_strided_slice %14 {offsets = [0, 8], sizes = [8, 1], strides = [1, 1]} : vector<8x36xf32> to vector<8x1xf32>
    %164 = vector.broadcast %163 : vector<8x1xf32> to vector<8x256xf32>
    %165 = arith.mulf %162, %164 : vector<8x256xf32>
    %166 = arith.addf %158, %165 : vector<8x256xf32>
    %167 = vector.extract_strided_slice %14 {offsets = [0, 9], sizes = [8, 1], strides = [1, 1]} : vector<8x36xf32> to vector<8x1xf32>
    %168 = vector.broadcast %167 : vector<8x1xf32> to vector<8x256xf32>
    %169 = arith.mulf %162, %168 : vector<8x256xf32>
    %170 = arith.addf %159, %169 : vector<8x256xf32>
    %171 = vector.extract_strided_slice %14 {offsets = [0, 10], sizes = [8, 1], strides = [1, 1]} : vector<8x36xf32> to vector<8x1xf32>
    %172 = vector.broadcast %171 : vector<8x1xf32> to vector<8x256xf32>
    %173 = arith.mulf %162, %172 : vector<8x256xf32>
    %174 = arith.addf %160, %173 : vector<8x256xf32>
    %175 = vector.extract_strided_slice %14 {offsets = [0, 11], sizes = [8, 1], strides = [1, 1]} : vector<8x36xf32> to vector<8x1xf32>
    %176 = vector.broadcast %175 : vector<8x1xf32> to vector<8x256xf32>
    %177 = arith.mulf %162, %176 : vector<8x256xf32>
    %178 = arith.addf %161, %177 : vector<8x256xf32>
    %179 = vector.extract_strided_slice %6 {offsets = [0, 129], sizes = [8, 256], strides = [1, 1]} : vector<8x512xf32> to vector<8x256xf32>
    %180 = vector.extract_strided_slice %14 {offsets = [0, 20], sizes = [8, 1], strides = [1, 1]} : vector<8x36xf32> to vector<8x1xf32>
    %181 = vector.broadcast %180 : vector<8x1xf32> to vector<8x256xf32>
    %182 = arith.mulf %179, %181 : vector<8x256xf32>
    %183 = arith.addf %166, %182 : vector<8x256xf32>
    %184 = vector.extract_strided_slice %14 {offsets = [0, 21], sizes = [8, 1], strides = [1, 1]} : vector<8x36xf32> to vector<8x1xf32>
    %185 = vector.broadcast %184 : vector<8x1xf32> to vector<8x256xf32>
    %186 = arith.mulf %179, %185 : vector<8x256xf32>
    %187 = arith.addf %170, %186 : vector<8x256xf32>
    %188 = vector.extract_strided_slice %14 {offsets = [0, 22], sizes = [8, 1], strides = [1, 1]} : vector<8x36xf32> to vector<8x1xf32>
    %189 = vector.broadcast %188 : vector<8x1xf32> to vector<8x256xf32>
    %190 = arith.mulf %179, %189 : vector<8x256xf32>
    %191 = arith.addf %174, %190 : vector<8x256xf32>
    %192 = vector.extract_strided_slice %14 {offsets = [0, 23], sizes = [8, 1], strides = [1, 1]} : vector<8x36xf32> to vector<8x1xf32>
    %193 = vector.broadcast %192 : vector<8x1xf32> to vector<8x256xf32>
    %194 = arith.mulf %179, %193 : vector<8x256xf32>
    %195 = arith.addf %178, %194 : vector<8x256xf32>
    %196 = vector.extract_strided_slice %6 {offsets = [0, 145], sizes = [8, 256], strides = [1, 1]} : vector<8x512xf32> to vector<8x256xf32>
    %197 = vector.extract_strided_slice %14 {offsets = [0, 32], sizes = [8, 1], strides = [1, 1]} : vector<8x36xf32> to vector<8x1xf32>
    %198 = vector.broadcast %197 : vector<8x1xf32> to vector<8x256xf32>
    %199 = arith.mulf %196, %198 : vector<8x256xf32>
    %200 = arith.addf %183, %199 : vector<8x256xf32>
    %201 = vector.extract_strided_slice %14 {offsets = [0, 33], sizes = [8, 1], strides = [1, 1]} : vector<8x36xf32> to vector<8x1xf32>
    %202 = vector.broadcast %201 : vector<8x1xf32> to vector<8x256xf32>
    %203 = arith.mulf %196, %202 : vector<8x256xf32>
    %204 = arith.addf %187, %203 : vector<8x256xf32>
    %205 = vector.extract_strided_slice %14 {offsets = [0, 34], sizes = [8, 1], strides = [1, 1]} : vector<8x36xf32> to vector<8x1xf32>
    %206 = vector.broadcast %205 : vector<8x1xf32> to vector<8x256xf32>
    %207 = arith.mulf %196, %206 : vector<8x256xf32>
    %208 = arith.addf %191, %207 : vector<8x256xf32>
    %209 = vector.extract_strided_slice %14 {offsets = [0, 35], sizes = [8, 1], strides = [1, 1]} : vector<8x36xf32> to vector<8x1xf32>
    %210 = vector.broadcast %209 : vector<8x1xf32> to vector<8x256xf32>
    %211 = arith.mulf %196, %210 : vector<8x256xf32>
    %212 = arith.addf %195, %211 : vector<8x256xf32>
    %cst_36 = arith.constant dense<0.000000e+00> : vector<256xf32>
    %213 = vector.multi_reduction <add>, %200, %cst_36 [0] : vector<8x256xf32> to vector<256xf32>
    %214 = vector.shape_cast %213 : vector<256xf32> to vector<1x256xf32>
    %215 = arith.mulf %214, %13 : vector<1x256xf32>
    %216 = arith.addf %148, %215 : vector<1x256xf32>
    %cst_37 = arith.constant dense<0.000000e+00> : vector<256xf32>
    %217 = vector.multi_reduction <add>, %204, %cst_37 [0] : vector<8x256xf32> to vector<256xf32>
    %218 = vector.shape_cast %217 : vector<256xf32> to vector<1x256xf32>
    %219 = arith.mulf %218, %13 : vector<1x256xf32>
    %220 = arith.addf %151, %219 : vector<1x256xf32>
    %cst_38 = arith.constant dense<0.000000e+00> : vector<256xf32>
    %221 = vector.multi_reduction <add>, %208, %cst_38 [0] : vector<8x256xf32> to vector<256xf32>
    %222 = vector.shape_cast %221 : vector<256xf32> to vector<1x256xf32>
    %223 = arith.mulf %222, %13 : vector<1x256xf32>
    %224 = arith.addf %154, %223 : vector<1x256xf32>
    %cst_39 = arith.constant dense<0.000000e+00> : vector<256xf32>
    %225 = vector.multi_reduction <add>, %212, %cst_39 [0] : vector<8x256xf32> to vector<256xf32>
    %226 = vector.shape_cast %225 : vector<256xf32> to vector<1x256xf32>
    %227 = arith.mulf %226, %13 : vector<1x256xf32>
    %228 = arith.addf %157, %227 : vector<1x256xf32>
    %cst_40 = arith.constant 0.000000e+00 : f32
    %229 = vector.broadcast %cst_40 : f32 to vector<1x256xf32>
    %cst_41 = arith.constant 0.000000e+00 : f32
    %230 = vector.broadcast %cst_41 : f32 to vector<1x256xf32>
    %cst_42 = arith.constant 0.000000e+00 : f32
    %231 = vector.broadcast %cst_42 : f32 to vector<8x256xf32>
    %cst_43 = arith.constant 0.000000e+00 : f32
    %232 = vector.broadcast %cst_43 : f32 to vector<8x256xf32>
    %233 = vector.extract_strided_slice %11 {offsets = [0, 111], sizes = [8, 256], strides = [1, 1]} : vector<8x512xf32> to vector<8x256xf32>
    %234 = vector.extract_strided_slice %15 {offsets = [0, 0], sizes = [8, 1], strides = [1, 1]} : vector<8x18xf32> to vector<8x1xf32>
    %235 = vector.broadcast %234 : vector<8x1xf32> to vector<8x256xf32>
    %236 = arith.mulf %233, %235 : vector<8x256xf32>
    %237 = arith.addf %231, %236 : vector<8x256xf32>
    %238 = vector.extract_strided_slice %15 {offsets = [0, 1], sizes = [8, 1], strides = [1, 1]} : vector<8x18xf32> to vector<8x1xf32>
    %239 = vector.broadcast %238 : vector<8x1xf32> to vector<8x256xf32>
    %240 = arith.mulf %233, %239 : vector<8x256xf32>
    %241 = arith.addf %232, %240 : vector<8x256xf32>
    %242 = vector.extract_strided_slice %11 {offsets = [0, 127], sizes = [8, 256], strides = [1, 1]} : vector<8x512xf32> to vector<8x256xf32>
    %243 = vector.extract_strided_slice %15 {offsets = [0, 6], sizes = [8, 1], strides = [1, 1]} : vector<8x18xf32> to vector<8x1xf32>
    %244 = vector.broadcast %243 : vector<8x1xf32> to vector<8x256xf32>
    %245 = arith.mulf %242, %244 : vector<8x256xf32>
    %246 = arith.addf %237, %245 : vector<8x256xf32>
    %247 = vector.extract_strided_slice %15 {offsets = [0, 7], sizes = [8, 1], strides = [1, 1]} : vector<8x18xf32> to vector<8x1xf32>
    %248 = vector.broadcast %247 : vector<8x1xf32> to vector<8x256xf32>
    %249 = arith.mulf %242, %248 : vector<8x256xf32>
    %250 = arith.addf %241, %249 : vector<8x256xf32>
    %251 = vector.extract_strided_slice %11 {offsets = [0, 143], sizes = [8, 256], strides = [1, 1]} : vector<8x512xf32> to vector<8x256xf32>
    %252 = vector.extract_strided_slice %15 {offsets = [0, 12], sizes = [8, 1], strides = [1, 1]} : vector<8x18xf32> to vector<8x1xf32>
    %253 = vector.broadcast %252 : vector<8x1xf32> to vector<8x256xf32>
    %254 = arith.mulf %251, %253 : vector<8x256xf32>
    %255 = arith.addf %246, %254 : vector<8x256xf32>
    %256 = vector.extract_strided_slice %15 {offsets = [0, 13], sizes = [8, 1], strides = [1, 1]} : vector<8x18xf32> to vector<8x1xf32>
    %257 = vector.broadcast %256 : vector<8x1xf32> to vector<8x256xf32>
    %258 = arith.mulf %251, %257 : vector<8x256xf32>
    %259 = arith.addf %250, %258 : vector<8x256xf32>
    %cst_44 = arith.constant dense<0.000000e+00> : vector<256xf32>
    %260 = vector.multi_reduction <add>, %255, %cst_44 [0] : vector<8x256xf32> to vector<256xf32>
    %261 = vector.shape_cast %260 : vector<256xf32> to vector<1x256xf32>
    %262 = arith.mulf %261, %12 : vector<1x256xf32>
    %263 = arith.addf %229, %262 : vector<1x256xf32>
    %cst_45 = arith.constant dense<0.000000e+00> : vector<256xf32>
    %264 = vector.multi_reduction <add>, %259, %cst_45 [0] : vector<8x256xf32> to vector<256xf32>
    %265 = vector.shape_cast %264 : vector<256xf32> to vector<1x256xf32>
    %266 = arith.mulf %265, %12 : vector<1x256xf32>
    %267 = arith.addf %230, %266 : vector<1x256xf32>
    %cst_46 = arith.constant 0.000000e+00 : f32
    %268 = vector.broadcast %cst_46 : f32 to vector<8x256xf32>
    %cst_47 = arith.constant 0.000000e+00 : f32
    %269 = vector.broadcast %cst_47 : f32 to vector<8x256xf32>
    %270 = vector.extract_strided_slice %11 {offsets = [0, 112], sizes = [8, 256], strides = [1, 1]} : vector<8x512xf32> to vector<8x256xf32>
    %271 = vector.extract_strided_slice %15 {offsets = [0, 2], sizes = [8, 1], strides = [1, 1]} : vector<8x18xf32> to vector<8x1xf32>
    %272 = vector.broadcast %271 : vector<8x1xf32> to vector<8x256xf32>
    %273 = arith.mulf %270, %272 : vector<8x256xf32>
    %274 = arith.addf %268, %273 : vector<8x256xf32>
    %275 = vector.extract_strided_slice %15 {offsets = [0, 3], sizes = [8, 1], strides = [1, 1]} : vector<8x18xf32> to vector<8x1xf32>
    %276 = vector.broadcast %275 : vector<8x1xf32> to vector<8x256xf32>
    %277 = arith.mulf %270, %276 : vector<8x256xf32>
    %278 = arith.addf %269, %277 : vector<8x256xf32>
    %279 = vector.extract_strided_slice %11 {offsets = [0, 128], sizes = [8, 256], strides = [1, 1]} : vector<8x512xf32> to vector<8x256xf32>
    %280 = vector.extract_strided_slice %15 {offsets = [0, 8], sizes = [8, 1], strides = [1, 1]} : vector<8x18xf32> to vector<8x1xf32>
    %281 = vector.broadcast %280 : vector<8x1xf32> to vector<8x256xf32>
    %282 = arith.mulf %279, %281 : vector<8x256xf32>
    %283 = arith.addf %274, %282 : vector<8x256xf32>
    %284 = vector.extract_strided_slice %15 {offsets = [0, 9], sizes = [8, 1], strides = [1, 1]} : vector<8x18xf32> to vector<8x1xf32>
    %285 = vector.broadcast %284 : vector<8x1xf32> to vector<8x256xf32>
    %286 = arith.mulf %279, %285 : vector<8x256xf32>
    %287 = arith.addf %278, %286 : vector<8x256xf32>
    %288 = vector.extract_strided_slice %11 {offsets = [0, 144], sizes = [8, 256], strides = [1, 1]} : vector<8x512xf32> to vector<8x256xf32>
    %289 = vector.extract_strided_slice %15 {offsets = [0, 14], sizes = [8, 1], strides = [1, 1]} : vector<8x18xf32> to vector<8x1xf32>
    %290 = vector.broadcast %289 : vector<8x1xf32> to vector<8x256xf32>
    %291 = arith.mulf %288, %290 : vector<8x256xf32>
    %292 = arith.addf %283, %291 : vector<8x256xf32>
    %293 = vector.extract_strided_slice %15 {offsets = [0, 15], sizes = [8, 1], strides = [1, 1]} : vector<8x18xf32> to vector<8x1xf32>
    %294 = vector.broadcast %293 : vector<8x1xf32> to vector<8x256xf32>
    %295 = arith.mulf %288, %294 : vector<8x256xf32>
    %296 = arith.addf %287, %295 : vector<8x256xf32>
    %cst_48 = arith.constant dense<0.000000e+00> : vector<256xf32>
    %297 = vector.multi_reduction <add>, %292, %cst_48 [0] : vector<8x256xf32> to vector<256xf32>
    %298 = vector.shape_cast %297 : vector<256xf32> to vector<1x256xf32>
    %299 = arith.addf %263, %298 : vector<1x256xf32>
    %cst_49 = arith.constant dense<0.000000e+00> : vector<256xf32>
    %300 = vector.multi_reduction <add>, %296, %cst_49 [0] : vector<8x256xf32> to vector<256xf32>
    %301 = vector.shape_cast %300 : vector<256xf32> to vector<1x256xf32>
    %302 = arith.addf %267, %301 : vector<1x256xf32>
    %cst_50 = arith.constant 0.000000e+00 : f32
    %303 = vector.broadcast %cst_50 : f32 to vector<8x256xf32>
    %cst_51 = arith.constant 0.000000e+00 : f32
    %304 = vector.broadcast %cst_51 : f32 to vector<8x256xf32>
    %305 = vector.extract_strided_slice %11 {offsets = [0, 113], sizes = [8, 256], strides = [1, 1]} : vector<8x512xf32> to vector<8x256xf32>
    %306 = vector.extract_strided_slice %15 {offsets = [0, 4], sizes = [8, 1], strides = [1, 1]} : vector<8x18xf32> to vector<8x1xf32>
    %307 = vector.broadcast %306 : vector<8x1xf32> to vector<8x256xf32>
    %308 = arith.mulf %305, %307 : vector<8x256xf32>
    %309 = arith.addf %303, %308 : vector<8x256xf32>
    %310 = vector.extract_strided_slice %15 {offsets = [0, 5], sizes = [8, 1], strides = [1, 1]} : vector<8x18xf32> to vector<8x1xf32>
    %311 = vector.broadcast %310 : vector<8x1xf32> to vector<8x256xf32>
    %312 = arith.mulf %305, %311 : vector<8x256xf32>
    %313 = arith.addf %304, %312 : vector<8x256xf32>
    %314 = vector.extract_strided_slice %11 {offsets = [0, 129], sizes = [8, 256], strides = [1, 1]} : vector<8x512xf32> to vector<8x256xf32>
    %315 = vector.extract_strided_slice %15 {offsets = [0, 10], sizes = [8, 1], strides = [1, 1]} : vector<8x18xf32> to vector<8x1xf32>
    %316 = vector.broadcast %315 : vector<8x1xf32> to vector<8x256xf32>
    %317 = arith.mulf %314, %316 : vector<8x256xf32>
    %318 = arith.addf %309, %317 : vector<8x256xf32>
    %319 = vector.extract_strided_slice %15 {offsets = [0, 11], sizes = [8, 1], strides = [1, 1]} : vector<8x18xf32> to vector<8x1xf32>
    %320 = vector.broadcast %319 : vector<8x1xf32> to vector<8x256xf32>
    %321 = arith.mulf %314, %320 : vector<8x256xf32>
    %322 = arith.addf %313, %321 : vector<8x256xf32>
    %323 = vector.extract_strided_slice %11 {offsets = [0, 145], sizes = [8, 256], strides = [1, 1]} : vector<8x512xf32> to vector<8x256xf32>
    %324 = vector.extract_strided_slice %15 {offsets = [0, 16], sizes = [8, 1], strides = [1, 1]} : vector<8x18xf32> to vector<8x1xf32>
    %325 = vector.broadcast %324 : vector<8x1xf32> to vector<8x256xf32>
    %326 = arith.mulf %323, %325 : vector<8x256xf32>
    %327 = arith.addf %318, %326 : vector<8x256xf32>
    %328 = vector.extract_strided_slice %15 {offsets = [0, 17], sizes = [8, 1], strides = [1, 1]} : vector<8x18xf32> to vector<8x1xf32>
    %329 = vector.broadcast %328 : vector<8x1xf32> to vector<8x256xf32>
    %330 = arith.mulf %323, %329 : vector<8x256xf32>
    %331 = arith.addf %322, %330 : vector<8x256xf32>
    %cst_52 = arith.constant dense<0.000000e+00> : vector<256xf32>
    %332 = vector.multi_reduction <add>, %327, %cst_52 [0] : vector<8x256xf32> to vector<256xf32>
    %333 = vector.shape_cast %332 : vector<256xf32> to vector<1x256xf32>
    %334 = arith.mulf %333, %13 : vector<1x256xf32>
    %335 = arith.addf %299, %334 : vector<1x256xf32>
    %cst_53 = arith.constant dense<0.000000e+00> : vector<256xf32>
    %336 = vector.multi_reduction <add>, %331, %cst_53 [0] : vector<8x256xf32> to vector<256xf32>
    %337 = vector.shape_cast %336 : vector<256xf32> to vector<1x256xf32>
    %338 = arith.mulf %337, %13 : vector<1x256xf32>
    %339 = arith.addf %302, %338 : vector<1x256xf32>
    %c0_54 = arith.constant 0 : index
    %340 = memref.load %arg6[%c0_54] : memref<4xf32, #tpu.memory_space<smem>>
    %341 = vector.broadcast %340 : f32 to vector<1x256xf32>
    %342 = arith.addf %216, %341 : vector<1x256xf32>
    %cst_55 = arith.constant 0.000000e+00 : f32
    %343 = vector.broadcast %cst_55 : f32 to vector<1x256xf32>
    %344 = arith.maximumf %342, %343 : vector<1x256xf32>
    %c1_56 = arith.constant 1 : index
    %345 = memref.load %arg6[%c1_56] : memref<4xf32, #tpu.memory_space<smem>>
    %346 = vector.broadcast %345 : f32 to vector<1x256xf32>
    %347 = arith.addf %220, %346 : vector<1x256xf32>
    %cst_57 = arith.constant 0.000000e+00 : f32
    %348 = vector.broadcast %cst_57 : f32 to vector<1x256xf32>
    %349 = arith.maximumf %347, %348 : vector<1x256xf32>
    %c2 = arith.constant 2 : index
    %350 = memref.load %arg6[%c2] : memref<4xf32, #tpu.memory_space<smem>>
    %351 = vector.broadcast %350 : f32 to vector<1x256xf32>
    %352 = arith.addf %224, %351 : vector<1x256xf32>
    %cst_58 = arith.constant 0.000000e+00 : f32
    %353 = vector.broadcast %cst_58 : f32 to vector<1x256xf32>
    %354 = arith.maximumf %352, %353 : vector<1x256xf32>
    %c3 = arith.constant 3 : index
    %355 = memref.load %arg6[%c3] : memref<4xf32, #tpu.memory_space<smem>>
    %356 = vector.broadcast %355 : f32 to vector<1x256xf32>
    %357 = arith.addf %228, %356 : vector<1x256xf32>
    %cst_59 = arith.constant 0.000000e+00 : f32
    %358 = vector.broadcast %cst_59 : f32 to vector<1x256xf32>
    %359 = arith.maximumf %357, %358 : vector<1x256xf32>
    %360 = tpu.concatenate %344, %349, %354, %359 in 0 : vector<1x256xf32>, vector<1x256xf32>, vector<1x256xf32>, vector<1x256xf32> -> vector<4x256xf32>
    %c0_60 = arith.constant 0 : index
    %c0_61 = arith.constant 0 : index
    %c0_62 = arith.constant 0 : index
    %361 = vector.load %arg8[%c0_60, %c0_61, %c0_62] : memref<1x4x256xf32, #tpu.memory_space<vmem>>, vector<1x4x256xf32>
    %362 = vector.shape_cast %361 : vector<1x4x256xf32> to vector<4x256xf32>
    %363 = vector.shape_cast %360 : vector<4x256xf32> to vector<1x4x256xf32>
    tpu.vector_store %arg8[%c0_60, %c0_61, %c0_62], %363 {strides = array<i32>} : memref<1x4x256xf32, #tpu.memory_space<vmem>>, vector<1x4x256xf32>,
    %c0_63 = arith.constant 0 : index
    %364 = memref.load %arg7[%c0_63] : memref<2xf32, #tpu.memory_space<smem>>
    %365 = vector.broadcast %364 : f32 to vector<1x256xf32>
    %366 = arith.addf %335, %365 : vector<1x256xf32>
    %c1_64 = arith.constant 1 : index
    %367 = memref.load %arg7[%c1_64] : memref<2xf32, #tpu.memory_space<smem>>
    %368 = vector.broadcast %367 : f32 to vector<1x256xf32>
    %369 = arith.addf %339, %368 : vector<1x256xf32>
    %cst_65 = arith.constant 1.000000e+00 : f32
    %370 = vector.broadcast %cst_65 : f32 to vector<1x256xf32>
    %371 = arith.addf %366, %370 : vector<1x256xf32>
    %cst_66 = arith.constant 8.000000e+00 : f32
    %372 = vector.broadcast %cst_66 : f32 to vector<1x256xf32>
    %373 = arith.mulf %371, %372 : vector<1x256xf32>
    %cst_67 = arith.constant 5.000000e-01 : f32
    %374 = vector.broadcast %cst_67 : f32 to vector<1x256xf32>
    %375 = arith.subf %373, %374 : vector<1x256xf32>
    %cst_68 = arith.constant 1.000000e+00 : f32
    %376 = vector.broadcast %cst_68 : f32 to vector<1x256xf32>
    %377 = arith.addf %369, %376 : vector<1x256xf32>
    %cst_69 = arith.constant 8.000000e+00 : f32
    %378 = vector.broadcast %cst_69 : f32 to vector<1x256xf32>
    %379 = arith.mulf %377, %378 : vector<1x256xf32>
    %cst_70 = arith.constant 5.000000e-01 : f32
    %380 = vector.broadcast %cst_70 : f32 to vector<1x256xf32>
    %381 = arith.subf %379, %380 : vector<1x256xf32>
    %382 = math.floor %375 : vector<1x256xf32>
    %383 = math.floor %381 : vector<1x256xf32>
    %384 = arith.subf %375, %382 : vector<1x256xf32>
    %cst_71 = arith.constant 1.000000e+00 : f32
    %385 = vector.broadcast %cst_71 : f32 to vector<1x256xf32>
    %386 = arith.subf %385, %384 : vector<1x256xf32>
    %387 = arith.subf %381, %383 : vector<1x256xf32>
    %cst_72 = arith.constant 1.000000e+00 : f32
    %388 = vector.broadcast %cst_72 : f32 to vector<1x256xf32>
    %389 = arith.subf %388, %387 : vector<1x256xf32>
    %390 = arith.fptosi %382 : vector<1x256xf32> to vector<1x256xi32>
    %391 = arith.fptosi %383 : vector<1x256xf32> to vector<1x256xi32>
    %c1_i32 = arith.constant 1 : i32
    %392 = vector.broadcast %c1_i32 : i32 to vector<1x256xi32>
    %393 = arith.addi %390, %392 : vector<1x256xi32>
    %c1_i32_73 = arith.constant 1 : i32
    %394 = vector.broadcast %c1_i32_73 : i32 to vector<1x256xi32>
    %395 = arith.addi %391, %394 : vector<1x256xi32>
    %396 = arith.mulf %389, %386 : vector<1x256xf32>
    %c0_i32 = arith.constant 0 : i32
    %397 = vector.broadcast %c0_i32 : i32 to vector<1x256xi32>
    %398 = arith.cmpi sge, %390, %397 : vector<1x256xi32>
    %c16_i32 = arith.constant 16 : i32
    %399 = vector.broadcast %c16_i32 : i32 to vector<1x256xi32>
    %400 = arith.cmpi slt, %390, %399 : vector<1x256xi32>
    %401 = arith.andi %398, %400 : vector<1x256xi1>
    %c0_i32_74 = arith.constant 0 : i32
    %402 = vector.broadcast %c0_i32_74 : i32 to vector<1x256xi32>
    %403 = arith.cmpi sge, %391, %402 : vector<1x256xi32>
    %404 = arith.andi %401, %403 : vector<1x256xi1>
    %c16_i32_75 = arith.constant 16 : i32
    %405 = vector.broadcast %c16_i32_75 : i32 to vector<1x256xi32>
    %406 = arith.cmpi slt, %391, %405 : vector<1x256xi32>
    %407 = arith.andi %404, %406 : vector<1x256xi1>
    %c0_i32_76 = arith.constant 0 : i32
    %c15_i32 = arith.constant 15 : i32
    %408 = vector.broadcast %c0_i32_76 : i32 to vector<1x256xi32>
    %409 = arith.maxsi %408, %391 : vector<1x256xi32>
    %410 = vector.broadcast %c15_i32 : i32 to vector<1x256xi32>
    %411 = arith.minsi %410, %409 : vector<1x256xi32>
    %c16_i32_77 = arith.constant 16 : i32
    %412 = vector.broadcast %c16_i32_77 : i32 to vector<1x256xi32>
    %413 = arith.muli %411, %412 : vector<1x256xi32>
    %c0_i32_78 = arith.constant 0 : i32
    %c15_i32_79 = arith.constant 15 : i32
    %414 = vector.broadcast %c0_i32_78 : i32 to vector<1x256xi32>
    %415 = arith.maxsi %414, %390 : vector<1x256xi32>
    %416 = vector.broadcast %c15_i32_79 : i32 to vector<1x256xi32>
    %417 = arith.minsi %416, %415 : vector<1x256xi32>
    %418 = arith.addi %413, %417 : vector<1x256xi32>
    %cst_80 = arith.constant 0.000000e+00 : f32
    %419 = vector.broadcast %cst_80 : f32 to vector<1x256xf32>
    %420 = arith.select %407, %396, %419 : vector<1x256xi1>, vector<1x256xf32>
    %421 = arith.mulf %389, %384 : vector<1x256xf32>
    %c0_i32_81 = arith.constant 0 : i32
    %422 = vector.broadcast %c0_i32_81 : i32 to vector<1x256xi32>
    %423 = arith.cmpi sge, %393, %422 : vector<1x256xi32>
    %c16_i32_82 = arith.constant 16 : i32
    %424 = vector.broadcast %c16_i32_82 : i32 to vector<1x256xi32>
    %425 = arith.cmpi slt, %393, %424 : vector<1x256xi32>
    %426 = arith.andi %423, %425 : vector<1x256xi1>
    %c0_i32_83 = arith.constant 0 : i32
    %427 = vector.broadcast %c0_i32_83 : i32 to vector<1x256xi32>
    %428 = arith.cmpi sge, %391, %427 : vector<1x256xi32>
    %429 = arith.andi %426, %428 : vector<1x256xi1>
    %c16_i32_84 = arith.constant 16 : i32
    %430 = vector.broadcast %c16_i32_84 : i32 to vector<1x256xi32>
    %431 = arith.cmpi slt, %391, %430 : vector<1x256xi32>
    %432 = arith.andi %429, %431 : vector<1x256xi1>
    %c0_i32_85 = arith.constant 0 : i32
    %c15_i32_86 = arith.constant 15 : i32
    %433 = vector.broadcast %c0_i32_85 : i32 to vector<1x256xi32>
    %434 = arith.maxsi %433, %391 : vector<1x256xi32>
    %435 = vector.broadcast %c15_i32_86 : i32 to vector<1x256xi32>
    %436 = arith.minsi %435, %434 : vector<1x256xi32>
    %c16_i32_87 = arith.constant 16 : i32
    %437 = vector.broadcast %c16_i32_87 : i32 to vector<1x256xi32>
    %438 = arith.muli %436, %437 : vector<1x256xi32>
    %c0_i32_88 = arith.constant 0 : i32
    %c15_i32_89 = arith.constant 15 : i32
    %439 = vector.broadcast %c0_i32_88 : i32 to vector<1x256xi32>
    %440 = arith.maxsi %439, %393 : vector<1x256xi32>
    %441 = vector.broadcast %c15_i32_89 : i32 to vector<1x256xi32>
    %442 = arith.minsi %441, %440 : vector<1x256xi32>
    %443 = arith.addi %438, %442 : vector<1x256xi32>
    %cst_90 = arith.constant 0.000000e+00 : f32
    %444 = vector.broadcast %cst_90 : f32 to vector<1x256xf32>
    %445 = arith.select %432, %421, %444 : vector<1x256xi1>, vector<1x256xf32>
    %446 = arith.mulf %387, %386 : vector<1x256xf32>
    %c0_i32_91 = arith.constant 0 : i32
    %447 = vector.broadcast %c0_i32_91 : i32 to vector<1x256xi32>
    %448 = arith.cmpi sge, %390, %447 : vector<1x256xi32>
    %c16_i32_92 = arith.constant 16 : i32
    %449 = vector.broadcast %c16_i32_92 : i32 to vector<1x256xi32>
    %450 = arith.cmpi slt, %390, %449 : vector<1x256xi32>
    %451 = arith.andi %448, %450 : vector<1x256xi1>
    %c0_i32_93 = arith.constant 0 : i32
    %452 = vector.broadcast %c0_i32_93 : i32 to vector<1x256xi32>
    %453 = arith.cmpi sge, %395, %452 : vector<1x256xi32>
    %454 = arith.andi %451, %453 : vector<1x256xi1>
    %c16_i32_94 = arith.constant 16 : i32
    %455 = vector.broadcast %c16_i32_94 : i32 to vector<1x256xi32>
    %456 = arith.cmpi slt, %395, %455 : vector<1x256xi32>
    %457 = arith.andi %454, %456 : vector<1x256xi1>
    %c0_i32_95 = arith.constant 0 : i32
    %c15_i32_96 = arith.constant 15 : i32
    %458 = vector.broadcast %c0_i32_95 : i32 to vector<1x256xi32>
    %459 = arith.maxsi %458, %395 : vector<1x256xi32>
    %460 = vector.broadcast %c15_i32_96 : i32 to vector<1x256xi32>
    %461 = arith.minsi %460, %459 : vector<1x256xi32>
    %c16_i32_97 = arith.constant 16 : i32
    %462 = vector.broadcast %c16_i32_97 : i32 to vector<1x256xi32>
    %463 = arith.muli %461, %462 : vector<1x256xi32>
    %c0_i32_98 = arith.constant 0 : i32
    %c15_i32_99 = arith.constant 15 : i32
    %464 = vector.broadcast %c0_i32_98 : i32 to vector<1x256xi32>
    %465 = arith.maxsi %464, %390 : vector<1x256xi32>
    %466 = vector.broadcast %c15_i32_99 : i32 to vector<1x256xi32>
    %467 = arith.minsi %466, %465 : vector<1x256xi32>
    %468 = arith.addi %463, %467 : vector<1x256xi32>
    %cst_100 = arith.constant 0.000000e+00 : f32
    %469 = vector.broadcast %cst_100 : f32 to vector<1x256xf32>
    %470 = arith.select %457, %446, %469 : vector<1x256xi1>, vector<1x256xf32>
    %471 = arith.mulf %387, %384 : vector<1x256xf32>
    %c0_i32_101 = arith.constant 0 : i32
    %472 = vector.broadcast %c0_i32_101 : i32 to vector<1x256xi32>
    %473 = arith.cmpi sge, %393, %472 : vector<1x256xi32>
    %c16_i32_102 = arith.constant 16 : i32
    %474 = vector.broadcast %c16_i32_102 : i32 to vector<1x256xi32>
    %475 = arith.cmpi slt, %393, %474 : vector<1x256xi32>
    %476 = arith.andi %473, %475 : vector<1x256xi1>
    %c0_i32_103 = arith.constant 0 : i32
    %477 = vector.broadcast %c0_i32_103 : i32 to vector<1x256xi32>
    %478 = arith.cmpi sge, %395, %477 : vector<1x256xi32>
    %479 = arith.andi %476, %478 : vector<1x256xi1>
    %c16_i32_104 = arith.constant 16 : i32
    %480 = vector.broadcast %c16_i32_104 : i32 to vector<1x256xi32>
    %481 = arith.cmpi slt, %395, %480 : vector<1x256xi32>
    %482 = arith.andi %479, %481 : vector<1x256xi1>
    %c0_i32_105 = arith.constant 0 : i32
    %c15_i32_106 = arith.constant 15 : i32
    %483 = vector.broadcast %c0_i32_105 : i32 to vector<1x256xi32>
    %484 = arith.maxsi %483, %395 : vector<1x256xi32>
    %485 = vector.broadcast %c15_i32_106 : i32 to vector<1x256xi32>
    %486 = arith.minsi %485, %484 : vector<1x256xi32>
    %c16_i32_107 = arith.constant 16 : i32
    %487 = vector.broadcast %c16_i32_107 : i32 to vector<1x256xi32>
    %488 = arith.muli %486, %487 : vector<1x256xi32>
    %c0_i32_108 = arith.constant 0 : i32
    %c15_i32_109 = arith.constant 15 : i32
    %489 = vector.broadcast %c0_i32_108 : i32 to vector<1x256xi32>
    %490 = arith.maxsi %489, %393 : vector<1x256xi32>
    %491 = vector.broadcast %c15_i32_109 : i32 to vector<1x256xi32>
    %492 = arith.minsi %491, %490 : vector<1x256xi32>
    %493 = arith.addi %488, %492 : vector<1x256xi32>
    %cst_110 = arith.constant 0.000000e+00 : f32
    %494 = vector.broadcast %cst_110 : f32 to vector<1x256xf32>
    %495 = arith.select %482, %471, %494 : vector<1x256xi1>, vector<1x256xf32>
    %496 = tpu.concatenate %418, %443, %468, %493 in 0 : vector<1x256xi32>, vector<1x256xi32>, vector<1x256xi32>, vector<1x256xi32> -> vector<4x256xi32>
    %c0_111 = arith.constant 0 : index
    %c0_112 = arith.constant 0 : index
    %c0_113 = arith.constant 0 : index
    %497 = vector.load %arg9[%c0_111, %c0_112, %c0_113] : memref<1x4x256xi32, #tpu.memory_space<vmem>>, vector<1x4x256xi32>
    %498 = vector.shape_cast %497 : vector<1x4x256xi32> to vector<4x256xi32>
    %499 = vector.shape_cast %496 : vector<4x256xi32> to vector<1x4x256xi32>
    tpu.vector_store %arg9[%c0_111, %c0_112, %c0_113], %499 {strides = array<i32>} : memref<1x4x256xi32, #tpu.memory_space<vmem>>, vector<1x4x256xi32>,
    %500 = tpu.concatenate %420, %445, %470, %495 in 0 : vector<1x256xf32>, vector<1x256xf32>, vector<1x256xf32>, vector<1x256xf32> -> vector<4x256xf32>
    %c0_114 = arith.constant 0 : index
    %c0_115 = arith.constant 0 : index
    %c0_116 = arith.constant 0 : index
    %501 = vector.load %arg10[%c0_114, %c0_115, %c0_116] : memref<1x4x256xf32, #tpu.memory_space<vmem>>, vector<1x4x256xf32>
    %502 = vector.shape_cast %501 : vector<1x4x256xf32> to vector<4x256xf32>
    %503 = vector.shape_cast %500 : vector<4x256xf32> to vector<1x4x256xf32>
    tpu.vector_store %arg10[%c0_114, %c0_115, %c0_116], %503 {strides = array<i32>} : memref<1x4x256xf32, #tpu.memory_space<vmem>>, vector<1x4x256xf32>,
    return
  }
  func.func @transform_0(%arg0: i32) -> (i32, i32, i32) {
    %c0_i32 = arith.constant 0 : i32
    %c0_i32_0 = arith.constant 0 : i32
    %c0_i32_1 = arith.constant 0 : i32
    return %arg0, %c0_i32, %c0_i32_0 : i32, i32, i32
  }
  func.func @transform_1(%arg0: i32) -> (i32, i32, i32) {
    %c0_i32 = arith.constant 0 : i32
    %c0_i32_0 = arith.constant 0 : i32
    %c0_i32_1 = arith.constant 0 : i32
    return %arg0, %c0_i32, %c0_i32_0 : i32, i32, i32
  }
  func.func @transform_2(%arg0: i32) -> (i32, i32) {
    %c0_i32 = arith.constant 0 : i32
    %c0_i32_0 = arith.constant 0 : i32
    %c0_i32_1 = arith.constant 0 : i32
    return %c0_i32, %c0_i32_0 : i32, i32
  }
  func.func @transform_3(%arg0: i32) -> (i32, i32) {
    %c0_i32 = arith.constant 0 : i32
    %c0_i32_0 = arith.constant 0 : i32
    %c0_i32_1 = arith.constant 0 : i32
    return %c0_i32, %c0_i32_0 : i32, i32
  }
  func.func @transform_4(%arg0: i32) -> (i32, i32) {
    %c0_i32 = arith.constant 0 : i32
    %c0_i32_0 = arith.constant 0 : i32
    %c0_i32_1 = arith.constant 0 : i32
    return %c0_i32, %c0_i32_0 : i32, i32
  }
  func.func @transform_5(%arg0: i32) -> i32 {
    %c0_i32 = arith.constant 0 : i32
    %c0_i32_0 = arith.constant 0 : i32
    return %c0_i32 : i32
  }
  func.func @transform_6(%arg0: i32) -> i32 {
    %c0_i32 = arith.constant 0 : i32
    %c0_i32_0 = arith.constant 0 : i32
    return %c0_i32 : i32
  }
  func.func @transform_7(%arg0: i32) -> (i32, i32, i32) {
    %c0_i32 = arith.constant 0 : i32
    %c0_i32_0 = arith.constant 0 : i32
    %c0_i32_1 = arith.constant 0 : i32
    return %arg0, %c0_i32, %c0_i32_0 : i32, i32, i32
  }
  func.func @transform_8(%arg0: i32) -> (i32, i32, i32) {
    %c0_i32 = arith.constant 0 : i32
    %c0_i32_0 = arith.constant 0 : i32
    %c0_i32_1 = arith.constant 0 : i32
    return %arg0, %c0_i32, %c0_i32_0 : i32, i32, i32
  }
  func.func @transform_9(%arg0: i32) -> (i32, i32, i32) {
    %c0_i32 = arith.constant 0 : i32
    %c0_i32_0 = arith.constant 0 : i32
    %c0_i32_1 = arith.constant 0 : i32
    return %arg0, %c0_i32, %c0_i32_0 : i32, i32, i32
  }
}

</mosaic_0001>

<llo_original>
// kernel: tpu_custom_call.1
$region0: #{tpu_custom_call.1}
  #allocation0 [shape = 'u32[]', space=smem, size = 0x4, offset = 0x4, fixed_abs, tag = 'smem constant byte address 0x4 - core index']
  #allocation1 [shape = 'u32[144,128]{1,0:T(1,128)}', space=vmem, size = 0x12000, scoped, tag = 'internal scratch']
  %s0 = inlined_call_operand.hbm [shape: f32[2,4,256], index: 0, kind: input, shape index: {}]
  %s1 = inlined_call_operand.hbm [shape: f32[2,4,256], index: 1, kind: input, shape index: {}]
  %s2 = inlined_call_operand.hbm [shape: f32[2,256], index: 2, kind: input, shape index: {}]
  %s3 = inlined_call_operand.hbm [shape: f32[8,36], index: 3, kind: input, shape index: {}]
  %s4 = inlined_call_operand.hbm [shape: f32[8,18], index: 4, kind: input, shape index: {}]
  %s5 = inlined_call_operand.hbm [shape: f32[4], index: 5, kind: input, shape index: {}]
  %s6 = inlined_call_operand.hbm [shape: f32[2], index: 6, kind: input, shape index: {}]
  %s7 = inlined_call_operand.hbm [shape: f32[2,4,256], index: 7, kind: output, shape index: {0}]
  %s8 = inlined_call_operand.hbm [shape: s32[2,4,256], index: 8, kind: output, shape index: {1}]
  %s9 = inlined_call_operand.hbm [shape: f32[2,4,256], index: 9, kind: output, shape index: {2}]
  %10 = xla_tuple %s7, %s8, %s9
  %s11 = sld [smem:[#allocation0]]
  $region105: #{tpu_custom_call.1} parent=0
    _
  %s13 = ssub.s32 1, %s11
  %s14 = scalar_select 0, %s13, %s11
  $region1: #{tpu_custom_call.1} parent=0
    #allocation2 [shape = 'u8[8192]{0}', space=vmem, size = 0x2000, scoped, tag = 'input window, operand 0']
    #allocation3 [shape = 's32[2]{0}', space=sflag, size = 0x8, scoped, tag = 'scoped memory for tpu_custom_call.1']
    #allocation4 [shape = 's32[2]{0}', space=sflag, size = 0x8, scoped, tag = 'scoped memory for tpu_custom_call.1']
    #allocation5 [shape = 's32[2]{0}', space=sflag, size = 0x8, scoped, tag = 'scoped memory for tpu_custom_call.1']
    #allocation6 [shape = 'u8[8192]{0}', space=vmem, size = 0x2000, scoped, tag = 'input window, operand 1']
    #allocation7 [shape = 's32[2]{0}', space=sflag, size = 0x8, scoped, tag = 'scoped memory for tpu_custom_call.1']
    #allocation8 [shape = 'u8[2048]{0}', space=vmem, size = 0x800, scoped, tag = 'input window, operand 2, single buffered']
    #allocation9 [shape = 'u8[4096]{0}', space=vmem, size = 0x1000, scoped, tag = 'input window, operand 3, single buffered']
    #allocation10 [shape = 's32[1]{0}', space=sflag, size = 0x4, scoped, tag = 'scoped memory for tpu_custom_call.1']
    #allocation11 [shape = 'u8[4096]{0}', space=vmem, size = 0x1000, scoped, tag = 'input window, operand 4, single buffered']
    #allocation12 [shape = 'u8[512]{0}', space=smem, size = 0x200, scoped, tag = 'input window, operand 5, single buffered']
    #allocation13 [shape = 'u8[512]{0}', space=smem, size = 0x200, scoped, tag = 'input window, operand 6, single buffered']
    #allocation14 [shape = 's32[1]{0}', space=sflag, size = 0x4, scoped, tag = 'scoped memory for tpu_custom_call.1']
    #allocation15 [shape = 'u8[8192]{0}', space=vmem, size = 0x2000, scoped, tag = 'output window, operand 0']
    #allocation16 [shape = 'u8[8192]{0}', space=vmem, size = 0x2000, scoped, tag = 'output window, operand 1']
    #allocation17 [shape = 's32[2]{0}', space=sflag, size = 0x8, scoped, tag = 'scoped memory for tpu_custom_call.1']
    #allocation18 [shape = 'u8[8192]{0}', space=vmem, size = 0x2000, scoped, tag = 'output window, operand 2']
    %15 = vsyncpa [#allocation3], 0
    %s16 = scalar_lea.sflag [#allocation3], 1
    %17 = vsyncpa %s16, 0
    %18 = vsyncpa [#allocation7], 0
    %s19 = scalar_lea.sflag [#allocation7], 1
    %20 = vsyncpa %s19, 0
    %21 = vsyncpa [#allocation10], 0
    %22 = vsyncpa [#allocation5], 0
    %23 = vsyncpa [#allocation14], 0
    %24 = vsyncpa [#allocation4], 0
    %s25 = scalar_lea.sflag [#allocation4], 1
    %26 = vsyncpa %s25, 0
    %27 = vsyncpa [#allocation17], 0
    %s28 = scalar_lea.sflag [#allocation17], 1
    %29 = vsyncpa %s28, 0
    loop: start=0, step=1, limit=4
    $region2: #{tpu_custom_call.1} parent=1 // loop_pre_header
      _
    $region3: #{tpu_custom_call.1} parent=1 // loop_header
      %s31 = sphi 0, %s35
      %p32 = scmp.ge.s32.totalorder %s31, 4
      %s41 = sphi 0, %s43
      %s44 = sphi 0, %s41
      %s45 = sphi 0, %s44
      %s61 = sphi 0, %s45
      %s67 = sphi 0, %s69
      %s70 = sphi 0, %s67
      %s71 = sphi 0, %s70
      %s87 = sphi 0, %s71
      %s91 = sphi 0, %s91
      %s93 = sphi 0, %s91
      %s94 = sphi 0, %s93
      %s108 = sphi 0, %s94
      %s112 = sphi 0, %s112
      %s114 = sphi 0, %s112
      %s115 = sphi 0, %s114
      %s129 = sphi 0, %s115
      %s133 = sphi 0, %s133
      %s135 = sphi 0, %s133
      %s136 = sphi 0, %s135
      %s150 = sphi 0, %s136
      %s154 = sphi 0, %s154
      %s156 = sphi 0, %s154
      %s157 = sphi 0, %s156
      %s171 = sphi 0, %s157
      %s175 = sphi 0, %s175
      %s177 = sphi 0, %s175
      %s178 = sphi 0, %s177
      %s192 = sphi 0, %s178
      %s198 = sphi 0, %s200
      %s201 = sphi 0, %s198
      %s202 = sphi 0, %s201
      %s218 = sphi 0, %s202
      %s224 = sphi 0, %s226
      %s227 = sphi 0, %s224
      %s228 = sphi 0, %s227
      %s244 = sphi 0, %s228
      %s250 = sphi 0, %s252
      %s253 = sphi 0, %s250
      %s254 = sphi 0, %s253
      %s270 = sphi 0, %s254
    $region4: #{tpu_custom_call.1} parent=1 // loop_header_branch
      %34 = sbr.rel (%p32) target = $region8
    $region5: #{tpu_custom_call.1} parent=1 // loop_body
      %s36 = ssub.s32 %s31, 1
      %s37 = ssub.s32 %s31, 2
      %s38 = sadd.s32 %s31, 1
      %s39 = ssub.s32 %s31, %s38
      %p40 = scmp.eq.s32.totalorder %s39, 0
      %s42 = sadd.s32 %s41, 1
      %s43 = scalar_select %p40, %s41, %s42
      %p46 = pneg %p40
      %p47 = scmp.eq.s32.totalorder %s31, 1
      %p48 = por %p46, %p47
      %p49 = scmp.ne.s32.totalorder %s41, %s44
      %p50 = scmp.eq.s32.totalorder %s31, 0
      %p51 = por %p49, %p50
      %p52 = scmp.ne.s32.totalorder %s41, %s44
      %p53 = scmp.eq.s32.totalorder %s36, 1
      %p54 = por %p52, %p53
      %p55 = scmp.ne.s32.totalorder %s44, %s45
      %p56 = scmp.eq.s32.totalorder %s36, 0
      %p57 = por %p55, %p56
      %p58 = scmp.ne.s32.totalorder %s44, %s45
      %p59 = scmp.eq.s32.totalorder %s37, 1
      %p60 = por %p58, %p59
      %p62 = scmp.ne.s32.totalorder %s45, %s61
      %p63 = scmp.eq.s32.totalorder %s37, 0
      %p64 = por %p62, %p63
      %s65 = ssub.s32 %s31, %s38
      %p66 = scmp.eq.s32.totalorder %s65, 0
      %s68 = sadd.s32 %s67, 1
      %s69 = scalar_select %p66, %s67, %s68
      %p72 = pneg %p66
      %p73 = scmp.eq.s32.totalorder %s31, 1
      %p74 = por %p72, %p73
      %p75 = scmp.ne.s32.totalorder %s67, %s70
      %p76 = scmp.eq.s32.totalorder %s31, 0
      %p77 = por %p75, %p76
      %p78 = scmp.ne.s32.totalorder %s67, %s70
      %p79 = scmp.eq.s32.totalorder %s36, 1
      %p80 = por %p78, %p79
      %p81 = scmp.ne.s32.totalorder %s70, %s71
      %p82 = scmp.eq.s32.totalorder %s36, 0
      %p83 = por %p81, %p82
      %p84 = scmp.ne.s32.totalorder %s70, %s71
      %p85 = scmp.eq.s32.totalorder %s37, 1
      %p86 = por %p84, %p85
      %p88 = scmp.ne.s32.totalorder %s71, %s87
      %p89 = scmp.eq.s32.totalorder %s37, 0
      %p90 = por %p88, %p89
      %s92 = sadd.s32 %s91, 1
      %p95 = scmp.eq.s32.totalorder %s31, 1
      %p96 = scmp.ne.s32.totalorder %s91, %s93
      %p97 = scmp.eq.s32.totalorder %s31, 0
      %p98 = por %p96, %p97
      %p99 = scmp.ne.s32.totalorder %s91, %s93
      %p100 = scmp.eq.s32.totalorder %s36, 1
      %p101 = por %p99, %p100
      %p102 = scmp.ne.s32.totalorder %s93, %s94
      %p103 = scmp.eq.s32.totalorder %s36, 0
      %p104 = por %p102, %p103
      %p105 = scmp.ne.s32.totalorder %s93, %s94
      %p106 = scmp.eq.s32.totalorder %s37, 1
      %p107 = por %p105, %p106
      %p109 = scmp.ne.s32.totalorder %s94, %s108
      %p110 = scmp.eq.s32.totalorder %s37, 0
      %p111 = por %p109, %p110
      %s113 = sadd.s32 %s112, 1
      %p116 = scmp.eq.s32.totalorder %s31, 1
      %p117 = scmp.ne.s32.totalorder %s112, %s114
      %p118 = scmp.eq.s32.totalorder %s31, 0
      %p119 = por %p117, %p118
      %p120 = scmp.ne.s32.totalorder %s112, %s114
      %p121 = scmp.eq.s32.totalorder %s36, 1
      %p122 = por %p120, %p121
      %p123 = scmp.ne.s32.totalorder %s114, %s115
      %p124 = scmp.eq.s32.totalorder %s36, 0
      %p125 = por %p123, %p124
      %p126 = scmp.ne.s32.totalorder %s114, %s115
      %p127 = scmp.eq.s32.totalorder %s37, 1
      %p128 = por %p126, %p127
      %p130 = scmp.ne.s32.totalorder %s115, %s129
      %p131 = scmp.eq.s32.totalorder %s37, 0
      %p132 = por %p130, %p131
      %s134 = sadd.s32 %s133, 1
      %p137 = scmp.eq.s32.totalorder %s31, 1
      %p138 = scmp.ne.s32.totalorder %s133, %s135
      %p139 = scmp.eq.s32.totalorder %s31, 0
      %p140 = por %p138, %p139
      %p141 = scmp.ne.s32.totalorder %s133, %s135
      %p142 = scmp.eq.s32.totalorder %s36, 1
      %p143 = por %p141, %p142
      %p144 = scmp.ne.s32.totalorder %s135, %s136
      %p145 = scmp.eq.s32.totalorder %s36, 0
      %p146 = por %p144, %p145
      %p147 = scmp.ne.s32.totalorder %s135, %s136
      %p148 = scmp.eq.s32.totalorder %s37, 1
      %p149 = por %p147, %p148
      %p151 = scmp.ne.s32.totalorder %s136, %s150
      %p152 = scmp.eq.s32.totalorder %s37, 0
      %p153 = por %p151, %p152
      %s155 = sadd.s32 %s154, 1
      %p158 = scmp.eq.s32.totalorder %s31, 1
      %p159 = scmp.ne.s32.totalorder %s154, %s156
      %p160 = scmp.eq.s32.totalorder %s31, 0
      %p161 = por %p159, %p160
      %p162 = scmp.ne.s32.totalorder %s154, %s156
      %p163 = scmp.eq.s32.totalorder %s36, 1
      %p164 = por %p162, %p163
      %p165 = scmp.ne.s32.totalorder %s156, %s157
      %p166 = scmp.eq.s32.totalorder %s36, 0
      %p167 = por %p165, %p166
      %p168 = scmp.ne.s32.totalorder %s156, %s157
      %p169 = scmp.eq.s32.totalorder %s37, 1
      %p170 = por %p168, %p169
      %p172 = scmp.ne.s32.totalorder %s157, %s171
      %p173 = scmp.eq.s32.totalorder %s37, 0
      %p174 = por %p172, %p173
      %s176 = sadd.s32 %s175, 1
      %p179 = scmp.eq.s32.totalorder %s31, 1
      %p180 = scmp.ne.s32.totalorder %s175, %s177
      %p181 = scmp.eq.s32.totalorder %s31, 0
      %p182 = por %p180, %p181
      %p183 = scmp.ne.s32.totalorder %s175, %s177
      %p184 = scmp.eq.s32.totalorder %s36, 1
      %p185 = por %p183, %p184
      %p186 = scmp.ne.s32.totalorder %s177, %s178
      %p187 = scmp.eq.s32.totalorder %s36, 0
      %p188 = por %p186, %p187
      %p189 = scmp.ne.s32.totalorder %s177, %s178
      %p190 = scmp.eq.s32.totalorder %s37, 1
      %p191 = por %p189, %p190
      %p193 = scmp.ne.s32.totalorder %s178, %s192
      %p194 = scmp.eq.s32.totalorder %s37, 0
      %p195 = por %p193, %p194
      %s196 = ssub.s32 %s31, %s38
      %p197 = scmp.eq.s32.totalorder %s196, 0
      %s199 = sadd.s32 %s198, 1
      %s200 = scalar_select %p197, %s198, %s199
      %p203 = pneg %p197
      %p204 = scmp.eq.s32.totalorder %s31, 1
      %p205 = por %p203, %p204
      %p206 = scmp.ne.s32.totalorder %s198, %s201
      %p207 = scmp.eq.s32.totalorder %s31, 0
      %p208 = por %p206, %p207
      %p209 = scmp.ne.s32.totalorder %s198, %s201
      %p210 = scmp.eq.s32.totalorder %s36, 1
      %p211 = por %p209, %p210
      %p212 = scmp.ne.s32.totalorder %s201, %s202
      %p213 = scmp.eq.s32.totalorder %s36, 0
      %p214 = por %p212, %p213
      %p215 = scmp.ne.s32.totalorder %s201, %s202
      %p216 = scmp.eq.s32.totalorder %s37, 1
      %p217 = por %p215, %p216
      %p219 = scmp.ne.s32.totalorder %s202, %s218
      %p220 = scmp.eq.s32.totalorder %s37, 0
      %p221 = por %p219, %p220
      %s222 = ssub.s32 %s31, %s38
      %p223 = scmp.eq.s32.totalorder %s222, 0
      %s225 = sadd.s32 %s224, 1
      %s226 = scalar_select %p223, %s224, %s225
      %p229 = pneg %p223
      %p230 = scmp.eq.s32.totalorder %s31, 1
      %p231 = por %p229, %p230
      %p232 = scmp.ne.s32.totalorder %s224, %s227
      %p233 = scmp.eq.s32.totalorder %s31, 0
      %p234 = por %p232, %p233
      %p235 = scmp.ne.s32.totalorder %s224, %s227
      %p236 = scmp.eq.s32.totalorder %s36, 1
      %p237 = por %p235, %p236
      %p238 = scmp.ne.s32.totalorder %s227, %s228
      %p239 = scmp.eq.s32.totalorder %s36, 0
      %p240 = por %p238, %p239
      %p241 = scmp.ne.s32.totalorder %s227, %s228
      %p242 = scmp.eq.s32.totalorder %s37, 1
      %p243 = por %p241, %p242
      %p245 = scmp.ne.s32.totalorder %s228, %s244
      %p246 = scmp.eq.s32.totalorder %s37, 0
      %p247 = por %p245, %p246
      %s248 = ssub.s32 %s31, %s38
      %p249 = scmp.eq.s32.totalorder %s248, 0
      %s251 = sadd.s32 %s250, 1
      %s252 = scalar_select %p249, %s250, %s251
      %p255 = pneg %p249
      %p256 = scmp.eq.s32.totalorder %s31, 1
      %p257 = por %p255, %p256
      %p258 = scmp.ne.s32.totalorder %s250, %s253
      %p259 = scmp.eq.s32.totalorder %s31, 0
      %p260 = por %p258, %p259
      %p261 = scmp.ne.s32.totalorder %s250, %s253
      %p262 = scmp.eq.s32.totalorder %s36, 1
      %p263 = por %p261, %p262
      %p264 = scmp.ne.s32.totalorder %s253, %s254
      %p265 = scmp.eq.s32.totalorder %s36, 0
      %p266 = por %p264, %p265
      %p267 = scmp.ne.s32.totalorder %s253, %s254
      %p268 = scmp.eq.s32.totalorder %s37, 1
      %p269 = por %p267, %p268
      %p271 = scmp.ne.s32.totalorder %s254, %s270
      %p272 = scmp.eq.s32.totalorder %s37, 0
      %p273 = por %p271, %p272
      %p274 = scmp.le.s32.totalorder 1, %s31
      %p275 = scmp.lt.s32.totalorder %s31, 3
      %p276 = pnand %p274, %p275
      %p277 = pneg %p276
      // Predicated region
      $region9: #{tpu_custom_call.1} parent=5 // pred_check
        _
      $region10: #{tpu_custom_call.1} parent=5 // pred_check_branch
        %279 = sbr.rel (%p276) target = $region12
      $region11: #{tpu_custom_call.1} parent=5 // pred_region
        %s280 = ssub.s32 %s31, 1
        // Predicated region
        $region13: #{tpu_custom_call.1} parent=11 // pred_check
          %p281 = pneg %p104
        $region14: #{tpu_custom_call.1} parent=11 // pred_check_branch
          %283 = sbr.rel (%p281) target = $region16
        $region15: #{tpu_custom_call.1} parent=11 // pred_region
          %s285 = ssub.s32 64, 64
          %286 = vsyncadd [#allocation7], %s285
          %s288 = sshll.u32 [#allocation8], 4
          %s289 = int_to_ptr.vmem [resolvable:$true] %s288
          %291 = dma.hbm_to_vmem [thread:$0]  %s2, 64, %s289, [#allocation7]
        $region16: #{tpu_custom_call.1} parent=11 // pred_fallthru
          _
        // Predicated region
        $region17: #{tpu_custom_call.1} parent=11 // pred_check
          %p292 = pneg %p125
        $region18: #{tpu_custom_call.1} parent=11 // pred_check_branch
          %294 = sbr.rel (%p292) target = $region20
        $region19: #{tpu_custom_call.1} parent=11 // pred_region
          %s296 = ssub.s32 128, 128
          %297 = vsyncadd [#allocation10], %s296
          %s299 = sshll.u32 [#allocation9], 4
          %s300 = int_to_ptr.vmem [resolvable:$true] %s299
          %302 = dma.hbm_to_vmem [thread:$0]  %s3, 128, %s300, [#allocation10]
        $region20: #{tpu_custom_call.1} parent=11 // pred_fallthru
          _
        // Predicated region
        $region21: #{tpu_custom_call.1} parent=11 // pred_check
          %p303 = pneg %p146
        $region22: #{tpu_custom_call.1} parent=11 // pred_check_branch
          %305 = sbr.rel (%p303) target = $region24
        $region23: #{tpu_custom_call.1} parent=11 // pred_region
          %s307 = ssub.s32 128, 128
          %308 = vsyncadd [#allocation10], %s307
          %s310 = sshll.u32 [#allocation11], 4
          %s311 = int_to_ptr.vmem [resolvable:$true] %s310
          %313 = dma.hbm_to_vmem [thread:$0]  %s4, 128, %s311, [#allocation10]
        $region24: #{tpu_custom_call.1} parent=11 // pred_fallthru
          _
        // Predicated region
        $region25: #{tpu_custom_call.1} parent=11 // pred_check
          %p314 = pneg %p167
        $region26: #{tpu_custom_call.1} parent=11 // pred_check_branch
          %316 = sbr.rel (%p314) target = $region28
        $region27: #{tpu_custom_call.1} parent=11 // pred_region
          %s318 = ssub.s32 16, 16
          %319 = vsyncadd [#allocation5], %s318
          %322 = dma.hbm_to_smem %s5, 16, [#allocation12], [#allocation5]
        $region28: #{tpu_custom_call.1} parent=11 // pred_fallthru
          _
        // Predicated region
        $region29: #{tpu_custom_call.1} parent=11 // pred_check
          %p323 = pneg %p188
        $region30: #{tpu_custom_call.1} parent=11 // pred_check_branch
          %325 = sbr.rel (%p323) target = $region32
        $region31: #{tpu_custom_call.1} parent=11 // pred_region
          %s327 = ssub.s32 16, 16
          %328 = vsyncadd [#allocation14], %s327
          %331 = dma.hbm_to_smem %s6, 16, [#allocation13], [#allocation14]
        $region32: #{tpu_custom_call.1} parent=11 // pred_fallthru
          _
      $region12: #{tpu_custom_call.1} parent=5 // pred_fallthru
        _
      %p332 = scmp.lt.s32.totalorder %s31, 2
      // Predicated region
      $region33: #{tpu_custom_call.1} parent=5 // pred_check
        %p333 = pneg %p332
      $region34: #{tpu_custom_call.1} parent=5 // pred_check_branch
        %335 = sbr.rel (%p333) target = $region36
      $region35: #{tpu_custom_call.1} parent=5 // pred_region
        // Predicated region
        $region37: #{tpu_custom_call.1} parent=35 // pred_check
          %p336 = pneg %p51
        $region38: #{tpu_custom_call.1} parent=35 // pred_check_branch
          %338 = sbr.rel (%p336) target = $region40
        $region39: #{tpu_custom_call.1} parent=35 // pred_region
          %s339 = sand.u32 %s41, 1
          %s340 = scalar_lea.sflag [#allocation3], %s339
          %s341 = sand.u32 %s41, 1
          %s342 = smul.addr %s341, 8
          %s343 = scalar_lea.vmem [#allocation2], %s342
          %s345 = ssub.s32 128, 128
          %346 = vsyncadd %s340, %s345
          %s347 = smul.addr %s31, 2
          %s348 = smul.addr %s347, 64
          %s349 = scalar_lea.hbm %s0, %s348
          %s351 = sshll.u32 %s343, 4
          %s352 = int_to_ptr.vmem [resolvable:$true] %s351
          %354 = dma.hbm_to_vmem [thread:$0]  %s349, 128, %s352, %s340
        $region40: #{tpu_custom_call.1} parent=35 // pred_fallthru
          _
        // Predicated region
        $region41: #{tpu_custom_call.1} parent=35 // pred_check
          %p355 = pneg %p77
        $region42: #{tpu_custom_call.1} parent=35 // pred_check_branch
          %357 = sbr.rel (%p355) target = $region44
        $region43: #{tpu_custom_call.1} parent=35 // pred_region
          %s358 = sand.u32 %s31, 1
          %s359 = scalar_lea.sflag [#allocation7], %s358
          %s360 = sand.u32 %s67, 1
          %s361 = smul.addr %s360, 8
          %s362 = scalar_lea.vmem [#allocation6], %s361
          %s364 = ssub.s32 128, 128
          %365 = vsyncadd %s359, %s364
          %s366 = smul.addr %s31, 2
          %s367 = smul.addr %s366, 64
          %s368 = scalar_lea.hbm %s1, %s367
          %s370 = sshll.u32 %s362, 4
          %s371 = int_to_ptr.vmem [resolvable:$true] %s370
          %373 = dma.hbm_to_vmem [thread:$0]  %s368, 128, %s371, %s359
        $region44: #{tpu_custom_call.1} parent=35 // pred_fallthru
          _
      $region36: #{tpu_custom_call.1} parent=5 // pred_fallthru
        _
      %p374 = scmp.le.s32.totalorder 1, %s31
      %p375 = scmp.lt.s32.totalorder %s31, 3
      %p376 = pnand %p374, %p375
      %p377 = pneg %p376
      // Predicated region
      $region45: #{tpu_custom_call.1} parent=5 // pred_check
        _
      $region46: #{tpu_custom_call.1} parent=5 // pred_check_branch
        %379 = sbr.rel (%p376) target = $region48
      $region47: #{tpu_custom_call.1} parent=5 // pred_region
        %s380 = ssub.s32 %s31, 1
        %s381 = sand.u32 %s44, 1
        %s382 = scalar_lea.sflag [#allocation3], %s381
        %s383 = sand.u32 %s44, 1
        %s384 = smul.addr %s383, 8
        %s385 = scalar_lea.vmem [#allocation2], %s384
        // Predicated region
        $region49: #{tpu_custom_call.1} parent=47 // pred_check
          %p386 = pneg %p57
        $region50: #{tpu_custom_call.1} parent=47 // pred_check_branch
          %388 = sbr.rel (%p386) target = $region52
        $region51: #{tpu_custom_call.1} parent=47 // pred_region
          %389 = dma.done %s382, 128
        $region52: #{tpu_custom_call.1} parent=47 // pred_fallthru
          _
        %s390 = sand.u32 %s36, 1
        %s391 = scalar_lea.sflag [#allocation7], %s390
        %s392 = sand.u32 %s70, 1
        %s393 = smul.addr %s392, 8
        %s394 = scalar_lea.vmem [#allocation6], %s393
        // Predicated region
        $region53: #{tpu_custom_call.1} parent=47 // pred_check
          %p395 = pneg %p83
        $region54: #{tpu_custom_call.1} parent=47 // pred_check_branch
          %397 = sbr.rel (%p395) target = $region56
        $region55: #{tpu_custom_call.1} parent=47 // pred_region
          %398 = dma.done %s391, 128
        $region56: #{tpu_custom_call.1} parent=47 // pred_fallthru
          _
        // Predicated region
        $region57: #{tpu_custom_call.1} parent=47 // pred_check
          %p399 = pneg %p104
        $region58: #{tpu_custom_call.1} parent=47 // pred_check_branch
          %401 = sbr.rel (%p399) target = $region60
        $region59: #{tpu_custom_call.1} parent=47 // pred_region
          %402 = dma.done [#allocation7], 64
        $region60: #{tpu_custom_call.1} parent=47 // pred_fallthru
          _
        // Predicated region
        $region61: #{tpu_custom_call.1} parent=47 // pred_check
          %p403 = pneg %p125
        $region62: #{tpu_custom_call.1} parent=47 // pred_check_branch
          %405 = sbr.rel (%p403) target = $region64
        $region63: #{tpu_custom_call.1} parent=47 // pred_region
          %406 = dma.done [#allocation10], 128
        $region64: #{tpu_custom_call.1} parent=47 // pred_fallthru
          _
        // Predicated region
        $region65: #{tpu_custom_call.1} parent=47 // pred_check
          %p407 = pneg %p146
        $region66: #{tpu_custom_call.1} parent=47 // pred_check_branch
          %409 = sbr.rel (%p407) target = $region68
        $region67: #{tpu_custom_call.1} parent=47 // pred_region
          %410 = dma.done [#allocation10], 128
        $region68: #{tpu_custom_call.1} parent=47 // pred_fallthru
          _
        // Predicated region
        $region69: #{tpu_custom_call.1} parent=47 // pred_check
          %p411 = pneg %p167
        $region70: #{tpu_custom_call.1} parent=47 // pred_check_branch
          %413 = sbr.rel (%p411) target = $region72
        $region71: #{tpu_custom_call.1} parent=47 // pred_region
          %414 = dma.done [#allocation5], 16
        $region72: #{tpu_custom_call.1} parent=47 // pred_fallthru
          _
        // Predicated region
        $region73: #{tpu_custom_call.1} parent=47 // pred_check
          %p415 = pneg %p188
        $region74: #{tpu_custom_call.1} parent=47 // pred_check_branch
          %417 = sbr.rel (%p415) target = $region76
        $region75: #{tpu_custom_call.1} parent=47 // pred_region
          %418 = dma.done [#allocation14], 16
        $region76: #{tpu_custom_call.1} parent=47 // pred_fallthru
          _
        %419 = sfence
        %s420 = sand.u32 %s44, 1
        %s421 = scalar_lea.sflag [#allocation3], %s420
        %s422 = sand.u32 %s44, 1
        %s423 = smul.addr %s422, 8
        %s424 = scalar_lea.vmem [#allocation2], %s423
        %p425 = pneg %p57
        %p426 = pneg %p54
        %s427 = sand.u32 %s36, 1
        %s428 = scalar_lea.sflag [#allocation7], %s427
        %s429 = sand.u32 %s70, 1
        %s430 = smul.addr %s429, 8
        %s431 = scalar_lea.vmem [#allocation6], %s430
        %p432 = pneg %p83
        %p433 = pneg %p80
        %p434 = pneg %p104
        %p435 = pneg %p101
        %p436 = pneg %p125
        %p437 = pneg %p122
        %p438 = pneg %p146
        %p439 = pneg %p143
        %p440 = pneg %p167
        %p441 = pneg %p164
        %p442 = pneg %p188
        %p443 = pneg %p185
        %p444 = pneg %p214
        %p445 = pneg %p211
        %s446 = sand.u32 %s201, 1
        %s447 = scalar_lea.sflag [#allocation4], %s446
        %s448 = sand.u32 %s201, 1
        %s449 = smul.addr %s448, 8
        %s450 = scalar_lea.vmem [#allocation15], %s449
        %p451 = pneg %p240
        %p452 = pneg %p237
        %s453 = sand.u32 %s36, 1
        %s454 = scalar_lea.sflag [#allocation17], %s453
        %s455 = sand.u32 %s227, 1
        %s456 = smul.addr %s455, 8
        %s457 = scalar_lea.vmem [#allocation16], %s456
        %p458 = pneg %p266
        %p459 = pneg %p263
        %s460 = sand.u32 %s36, 1
        %s461 = scalar_lea.sflag [#allocation17], %s460
        %s462 = sand.u32 %s253, 1
        %s463 = smul.addr %s462, 8
        %s464 = scalar_lea.vmem [#allocation18], %s463
        %v465 = vld [vmem:[%s385] sm:$0xff]
        %v466 = vld [vmem:[%s394] sm:$0xff]
        %v468 = vcombine.high %v465, %v465
        %v471 = vcombine.low %v466, %v466
        %vm473 = vcmask 1043456
        %v474 = vsel %vm473, %v465, %v471
        %v475 = vsel %vm473, %v468, %v466
        %476 = vrot.lane.b32.xlu0 %v465, 16
        %v477 = vpop.permute.xlu0 %476
        %478 = vrot.lane.b32.xlu0 %v468, 16
        %v479 = vpop.permute.xlu0 %478
        %vm480 = vcmask 130048
        %v481 = vsel %vm480, %v477, %v479
        %v485 = vsel %vm480, %v479, %v477
        %v486 = vsel %vm473, %v481, %v471
        %v487 = vsel %vm473, %v485, %v466
        %v488 = vld [vmem:[#allocation8] ss:$2 sm:$0x3]
        %s489 = scalar_lea.vmem [#allocation8], 1
        %v490 = vld [vmem:[%s489] ss:$2 sm:$0x3]
        %v491 = vld [vmem:[#allocation9] sm:$0xff]
        %v492 = vld [vmem:[#allocation11] sm:$0xff]
        %494 = vset.pattern.permute.xlu0 0
        %495 = vperm.xlu0 %494, %v491
        %v496 = vpop.permute.xlu0 %495
        %v498 = vmul.f32 %v496, 0.0
        %v499 = vmul.f32 %v474, %v496
        %v500 = vmul.f32 %v475, %v496
        %v501 = vadd.f32 %v498, 0.0
        %v502 = vadd.f32 %v499, 0.0
        %v503 = vadd.f32 %v500, 0.0
        %504 = vset.pattern.permute.xlu0 1
        %505 = vperm.xlu0 %504, %v491
        %v506 = vpop.permute.xlu0 %505
        %v508 = vmul.f32 %v506, 0.0
        %v509 = vmul.f32 %v474, %v506
        %v510 = vmul.f32 %v475, %v506
        %v511 = vadd.f32 %v508, 0.0
        %v512 = vadd.f32 %v509, 0.0
        %v513 = vadd.f32 %v510, 0.0
        %514 = vset.pattern.permute.xlu0 2
        %515 = vperm.xlu0 %514, %v491
        %v516 = vpop.permute.xlu0 %515
        %v518 = vmul.f32 %v516, 0.0
        %v519 = vmul.f32 %v474, %v516
        %v520 = vmul.f32 %v475, %v516
        %v521 = vadd.f32 %v518, 0.0
        %v522 = vadd.f32 %v519, 0.0
        %v523 = vadd.f32 %v520, 0.0
        %524 = vset.pattern.permute.xlu0 3
        %525 = vperm.xlu0 %524, %v491
        %v526 = vpop.permute.xlu0 %525
        %v528 = vmul.f32 %v526, 0.0
        %v529 = vmul.f32 %v474, %v526
        %v530 = vmul.f32 %v475, %v526
        %v531 = vadd.f32 %v528, 0.0
        %v532 = vadd.f32 %v529, 0.0
        %v533 = vadd.f32 %v530, 0.0
        %534 = vset.pattern.permute.xlu0 12
        %535 = vperm.xlu0 %534, %v491
        %v536 = vpop.permute.xlu0 %535
        %v538 = vmul.f32 %v536, 0.0
        %v539 = vmul.f32 %v474, %v536
        %v540 = vmul.f32 %v475, %v536
        %544 = vrot.lane.b32.xlu0 %v538, 112
        %v545 = vpop.permute.xlu0 %544
        %546 = vrot.lane.b32.xlu0 %v539, 112
        %v547 = vpop.permute.xlu0 %546
        %548 = vrot.lane.b32.xlu0 %v540, 112
        %v549 = vpop.permute.xlu0 %548
        %vm550 = vcmask 916480
        %v551 = vsel %vm550, %v545, %v547
        %v552 = vsel %vm550, %v547, %v549
        %v556 = vadd.f32 %v501, %v551
        %v557 = vadd.f32 %v502, %v552
        %v558 = vadd.f32 %v503, %v549
        %559 = vset.pattern.permute.xlu0 13
        %560 = vperm.xlu0 %559, %v491
        %v561 = vpop.permute.xlu0 %560
        %v563 = vmul.f32 %v561, 0.0
        %v564 = vmul.f32 %v474, %v561
        %v565 = vmul.f32 %v475, %v561
        %569 = vrot.lane.b32.xlu0 %v563, 112
        %v570 = vpop.permute.xlu0 %569
        %571 = vrot.lane.b32.xlu0 %v564, 112
        %v572 = vpop.permute.xlu0 %571
        %573 = vrot.lane.b32.xlu0 %v565, 112
        %v574 = vpop.permute.xlu0 %573
        %v575 = vsel %vm550, %v570, %v572
        %v576 = vsel %vm550, %v572, %v574
        %v580 = vadd.f32 %v511, %v575
        %v581 = vadd.f32 %v512, %v576
        %v582 = vadd.f32 %v513, %v574
        %583 = vset.pattern.permute.xlu0 14
        %584 = vperm.xlu0 %583, %v491
        %v585 = vpop.permute.xlu0 %584
        %v587 = vmul.f32 %v585, 0.0
        %v588 = vmul.f32 %v474, %v585
        %v589 = vmul.f32 %v475, %v585
        %593 = vrot.lane.b32.xlu0 %v587, 112
        %v594 = vpop.permute.xlu0 %593
        %595 = vrot.lane.b32.xlu0 %v588, 112
        %v596 = vpop.permute.xlu0 %595
        %597 = vrot.lane.b32.xlu0 %v589, 112
        %v598 = vpop.permute.xlu0 %597
        %v599 = vsel %vm550, %v594, %v596
        %v600 = vsel %vm550, %v596, %v598
        %v604 = vadd.f32 %v521, %v599
        %v605 = vadd.f32 %v522, %v600
        %v606 = vadd.f32 %v523, %v598
        %607 = vset.pattern.permute.xlu0 15
        %608 = vperm.xlu0 %607, %v491
        %v609 = vpop.permute.xlu0 %608
        %v611 = vmul.f32 %v609, 0.0
        %v612 = vmul.f32 %v474, %v609
        %v613 = vmul.f32 %v475, %v609
        %617 = vrot.lane.b32.xlu0 %v611, 112
        %v618 = vpop.permute.xlu0 %617
        %619 = vrot.lane.b32.xlu0 %v612, 112
        %v620 = vpop.permute.xlu0 %619
        %621 = vrot.lane.b32.xlu0 %v613, 112
        %v622 = vpop.permute.xlu0 %621
        %v623 = vsel %vm550, %v618, %v620
        %v624 = vsel %vm550, %v620, %v622
        %v628 = vadd.f32 %v531, %v623
        %v629 = vadd.f32 %v532, %v624
        %v630 = vadd.f32 %v533, %v622
        %631 = vset.pattern.permute.xlu0 24
        %632 = vperm.xlu0 %631, %v491
        %v633 = vpop.permute.xlu0 %632
        %v635 = vmul.f32 %v474, %v633
        %v636 = vmul.f32 %v475, %v633
        %v637 = vmul.f32 %v633, 0.0
        %641 = vrot.lane.b32.xlu0 %v635, 96
        %v642 = vpop.permute.xlu0 %641
        %643 = vrot.lane.b32.xlu0 %v636, 96
        %v644 = vpop.permute.xlu0 %643
        %645 = vrot.lane.b32.xlu0 %v637, 96
        %v646 = vpop.permute.xlu0 %645
        %vm647 = vcmask 785408
        %v648 = vsel %vm647, %v642, %v644
        %v649 = vsel %vm647, %v644, %v646
        %v653 = vadd.f32 %v556, %v642
        %v654 = vadd.f32 %v557, %v648
        %v655 = vadd.f32 %v558, %v649
        %656 = vset.pattern.permute.xlu0 25
        %657 = vperm.xlu0 %656, %v491
        %v658 = vpop.permute.xlu0 %657
        %v660 = vmul.f32 %v474, %v658
        %v661 = vmul.f32 %v475, %v658
        %v662 = vmul.f32 %v658, 0.0
        %666 = vrot.lane.b32.xlu0 %v660, 96
        %v667 = vpop.permute.xlu0 %666
        %668 = vrot.lane.b32.xlu0 %v661, 96
        %v669 = vpop.permute.xlu0 %668
        %670 = vrot.lane.b32.xlu0 %v662, 96
        %v671 = vpop.permute.xlu0 %670
        %v672 = vsel %vm647, %v667, %v669
        %v673 = vsel %vm647, %v669, %v671
        %v677 = vadd.f32 %v580, %v667
        %v678 = vadd.f32 %v581, %v672
        %v679 = vadd.f32 %v582, %v673
        %680 = vset.pattern.permute.xlu0 26
        %681 = vperm.xlu0 %680, %v491
        %v682 = vpop.permute.xlu0 %681
        %v684 = vmul.f32 %v474, %v682
        %v685 = vmul.f32 %v475, %v682
        %v686 = vmul.f32 %v682, 0.0
        %690 = vrot.lane.b32.xlu0 %v684, 96
        %v691 = vpop.permute.xlu0 %690
        %692 = vrot.lane.b32.xlu0 %v685, 96
        %v693 = vpop.permute.xlu0 %692
        %694 = vrot.lane.b32.xlu0 %v686, 96
        %v695 = vpop.permute.xlu0 %694
        %v696 = vsel %vm647, %v691, %v693
        %v697 = vsel %vm647, %v693, %v695
        %v701 = vadd.f32 %v604, %v691
        %v702 = vadd.f32 %v605, %v696
        %v703 = vadd.f32 %v606, %v697
        %704 = vset.pattern.permute.xlu0 27
        %705 = vperm.xlu0 %704, %v491
        %v706 = vpop.permute.xlu0 %705
        %v708 = vmul.f32 %v474, %v706
        %v709 = vmul.f32 %v475, %v706
        %v710 = vmul.f32 %v706, 0.0
        %714 = vrot.lane.b32.xlu0 %v708, 96
        %v715 = vpop.permute.xlu0 %714
        %716 = vrot.lane.b32.xlu0 %v709, 96
        %v717 = vpop.permute.xlu0 %716
        %718 = vrot.lane.b32.xlu0 %v710, 96
        %v719 = vpop.permute.xlu0 %718
        %v720 = vsel %vm647, %v715, %v717
        %v721 = vsel %vm647, %v717, %v719
        %v725 = vadd.f32 %v628, %v715
        %v726 = vadd.f32 %v629, %v720
        %v727 = vadd.f32 %v630, %v721
        %vm728 = vcmask 1048440
        %v729 = vsel %vm728, %v653, 0.0
        %v730 = vrot.slane %v729, 4
        %v731 = vadd.f32 %v729, %v730
        %v732 = vrot.slane %v731, 2
        %v733 = vadd.f32 %v731, %v732
        %v734 = vrot.slane %v733, 1
        %v735 = vadd.f32 %v733, %v734
        %v736 = vrot.slane %v654, 4
        %v737 = vadd.f32 %v654, %v736
        %v738 = vrot.slane %v737, 2
        %v739 = vadd.f32 %v737, %v738
        %v740 = vrot.slane %v739, 1
        %v741 = vadd.f32 %v739, %v740
        %vm742 = vcmask 908288
        %v743 = vsel %vm742, %v655, 0.0
        %v744 = vrot.slane %v743, 4
        %v745 = vadd.f32 %v743, %v744
        %v746 = vrot.slane %v745, 2
        %v747 = vadd.f32 %v745, %v746
        %v748 = vrot.slane %v747, 1
        %v749 = vadd.f32 %v747, %v748
        %v751 = vlaneseq
        %v752 = vshrl.u32 %v751, 7
        %v753 = vsub.s32 0, %v752
        %v754 = vrot.slane %v488, %v753
        %v755 = vlaneseq
        %v756 = vshrl.u32 %v755, 7
        %v757 = vsub.s32 1, %v756
        %v758 = vrot.slane %v488, %v757
        %759 = vrot.lane.b32.xlu0 %v754, 111
        %v760 = vpop.permute.xlu0 %759
        %761 = vrot.lane.b32.xlu0 %v758, 111
        %v762 = vpop.permute.xlu0 %761
        %v763 = vsel %vm742, %v760, %v762
        %v767 = vmul.f32 %v735, %v760
        %v768 = vmul.f32 %v741, %v763
        %v769 = vmul.f32 %v749, %v762
        %v770 = vadd.f32 %v767, 0.0
        %v771 = vadd.f32 %v768, 0.0
        %v772 = vadd.f32 %v769, 0.0
        %v773 = vsel %vm728, %v677, 0.0
        %v774 = vrot.slane %v773, 4
        %v775 = vadd.f32 %v773, %v774
        %v776 = vrot.slane %v775, 2
        %v777 = vadd.f32 %v775, %v776
        %v778 = vrot.slane %v777, 1
        %v779 = vadd.f32 %v777, %v778
        %v780 = vrot.slane %v678, 4
        %v781 = vadd.f32 %v678, %v780
        %v782 = vrot.slane %v781, 2
        %v783 = vadd.f32 %v781, %v782
        %v784 = vrot.slane %v783, 1
        %v785 = vadd.f32 %v783, %v784
        %v786 = vsel %vm742, %v679, 0.0
        %v787 = vrot.slane %v786, 4
        %v788 = vadd.f32 %v786, %v787
        %v789 = vrot.slane %v788, 2
        %v790 = vadd.f32 %v788, %v789
        %v791 = vrot.slane %v790, 1
        %v792 = vadd.f32 %v790, %v791
        %v793 = vmul.f32 %v779, %v760
        %v794 = vmul.f32 %v785, %v763
        %v795 = vmul.f32 %v792, %v762
        %v796 = vadd.f32 %v793, 0.0
        %v797 = vadd.f32 %v794, 0.0
        %v798 = vadd.f32 %v795, 0.0
        %v799 = vsel %vm728, %v701, 0.0
        %v800 = vrot.slane %v799, 4
        %v801 = vadd.f32 %v799, %v800
        %v802 = vrot.slane %v801, 2
        %v803 = vadd.f32 %v801, %v802
        %v804 = vrot.slane %v803, 1
        %v805 = vadd.f32 %v803, %v804
        %v806 = vrot.slane %v702, 4
        %v807 = vadd.f32 %v702, %v806
        %v808 = vrot.slane %v807, 2
        %v809 = vadd.f32 %v807, %v808
        %v810 = vrot.slane %v809, 1
        %v811 = vadd.f32 %v809, %v810
        %v812 = vsel %vm742, %v703, 0.0
        %v813 = vrot.slane %v812, 4
        %v814 = vadd.f32 %v812, %v813
        %v815 = vrot.slane %v814, 2
        %v816 = vadd.f32 %v814, %v815
        %v817 = vrot.slane %v816, 1
        %v818 = vadd.f32 %v816, %v817
        %v819 = vmul.f32 %v805, %v760
        %v820 = vmul.f32 %v811, %v763
        %v821 = vmul.f32 %v818, %v762
        %v822 = vadd.f32 %v819, 0.0
        %v823 = vadd.f32 %v820, 0.0
        %v824 = vadd.f32 %v821, 0.0
        %v825 = vsel %vm728, %v725, 0.0
        %v826 = vrot.slane %v825, 4
        %v827 = vadd.f32 %v825, %v826
        %v828 = vrot.slane %v827, 2
        %v829 = vadd.f32 %v827, %v828
        %v830 = vrot.slane %v829, 1
        %v831 = vadd.f32 %v829, %v830
        %v832 = vrot.slane %v726, 4
        %v833 = vadd.f32 %v726, %v832
        %v834 = vrot.slane %v833, 2
        %v835 = vadd.f32 %v833, %v834
        %v836 = vrot.slane %v835, 1
        %v837 = vadd.f32 %v835, %v836
        %v838 = vsel %vm742, %v727, 0.0
        %v839 = vrot.slane %v838, 4
        %v840 = vadd.f32 %v838, %v839
        %v841 = vrot.slane %v840, 2
        %v842 = vadd.f32 %v840, %v841
        %v843 = vrot.slane %v842, 1
        %v844 = vadd.f32 %v842, %v843
        %v845 = vmul.f32 %v831, %v760
        %v846 = vmul.f32 %v837, %v763
        %v847 = vmul.f32 %v844, %v762
        %v848 = vadd.f32 %v845, 0.0
        %v849 = vadd.f32 %v846, 0.0
        %v850 = vadd.f32 %v847, 0.0
        %851 = vset.pattern.permute.xlu0 4
        %852 = vperm.xlu0 %851, %v491
        %v853 = vpop.permute.xlu0 %852
        %v855 = vmul.f32 %v853, 0.0
        %v856 = vmul.f32 %v474, %v853
        %v857 = vmul.f32 %v475, %v853
        %v858 = vadd.f32 %v855, 0.0
        %v859 = vadd.f32 %v856, 0.0
        %v860 = vadd.f32 %v857, 0.0
        %861 = vset.pattern.permute.xlu0 5
        %862 = vperm.xlu0 %861, %v491
        %v863 = vpop.permute.xlu0 %862
        %v865 = vmul.f32 %v863, 0.0
        %v866 = vmul.f32 %v474, %v863
        %v867 = vmul.f32 %v475, %v863
        %v868 = vadd.f32 %v865, 0.0
        %v869 = vadd.f32 %v866, 0.0
        %v870 = vadd.f32 %v867, 0.0
        %871 = vset.pattern.permute.xlu0 6
        %872 = vperm.xlu0 %871, %v491
        %v873 = vpop.permute.xlu0 %872
        %v875 = vmul.f32 %v873, 0.0
        %v876 = vmul.f32 %v474, %v873
        %v877 = vmul.f32 %v475, %v873
        %v878 = vadd.f32 %v875, 0.0
        %v879 = vadd.f32 %v876, 0.0
        %v880 = vadd.f32 %v877, 0.0
        %881 = vset.pattern.permute.xlu0 7
        %882 = vperm.xlu0 %881, %v491
        %v883 = vpop.permute.xlu0 %882
        %v885 = vmul.f32 %v883, 0.0
        %v886 = vmul.f32 %v474, %v883
        %v887 = vmul.f32 %v475, %v883
        %v888 = vadd.f32 %v885, 0.0
        %v889 = vadd.f32 %v886, 0.0
        %v890 = vadd.f32 %v887, 0.0
        %891 = vset.pattern.permute.xlu0 16
        %892 = vperm.xlu0 %891, %v491
        %v893 = vpop.permute.xlu0 %892
        %v895 = vmul.f32 %v474, %v893
        %v896 = vmul.f32 %v475, %v893
        %899 = vrot.lane.b32.xlu0 %v895, 112
        %v900 = vpop.permute.xlu0 %899
        %901 = vrot.lane.b32.xlu0 %v896, 112
        %v902 = vpop.permute.xlu0 %901
        %v903 = vsel %vm550, %v900, %v902
        %v907 = vadd.f32 %v858, %v900
        %v908 = vadd.f32 %v859, %v903
        %v909 = vadd.f32 %v860, %v902
        %910 = vset.pattern.permute.xlu0 17
        %911 = vperm.xlu0 %910, %v491
        %v912 = vpop.permute.xlu0 %911
        %v914 = vmul.f32 %v474, %v912
        %v915 = vmul.f32 %v475, %v912
        %918 = vrot.lane.b32.xlu0 %v914, 112
        %v919 = vpop.permute.xlu0 %918
        %920 = vrot.lane.b32.xlu0 %v915, 112
        %v921 = vpop.permute.xlu0 %920
        %v922 = vsel %vm550, %v919, %v921
        %v926 = vadd.f32 %v868, %v919
        %v927 = vadd.f32 %v869, %v922
        %v928 = vadd.f32 %v870, %v921
        %929 = vset.pattern.permute.xlu0 18
        %930 = vperm.xlu0 %929, %v491
        %v931 = vpop.permute.xlu0 %930
        %v933 = vmul.f32 %v474, %v931
        %v934 = vmul.f32 %v475, %v931
        %937 = vrot.lane.b32.xlu0 %v933, 112
        %v938 = vpop.permute.xlu0 %937
        %939 = vrot.lane.b32.xlu0 %v934, 112
        %v940 = vpop.permute.xlu0 %939
        %v941 = vsel %vm550, %v938, %v940
        %v945 = vadd.f32 %v878, %v938
        %v946 = vadd.f32 %v879, %v941
        %v947 = vadd.f32 %v880, %v940
        %948 = vset.pattern.permute.xlu0 19
        %949 = vperm.xlu0 %948, %v491
        %v950 = vpop.permute.xlu0 %949
        %v952 = vmul.f32 %v474, %v950
        %v953 = vmul.f32 %v475, %v950
        %956 = vrot.lane.b32.xlu0 %v952, 112
        %v957 = vpop.permute.xlu0 %956
        %958 = vrot.lane.b32.xlu0 %v953, 112
        %v959 = vpop.permute.xlu0 %958
        %v960 = vsel %vm550, %v957, %v959
        %v964 = vadd.f32 %v888, %v957
        %v965 = vadd.f32 %v889, %v960
        %v966 = vadd.f32 %v890, %v959
        %967 = vset.pattern.permute.xlu0 28
        %968 = vperm.xlu0 %967, %v491
        %v969 = vpop.permute.xlu0 %968
        %v971 = vmul.f32 %v474, %v969
        %v972 = vmul.f32 %v475, %v969
        %v973 = vmul.f32 %v969, 0.0
        %977 = vrot.lane.b32.xlu0 %v971, 96
        %v978 = vpop.permute.xlu0 %977
        %979 = vrot.lane.b32.xlu0 %v972, 96
        %v980 = vpop.permute.xlu0 %979
        %981 = vrot.lane.b32.xlu0 %v973, 96
        %v982 = vpop.permute.xlu0 %981
        %v983 = vsel %vm647, %v978, %v980
        %v984 = vsel %vm647, %v980, %v982
        %v988 = vadd.f32 %v907, %v978
        %v989 = vadd.f32 %v908, %v983
        %v990 = vadd.f32 %v909, %v984
        %991 = vset.pattern.permute.xlu0 29
        %992 = vperm.xlu0 %991, %v491
        %v993 = vpop.permute.xlu0 %992
        %v995 = vmul.f32 %v474, %v993
        %v996 = vmul.f32 %v475, %v993
        %v997 = vmul.f32 %v993, 0.0
        %1001 = vrot.lane.b32.xlu0 %v995, 96
        %v1002 = vpop.permute.xlu0 %1001
        %1003 = vrot.lane.b32.xlu0 %v996, 96
        %v1004 = vpop.permute.xlu0 %1003
        %1005 = vrot.lane.b32.xlu0 %v997, 96
        %v1006 = vpop.permute.xlu0 %1005
        %v1007 = vsel %vm647, %v1002, %v1004
        %v1008 = vsel %vm647, %v1004, %v1006
        %v1012 = vadd.f32 %v926, %v1002
        %v1013 = vadd.f32 %v927, %v1007
        %v1014 = vadd.f32 %v928, %v1008
        %1015 = vset.pattern.permute.xlu0 30
        %1016 = vperm.xlu0 %1015, %v491
        %v1017 = vpop.permute.xlu0 %1016
        %v1019 = vmul.f32 %v474, %v1017
        %v1020 = vmul.f32 %v475, %v1017
        %v1021 = vmul.f32 %v1017, 0.0
        %1025 = vrot.lane.b32.xlu0 %v1019, 96
        %v1026 = vpop.permute.xlu0 %1025
        %1027 = vrot.lane.b32.xlu0 %v1020, 96
        %v1028 = vpop.permute.xlu0 %1027
        %1029 = vrot.lane.b32.xlu0 %v1021, 96
        %v1030 = vpop.permute.xlu0 %1029
        %v1031 = vsel %vm647, %v1026, %v1028
        %v1032 = vsel %vm647, %v1028, %v1030
        %v1036 = vadd.f32 %v945, %v1026
        %v1037 = vadd.f32 %v946, %v1031
        %v1038 = vadd.f32 %v947, %v1032
        %1039 = vset.pattern.permute.xlu0 31
        %1040 = vperm.xlu0 %1039, %v491
        %v1041 = vpop.permute.xlu0 %1040
        %v1043 = vmul.f32 %v474, %v1041
        %v1044 = vmul.f32 %v475, %v1041
        %v1045 = vmul.f32 %v1041, 0.0
        %1049 = vrot.lane.b32.xlu0 %v1043, 96
        %v1050 = vpop.permute.xlu0 %1049
        %1051 = vrot.lane.b32.xlu0 %v1044, 96
        %v1052 = vpop.permute.xlu0 %1051
        %1053 = vrot.lane.b32.xlu0 %v1045, 96
        %v1054 = vpop.permute.xlu0 %1053
        %v1055 = vsel %vm647, %v1050, %v1052
        %v1056 = vsel %vm647, %v1052, %v1054
        %v1060 = vadd.f32 %v964, %v1050
        %v1061 = vadd.f32 %v965, %v1055
        %v1062 = vadd.f32 %v966, %v1056
        %vm1063 = vcmask 1048448
        %v1064 = vsel %vm1063, %v988, 0.0
        %v1065 = vrot.slane %v1064, 4
        %v1066 = vadd.f32 %v1064, %v1065
        %v1067 = vrot.slane %v1066, 2
        %v1068 = vadd.f32 %v1066, %v1067
        %v1069 = vrot.slane %v1068, 1
        %v1070 = vadd.f32 %v1068, %v1069
        %v1071 = vrot.slane %v989, 4
        %v1072 = vadd.f32 %v989, %v1071
        %v1073 = vrot.slane %v1072, 2
        %v1074 = vadd.f32 %v1072, %v1073
        %v1075 = vrot.slane %v1074, 1
        %v1076 = vadd.f32 %v1074, %v1075
        %v1077 = vsel %vm550, %v990, 0.0
        %v1078 = vrot.slane %v1077, 4
        %v1079 = vadd.f32 %v1077, %v1078
        %v1080 = vrot.slane %v1079, 2
        %v1081 = vadd.f32 %v1079, %v1080
        %v1082 = vrot.slane %v1081, 1
        %v1083 = vadd.f32 %v1081, %v1082
        %1087 = vrot.lane.b32.xlu0 %v1070, 127
        %v1088 = vpop.permute.xlu0 %1087
        %1089 = vrot.lane.b32.xlu0 %v1076, 127
        %v1090 = vpop.permute.xlu0 %1089
        %1091 = vrot.lane.b32.xlu0 %v1083, 127
        %v1092 = vpop.permute.xlu0 %1091
        %vm1093 = vcmask 1039360
        %v1094 = vsel %vm1093, %v1088, %v1090
        %v1095 = vsel %vm1093, %v1090, %v1092
        %v1099 = vadd.f32 %v770, %v1094
        %v1100 = vadd.f32 %v771, %v1095
        %v1101 = vadd.f32 %v772, %v1092
        %v1102 = vsel %vm1063, %v1012, 0.0
        %v1103 = vrot.slane %v1102, 4
        %v1104 = vadd.f32 %v1102, %v1103
        %v1105 = vrot.slane %v1104, 2
        %v1106 = vadd.f32 %v1104, %v1105
        %v1107 = vrot.slane %v1106, 1
        %v1108 = vadd.f32 %v1106, %v1107
        %v1109 = vrot.slane %v1013, 4
        %v1110 = vadd.f32 %v1013, %v1109
        %v1111 = vrot.slane %v1110, 2
        %v1112 = vadd.f32 %v1110, %v1111
        %v1113 = vrot.slane %v1112, 1
        %v1114 = vadd.f32 %v1112, %v1113
        %v1115 = vsel %vm550, %v1014, 0.0
        %v1116 = vrot.slane %v1115, 4
        %v1117 = vadd.f32 %v1115, %v1116
        %v1118 = vrot.slane %v1117, 2
        %v1119 = vadd.f32 %v1117, %v1118
        %v1120 = vrot.slane %v1119, 1
        %v1121 = vadd.f32 %v1119, %v1120
        %1125 = vrot.lane.b32.xlu0 %v1108, 127
        %v1126 = vpop.permute.xlu0 %1125
        %1127 = vrot.lane.b32.xlu0 %v1114, 127
        %v1128 = vpop.permute.xlu0 %1127
        %1129 = vrot.lane.b32.xlu0 %v1121, 127
        %v1130 = vpop.permute.xlu0 %1129
        %v1131 = vsel %vm1093, %v1126, %v1128
        %v1132 = vsel %vm1093, %v1128, %v1130
        %v1136 = vadd.f32 %v796, %v1131
        %v1137 = vadd.f32 %v797, %v1132
        %v1138 = vadd.f32 %v798, %v1130
        %v1139 = vsel %vm1063, %v1036, 0.0
        %v1140 = vrot.slane %v1139, 4
        %v1141 = vadd.f32 %v1139, %v1140
        %v1142 = vrot.slane %v1141, 2
        %v1143 = vadd.f32 %v1141, %v1142
        %v1144 = vrot.slane %v1143, 1
        %v1145 = vadd.f32 %v1143, %v1144
        %v1146 = vrot.slane %v1037, 4
        %v1147 = vadd.f32 %v1037, %v1146
        %v1148 = vrot.slane %v1147, 2
        %v1149 = vadd.f32 %v1147, %v1148
        %v1150 = vrot.slane %v1149, 1
        %v1151 = vadd.f32 %v1149, %v1150
        %v1152 = vsel %vm550, %v1038, 0.0
        %v1153 = vrot.slane %v1152, 4
        %v1154 = vadd.f32 %v1152, %v1153
        %v1155 = vrot.slane %v1154, 2
        %v1156 = vadd.f32 %v1154, %v1155
        %v1157 = vrot.slane %v1156, 1
        %v1158 = vadd.f32 %v1156, %v1157
        %1162 = vrot.lane.b32.xlu0 %v1145, 127
        %v1163 = vpop.permute.xlu0 %1162
        %1164 = vrot.lane.b32.xlu0 %v1151, 127
        %v1165 = vpop.permute.xlu0 %1164
        %1166 = vrot.lane.b32.xlu0 %v1158, 127
        %v1167 = vpop.permute.xlu0 %1166
        %v1168 = vsel %vm1093, %v1163, %v1165
        %v1169 = vsel %vm1093, %v1165, %v1167
        %v1173 = vadd.f32 %v822, %v1168
        %v1174 = vadd.f32 %v823, %v1169
        %v1175 = vadd.f32 %v824, %v1167
        %v1176 = vsel %vm1063, %v1060, 0.0
        %v1177 = vrot.slane %v1176, 4
        %v1178 = vadd.f32 %v1176, %v1177
        %v1179 = vrot.slane %v1178, 2
        %v1180 = vadd.f32 %v1178, %v1179
        %v1181 = vrot.slane %v1180, 1
        %v1182 = vadd.f32 %v1180, %v1181
        %v1183 = vrot.slane %v1061, 4
        %v1184 = vadd.f32 %v1061, %v1183
        %v1185 = vrot.slane %v1184, 2
        %v1186 = vadd.f32 %v1184, %v1185
        %v1187 = vrot.slane %v1186, 1
        %v1188 = vadd.f32 %v1186, %v1187
        %v1189 = vsel %vm550, %v1062, 0.0
        %v1190 = vrot.slane %v1189, 4
        %v1191 = vadd.f32 %v1189, %v1190
        %v1192 = vrot.slane %v1191, 2
        %v1193 = vadd.f32 %v1191, %v1192
        %v1194 = vrot.slane %v1193, 1
        %v1195 = vadd.f32 %v1193, %v1194
        %1199 = vrot.lane.b32.xlu0 %v1182, 127
        %v1200 = vpop.permute.xlu0 %1199
        %1201 = vrot.lane.b32.xlu0 %v1188, 127
        %v1202 = vpop.permute.xlu0 %1201
        %1203 = vrot.lane.b32.xlu0 %v1195, 127
        %v1204 = vpop.permute.xlu0 %1203
        %v1205 = vsel %vm1093, %v1200, %v1202
        %v1206 = vsel %vm1093, %v1202, %v1204
        %v1210 = vadd.f32 %v848, %v1205
        %v1211 = vadd.f32 %v849, %v1206
        %v1212 = vadd.f32 %v850, %v1204
        %1213 = vset.pattern.permute.xlu0 8
        %1214 = vperm.xlu0 %1213, %v491
        %v1215 = vpop.permute.xlu0 %1214
        %v1217 = vmul.f32 %v1215, 0.0
        %v1218 = vmul.f32 %v474, %v1215
        %v1219 = vmul.f32 %v475, %v1215
        %v1220 = vadd.f32 %v1217, 0.0
        %v1221 = vadd.f32 %v1218, 0.0
        %v1222 = vadd.f32 %v1219, 0.0
        %1223 = vset.pattern.permute.xlu0 9
        %1224 = vperm.xlu0 %1223, %v491
        %v1225 = vpop.permute.xlu0 %1224
        %v1227 = vmul.f32 %v1225, 0.0
        %v1228 = vmul.f32 %v474, %v1225
        %v1229 = vmul.f32 %v475, %v1225
        %v1230 = vadd.f32 %v1227, 0.0
        %v1231 = vadd.f32 %v1228, 0.0
        %v1232 = vadd.f32 %v1229, 0.0
        %1233 = vset.pattern.permute.xlu0 10
        %1234 = vperm.xlu0 %1233, %v491
        %v1235 = vpop.permute.xlu0 %1234
        %v1237 = vmul.f32 %v1235, 0.0
        %v1238 = vmul.f32 %v474, %v1235
        %v1239 = vmul.f32 %v475, %v1235
        %v1240 = vadd.f32 %v1237, 0.0
        %v1241 = vadd.f32 %v1238, 0.0
        %v1242 = vadd.f32 %v1239, 0.0
        %1243 = vset.pattern.permute.xlu0 11
        %1244 = vperm.xlu0 %1243, %v491
        %v1245 = vpop.permute.xlu0 %1244
        %v1247 = vmul.f32 %v1245, 0.0
        %v1248 = vmul.f32 %v474, %v1245
        %v1249 = vmul.f32 %v475, %v1245
        %v1250 = vadd.f32 %v1247, 0.0
        %v1251 = vadd.f32 %v1248, 0.0
        %v1252 = vadd.f32 %v1249, 0.0
        %1253 = vset.pattern.permute.xlu0 20
        %1254 = vperm.xlu0 %1253, %v491
        %v1255 = vpop.permute.xlu0 %1254
        %v1257 = vmul.f32 %v474, %v1255
        %v1258 = vmul.f32 %v475, %v1255
        %v1259 = vmul.f32 %v1255, 0.0
        %1263 = vrot.lane.b32.xlu0 %v1257, 112
        %v1264 = vpop.permute.xlu0 %1263
        %1265 = vrot.lane.b32.xlu0 %v1258, 112
        %v1266 = vpop.permute.xlu0 %1265
        %1267 = vrot.lane.b32.xlu0 %v1259, 112
        %v1268 = vpop.permute.xlu0 %1267
        %v1269 = vsel %vm550, %v1264, %v1266
        %v1270 = vsel %vm550, %v1266, %v1268
        %v1274 = vadd.f32 %v1220, %v1264
        %v1275 = vadd.f32 %v1221, %v1269
        %v1276 = vadd.f32 %v1222, %v1270
        %1277 = vset.pattern.permute.xlu0 21
        %1278 = vperm.xlu0 %1277, %v491
        %v1279 = vpop.permute.xlu0 %1278
        %v1281 = vmul.f32 %v474, %v1279
        %v1282 = vmul.f32 %v475, %v1279
        %v1283 = vmul.f32 %v1279, 0.0
        %1287 = vrot.lane.b32.xlu0 %v1281, 112
        %v1288 = vpop.permute.xlu0 %1287
        %1289 = vrot.lane.b32.xlu0 %v1282, 112
        %v1290 = vpop.permute.xlu0 %1289
        %1291 = vrot.lane.b32.xlu0 %v1283, 112
        %v1292 = vpop.permute.xlu0 %1291
        %v1293 = vsel %vm550, %v1288, %v1290
        %v1294 = vsel %vm550, %v1290, %v1292
        %v1298 = vadd.f32 %v1230, %v1288
        %v1299 = vadd.f32 %v1231, %v1293
        %v1300 = vadd.f32 %v1232, %v1294
        %1301 = vset.pattern.permute.xlu0 22
        %1302 = vperm.xlu0 %1301, %v491
        %v1303 = vpop.permute.xlu0 %1302
        %v1305 = vmul.f32 %v474, %v1303
        %v1306 = vmul.f32 %v475, %v1303
        %v1307 = vmul.f32 %v1303, 0.0
        %1311 = vrot.lane.b32.xlu0 %v1305, 112
        %v1312 = vpop.permute.xlu0 %1311
        %1313 = vrot.lane.b32.xlu0 %v1306, 112
        %v1314 = vpop.permute.xlu0 %1313
        %1315 = vrot.lane.b32.xlu0 %v1307, 112
        %v1316 = vpop.permute.xlu0 %1315
        %v1317 = vsel %vm550, %v1312, %v1314
        %v1318 = vsel %vm550, %v1314, %v1316
        %v1322 = vadd.f32 %v1240, %v1312
        %v1323 = vadd.f32 %v1241, %v1317
        %v1324 = vadd.f32 %v1242, %v1318
        %1325 = vset.pattern.permute.xlu0 23
        %1326 = vperm.xlu0 %1325, %v491
        %v1327 = vpop.permute.xlu0 %1326
        %v1329 = vmul.f32 %v474, %v1327
        %v1330 = vmul.f32 %v475, %v1327
        %v1331 = vmul.f32 %v1327, 0.0
        %1335 = vrot.lane.b32.xlu0 %v1329, 112
        %v1336 = vpop.permute.xlu0 %1335
        %1337 = vrot.lane.b32.xlu0 %v1330, 112
        %v1338 = vpop.permute.xlu0 %1337
        %1339 = vrot.lane.b32.xlu0 %v1331, 112
        %v1340 = vpop.permute.xlu0 %1339
        %v1341 = vsel %vm550, %v1336, %v1338
        %v1342 = vsel %vm550, %v1338, %v1340
        %v1346 = vadd.f32 %v1250, %v1336
        %v1347 = vadd.f32 %v1251, %v1341
        %v1348 = vadd.f32 %v1252, %v1342
        %1349 = vset.pattern.permute.xlu0 32
        %1350 = vperm.xlu0 %1349, %v491
        %v1351 = vpop.permute.xlu0 %1350
        %v1353 = vmul.f32 %v474, %v1351
        %v1354 = vmul.f32 %v475, %v1351
        %v1355 = vmul.f32 %v1351, 0.0
        %1359 = vrot.lane.b32.xlu0 %v1353, 96
        %v1360 = vpop.permute.xlu0 %1359
        %1361 = vrot.lane.b32.xlu0 %v1354, 96
        %v1362 = vpop.permute.xlu0 %1361
        %1363 = vrot.lane.b32.xlu0 %v1355, 96
        %v1364 = vpop.permute.xlu0 %1363
        %v1365 = vsel %vm647, %v1360, %v1362
        %v1366 = vsel %vm647, %v1362, %v1364
        %v1370 = vadd.f32 %v1274, %v1360
        %v1371 = vadd.f32 %v1275, %v1365
        %v1372 = vadd.f32 %v1276, %v1366
        %1373 = vset.pattern.permute.xlu0 33
        %1374 = vperm.xlu0 %1373, %v491
        %v1375 = vpop.permute.xlu0 %1374
        %v1377 = vmul.f32 %v474, %v1375
        %v1378 = vmul.f32 %v475, %v1375
        %v1379 = vmul.f32 %v1375, 0.0
        %1383 = vrot.lane.b32.xlu0 %v1377, 96
        %v1384 = vpop.permute.xlu0 %1383
        %1385 = vrot.lane.b32.xlu0 %v1378, 96
        %v1386 = vpop.permute.xlu0 %1385
        %1387 = vrot.lane.b32.xlu0 %v1379, 96
        %v1388 = vpop.permute.xlu0 %1387
        %v1389 = vsel %vm647, %v1384, %v1386
        %v1390 = vsel %vm647, %v1386, %v1388
        %v1394 = vadd.f32 %v1298, %v1384
        %v1395 = vadd.f32 %v1299, %v1389
        %v1396 = vadd.f32 %v1300, %v1390
        %1397 = vset.pattern.permute.xlu0 34
        %1398 = vperm.xlu0 %1397, %v491
        %v1399 = vpop.permute.xlu0 %1398
        %v1401 = vmul.f32 %v474, %v1399
        %v1402 = vmul.f32 %v475, %v1399
        %v1403 = vmul.f32 %v1399, 0.0
        %1407 = vrot.lane.b32.xlu0 %v1401, 96
        %v1408 = vpop.permute.xlu0 %1407
        %1409 = vrot.lane.b32.xlu0 %v1402, 96
        %v1410 = vpop.permute.xlu0 %1409
        %1411 = vrot.lane.b32.xlu0 %v1403, 96
        %v1412 = vpop.permute.xlu0 %1411
        %v1413 = vsel %vm647, %v1408, %v1410
        %v1414 = vsel %vm647, %v1410, %v1412
        %v1418 = vadd.f32 %v1322, %v1408
        %v1419 = vadd.f32 %v1323, %v1413
        %v1420 = vadd.f32 %v1324, %v1414
        %1421 = vset.pattern.permute.xlu0 35
        %1422 = vperm.xlu0 %1421, %v491
        %v1423 = vpop.permute.xlu0 %1422
        %v1425 = vmul.f32 %v474, %v1423
        %v1426 = vmul.f32 %v475, %v1423
        %v1427 = vmul.f32 %v1423, 0.0
        %1431 = vrot.lane.b32.xlu0 %v1425, 96
        %v1432 = vpop.permute.xlu0 %1431
        %1433 = vrot.lane.b32.xlu0 %v1426, 96
        %v1434 = vpop.permute.xlu0 %1433
        %1435 = vrot.lane.b32.xlu0 %v1427, 96
        %v1436 = vpop.permute.xlu0 %1435
        %v1437 = vsel %vm647, %v1432, %v1434
        %v1438 = vsel %vm647, %v1434, %v1436
        %v1442 = vadd.f32 %v1346, %v1432
        %v1443 = vadd.f32 %v1347, %v1437
        %v1444 = vadd.f32 %v1348, %v1438
        %vm1445 = vcmask 1048456
        %v1446 = vsel %vm1445, %v1370, 0.0
        %v1447 = vrot.slane %v1446, 4
        %v1448 = vadd.f32 %v1446, %v1447
        %v1449 = vrot.slane %v1448, 2
        %v1450 = vadd.f32 %v1448, %v1449
        %v1451 = vrot.slane %v1450, 1
        %v1452 = vadd.f32 %v1450, %v1451
        %v1453 = vrot.slane %v1371, 4
        %v1454 = vadd.f32 %v1371, %v1453
        %v1455 = vrot.slane %v1454, 2
        %v1456 = vadd.f32 %v1454, %v1455
        %v1457 = vrot.slane %v1456, 1
        %v1458 = vadd.f32 %v1456, %v1457
        %vm1459 = vcmask 924672
        %v1460 = vsel %vm1459, %v1372, 0.0
        %v1461 = vrot.slane %v1460, 4
        %v1462 = vadd.f32 %v1460, %v1461
        %v1463 = vrot.slane %v1462, 2
        %v1464 = vadd.f32 %v1462, %v1463
        %v1465 = vrot.slane %v1464, 1
        %v1466 = vadd.f32 %v1464, %v1465
        %v1468 = vlaneseq
        %v1469 = vshrl.u32 %v1468, 7
        %v1470 = vsub.s32 0, %v1469
        %v1471 = vrot.slane %v490, %v1470
        %v1472 = vlaneseq
        %v1473 = vshrl.u32 %v1472, 7
        %v1474 = vsub.s32 1, %v1473
        %v1475 = vrot.slane %v490, %v1474
        %1476 = vrot.lane.b32.xlu0 %v1471, 113
        %v1477 = vpop.permute.xlu0 %1476
        %1478 = vrot.lane.b32.xlu0 %v1475, 113
        %v1479 = vpop.permute.xlu0 %1478
        %v1480 = vsel %vm1459, %v1477, %v1479
        %v1484 = vmul.f32 %v1452, %v1477
        %v1485 = vmul.f32 %v1458, %v1480
        %v1486 = vmul.f32 %v1466, %v1479
        %1490 = vrot.lane.b32.xlu0 %v1484, 126
        %v1491 = vpop.permute.xlu0 %1490
        %1492 = vrot.lane.b32.xlu0 %v1485, 126
        %v1493 = vpop.permute.xlu0 %1492
        %1494 = vrot.lane.b32.xlu0 %v1486, 126
        %v1495 = vpop.permute.xlu0 %1494
        %vm1496 = vcmask 1031168
        %v1497 = vsel %vm1496, %v1491, %v1493
        %v1498 = vsel %vm1496, %v1493, %v1495
        %v1502 = vadd.f32 %v1099, %v1497
        %v1503 = vadd.f32 %v1100, %v1498
        %v1504 = vadd.f32 %v1101, %v1495
        %v1505 = vsel %vm1445, %v1394, 0.0
        %v1506 = vrot.slane %v1505, 4
        %v1507 = vadd.f32 %v1505, %v1506
        %v1508 = vrot.slane %v1507, 2
        %v1509 = vadd.f32 %v1507, %v1508
        %v1510 = vrot.slane %v1509, 1
        %v1511 = vadd.f32 %v1509, %v1510
        %v1512 = vrot.slane %v1395, 4
        %v1513 = vadd.f32 %v1395, %v1512
        %v1514 = vrot.slane %v1513, 2
        %v1515 = vadd.f32 %v1513, %v1514
        %v1516 = vrot.slane %v1515, 1
        %v1517 = vadd.f32 %v1515, %v1516
        %v1518 = vsel %vm1459, %v1396, 0.0
        %v1519 = vrot.slane %v1518, 4
        %v1520 = vadd.f32 %v1518, %v1519
        %v1521 = vrot.slane %v1520, 2
        %v1522 = vadd.f32 %v1520, %v1521
        %v1523 = vrot.slane %v1522, 1
        %v1524 = vadd.f32 %v1522, %v1523
        %v1525 = vmul.f32 %v1511, %v1477
        %v1526 = vmul.f32 %v1517, %v1480
        %v1527 = vmul.f32 %v1524, %v1479
        %1531 = vrot.lane.b32.xlu0 %v1525, 126
        %v1532 = vpop.permute.xlu0 %1531
        %1533 = vrot.lane.b32.xlu0 %v1526, 126
        %v1534 = vpop.permute.xlu0 %1533
        %1535 = vrot.lane.b32.xlu0 %v1527, 126
        %v1536 = vpop.permute.xlu0 %1535
        %v1537 = vsel %vm1496, %v1532, %v1534
        %v1538 = vsel %vm1496, %v1534, %v1536
        %v1542 = vadd.f32 %v1136, %v1537
        %v1543 = vadd.f32 %v1137, %v1538
        %v1544 = vadd.f32 %v1138, %v1536
        %v1545 = vsel %vm1445, %v1418, 0.0
        %v1546 = vrot.slane %v1545, 4
        %v1547 = vadd.f32 %v1545, %v1546
        %v1548 = vrot.slane %v1547, 2
        %v1549 = vadd.f32 %v1547, %v1548
        %v1550 = vrot.slane %v1549, 1
        %v1551 = vadd.f32 %v1549, %v1550
        %v1552 = vrot.slane %v1419, 4
        %v1553 = vadd.f32 %v1419, %v1552
        %v1554 = vrot.slane %v1553, 2
        %v1555 = vadd.f32 %v1553, %v1554
        %v1556 = vrot.slane %v1555, 1
        %v1557 = vadd.f32 %v1555, %v1556
        %v1558 = vsel %vm1459, %v1420, 0.0
        %v1559 = vrot.slane %v1558, 4
        %v1560 = vadd.f32 %v1558, %v1559
        %v1561 = vrot.slane %v1560, 2
        %v1562 = vadd.f32 %v1560, %v1561
        %v1563 = vrot.slane %v1562, 1
        %v1564 = vadd.f32 %v1562, %v1563
        %v1565 = vmul.f32 %v1551, %v1477
        %v1566 = vmul.f32 %v1557, %v1480
        %v1567 = vmul.f32 %v1564, %v1479
        %1571 = vrot.lane.b32.xlu0 %v1565, 126
        %v1572 = vpop.permute.xlu0 %1571
        %1573 = vrot.lane.b32.xlu0 %v1566, 126
        %v1574 = vpop.permute.xlu0 %1573
        %1575 = vrot.lane.b32.xlu0 %v1567, 126
        %v1576 = vpop.permute.xlu0 %1575
        %v1577 = vsel %vm1496, %v1572, %v1574
        %v1578 = vsel %vm1496, %v1574, %v1576
        %v1582 = vadd.f32 %v1173, %v1577
        %v1583 = vadd.f32 %v1174, %v1578
        %v1584 = vadd.f32 %v1175, %v1576
        %v1585 = vsel %vm1445, %v1442, 0.0
        %v1586 = vrot.slane %v1585, 4
        %v1587 = vadd.f32 %v1585, %v1586
        %v1588 = vrot.slane %v1587, 2
        %v1589 = vadd.f32 %v1587, %v1588
        %v1590 = vrot.slane %v1589, 1
        %v1591 = vadd.f32 %v1589, %v1590
        %v1592 = vrot.slane %v1443, 4
        %v1593 = vadd.f32 %v1443, %v1592
        %v1594 = vrot.slane %v1593, 2
        %v1595 = vadd.f32 %v1593, %v1594
        %v1596 = vrot.slane %v1595, 1
        %v1597 = vadd.f32 %v1595, %v1596
        %v1598 = vsel %vm1459, %v1444, 0.0
        %v1599 = vrot.slane %v1598, 4
        %v1600 = vadd.f32 %v1598, %v1599
        %v1601 = vrot.slane %v1600, 2
        %v1602 = vadd.f32 %v1600, %v1601
        %v1603 = vrot.slane %v1602, 1
        %v1604 = vadd.f32 %v1602, %v1603
        %v1605 = vmul.f32 %v1591, %v1477
        %v1606 = vmul.f32 %v1597, %v1480
        %v1607 = vmul.f32 %v1604, %v1479
        %1611 = vrot.lane.b32.xlu0 %v1605, 126
        %v1612 = vpop.permute.xlu0 %1611
        %1613 = vrot.lane.b32.xlu0 %v1606, 126
        %v1614 = vpop.permute.xlu0 %1613
        %1615 = vrot.lane.b32.xlu0 %v1607, 126
        %v1616 = vpop.permute.xlu0 %1615
        %v1617 = vsel %vm1496, %v1612, %v1614
        %v1618 = vsel %vm1496, %v1614, %v1616
        %v1622 = vadd.f32 %v1210, %v1617
        %v1623 = vadd.f32 %v1211, %v1618
        %v1624 = vadd.f32 %v1212, %v1616
        %1626 = vset.pattern.permute.xlu0 0
        %1627 = vperm.xlu0 %1626, %v492
        %v1628 = vpop.permute.xlu0 %1627
        %v1630 = vmul.f32 %v1628, 0.0
        %v1631 = vmul.f32 %v486, %v1628
        %v1632 = vmul.f32 %v487, %v1628
        %v1633 = vadd.f32 %v1630, 0.0
        %v1634 = vadd.f32 %v1631, 0.0
        %v1635 = vadd.f32 %v1632, 0.0
        %1636 = vset.pattern.permute.xlu0 1
        %1637 = vperm.xlu0 %1636, %v492
        %v1638 = vpop.permute.xlu0 %1637
        %v1640 = vmul.f32 %v1638, 0.0
        %v1641 = vmul.f32 %v486, %v1638
        %v1642 = vmul.f32 %v487, %v1638
        %v1643 = vadd.f32 %v1640, 0.0
        %v1644 = vadd.f32 %v1641, 0.0
        %v1645 = vadd.f32 %v1642, 0.0
        %1646 = vset.pattern.permute.xlu0 6
        %1647 = vperm.xlu0 %1646, %v492
        %v1648 = vpop.permute.xlu0 %1647
        %v1650 = vmul.f32 %v1648, 0.0
        %v1651 = vmul.f32 %v486, %v1648
        %v1652 = vmul.f32 %v487, %v1648
        %1656 = vrot.lane.b32.xlu0 %v1650, 112
        %v1657 = vpop.permute.xlu0 %1656
        %1658 = vrot.lane.b32.xlu0 %v1651, 112
        %v1659 = vpop.permute.xlu0 %1658
        %1660 = vrot.lane.b32.xlu0 %v1652, 112
        %v1661 = vpop.permute.xlu0 %1660
        %v1662 = vsel %vm550, %v1657, %v1659
        %v1663 = vsel %vm550, %v1659, %v1661
        %v1667 = vadd.f32 %v1633, %v1662
        %v1668 = vadd.f32 %v1634, %v1663
        %v1669 = vadd.f32 %v1635, %v1661
        %1670 = vset.pattern.permute.xlu0 7
        %1671 = vperm.xlu0 %1670, %v492
        %v1672 = vpop.permute.xlu0 %1671
        %v1674 = vmul.f32 %v1672, 0.0
        %v1675 = vmul.f32 %v486, %v1672
        %v1676 = vmul.f32 %v487, %v1672
        %1680 = vrot.lane.b32.xlu0 %v1674, 112
        %v1681 = vpop.permute.xlu0 %1680
        %1682 = vrot.lane.b32.xlu0 %v1675, 112
        %v1683 = vpop.permute.xlu0 %1682
        %1684 = vrot.lane.b32.xlu0 %v1676, 112
        %v1685 = vpop.permute.xlu0 %1684
        %v1686 = vsel %vm550, %v1681, %v1683
        %v1687 = vsel %vm550, %v1683, %v1685
        %v1691 = vadd.f32 %v1643, %v1686
        %v1692 = vadd.f32 %v1644, %v1687
        %v1693 = vadd.f32 %v1645, %v1685
        %1694 = vset.pattern.permute.xlu0 12
        %1695 = vperm.xlu0 %1694, %v492
        %v1696 = vpop.permute.xlu0 %1695
        %v1698 = vmul.f32 %v486, %v1696
        %v1699 = vmul.f32 %v487, %v1696
        %v1700 = vmul.f32 %v1696, 0.0
        %1704 = vrot.lane.b32.xlu0 %v1698, 96
        %v1705 = vpop.permute.xlu0 %1704
        %1706 = vrot.lane.b32.xlu0 %v1699, 96
        %v1707 = vpop.permute.xlu0 %1706
        %1708 = vrot.lane.b32.xlu0 %v1700, 96
        %v1709 = vpop.permute.xlu0 %1708
        %v1710 = vsel %vm647, %v1705, %v1707
        %v1711 = vsel %vm647, %v1707, %v1709
        %v1715 = vadd.f32 %v1667, %v1705
        %v1716 = vadd.f32 %v1668, %v1710
        %v1717 = vadd.f32 %v1669, %v1711
        %1718 = vset.pattern.permute.xlu0 13
        %1719 = vperm.xlu0 %1718, %v492
        %v1720 = vpop.permute.xlu0 %1719
        %v1722 = vmul.f32 %v486, %v1720
        %v1723 = vmul.f32 %v487, %v1720
        %v1724 = vmul.f32 %v1720, 0.0
        %1728 = vrot.lane.b32.xlu0 %v1722, 96
        %v1729 = vpop.permute.xlu0 %1728
        %1730 = vrot.lane.b32.xlu0 %v1723, 96
        %v1731 = vpop.permute.xlu0 %1730
        %1732 = vrot.lane.b32.xlu0 %v1724, 96
        %v1733 = vpop.permute.xlu0 %1732
        %v1734 = vsel %vm647, %v1729, %v1731
        %v1735 = vsel %vm647, %v1731, %v1733
        %v1739 = vadd.f32 %v1691, %v1729
        %v1740 = vadd.f32 %v1692, %v1734
        %v1741 = vadd.f32 %v1693, %v1735
        %v1742 = vsel %vm728, %v1715, 0.0
        %v1743 = vrot.slane %v1742, 4
        %v1744 = vadd.f32 %v1742, %v1743
        %v1745 = vrot.slane %v1744, 2
        %v1746 = vadd.f32 %v1744, %v1745
        %v1747 = vrot.slane %v1746, 1
        %v1748 = vadd.f32 %v1746, %v1747
        %v1749 = vrot.slane %v1716, 4
        %v1750 = vadd.f32 %v1716, %v1749
        %v1751 = vrot.slane %v1750, 2
        %v1752 = vadd.f32 %v1750, %v1751
        %v1753 = vrot.slane %v1752, 1
        %v1754 = vadd.f32 %v1752, %v1753
        %v1755 = vsel %vm742, %v1717, 0.0
        %v1756 = vrot.slane %v1755, 4
        %v1757 = vadd.f32 %v1755, %v1756
        %v1758 = vrot.slane %v1757, 2
        %v1759 = vadd.f32 %v1757, %v1758
        %v1760 = vrot.slane %v1759, 1
        %v1761 = vadd.f32 %v1759, %v1760
        %v1762 = vmul.f32 %v1748, %v760
        %v1763 = vmul.f32 %v1754, %v763
        %v1764 = vmul.f32 %v1761, %v762
        %v1765 = vadd.f32 %v1762, 0.0
        %v1766 = vadd.f32 %v1763, 0.0
        %v1767 = vadd.f32 %v1764, 0.0
        %v1768 = vsel %vm728, %v1739, 0.0
        %v1769 = vrot.slane %v1768, 4
        %v1770 = vadd.f32 %v1768, %v1769
        %v1771 = vrot.slane %v1770, 2
        %v1772 = vadd.f32 %v1770, %v1771
        %v1773 = vrot.slane %v1772, 1
        %v1774 = vadd.f32 %v1772, %v1773
        %v1775 = vrot.slane %v1740, 4
        %v1776 = vadd.f32 %v1740, %v1775
        %v1777 = vrot.slane %v1776, 2
        %v1778 = vadd.f32 %v1776, %v1777
        %v1779 = vrot.slane %v1778, 1
        %v1780 = vadd.f32 %v1778, %v1779
        %v1781 = vsel %vm742, %v1741, 0.0
        %v1782 = vrot.slane %v1781, 4
        %v1783 = vadd.f32 %v1781, %v1782
        %v1784 = vrot.slane %v1783, 2
        %v1785 = vadd.f32 %v1783, %v1784
        %v1786 = vrot.slane %v1785, 1
        %v1787 = vadd.f32 %v1785, %v1786
        %v1788 = vmul.f32 %v1774, %v760
        %v1789 = vmul.f32 %v1780, %v763
        %v1790 = vmul.f32 %v1787, %v762
        %v1791 = vadd.f32 %v1788, 0.0
        %v1792 = vadd.f32 %v1789, 0.0
        %v1793 = vadd.f32 %v1790, 0.0
        %1794 = vset.pattern.permute.xlu0 2
        %1795 = vperm.xlu0 %1794, %v492
        %v1796 = vpop.permute.xlu0 %1795
        %v1798 = vmul.f32 %v1796, 0.0
        %v1799 = vmul.f32 %v486, %v1796
        %v1800 = vmul.f32 %v487, %v1796
        %v1801 = vadd.f32 %v1798, 0.0
        %v1802 = vadd.f32 %v1799, 0.0
        %v1803 = vadd.f32 %v1800, 0.0
        %1804 = vset.pattern.permute.xlu0 3
        %1805 = vperm.xlu0 %1804, %v492
        %v1806 = vpop.permute.xlu0 %1805
        %v1808 = vmul.f32 %v1806, 0.0
        %v1809 = vmul.f32 %v486, %v1806
        %v1810 = vmul.f32 %v487, %v1806
        %v1811 = vadd.f32 %v1808, 0.0
        %v1812 = vadd.f32 %v1809, 0.0
        %v1813 = vadd.f32 %v1810, 0.0
        %1814 = vset.pattern.permute.xlu0 8
        %1815 = vperm.xlu0 %1814, %v492
        %v1816 = vpop.permute.xlu0 %1815
        %v1818 = vmul.f32 %v486, %v1816
        %v1819 = vmul.f32 %v487, %v1816
        %1822 = vrot.lane.b32.xlu0 %v1818, 112
        %v1823 = vpop.permute.xlu0 %1822
        %1824 = vrot.lane.b32.xlu0 %v1819, 112
        %v1825 = vpop.permute.xlu0 %1824
        %v1826 = vsel %vm550, %v1823, %v1825
        %v1830 = vadd.f32 %v1801, %v1823
        %v1831 = vadd.f32 %v1802, %v1826
        %v1832 = vadd.f32 %v1803, %v1825
        %1833 = vset.pattern.permute.xlu0 9
        %1834 = vperm.xlu0 %1833, %v492
        %v1835 = vpop.permute.xlu0 %1834
        %v1837 = vmul.f32 %v486, %v1835
        %v1838 = vmul.f32 %v487, %v1835
        %1841 = vrot.lane.b32.xlu0 %v1837, 112
        %v1842 = vpop.permute.xlu0 %1841
        %1843 = vrot.lane.b32.xlu0 %v1838, 112
        %v1844 = vpop.permute.xlu0 %1843
        %v1845 = vsel %vm550, %v1842, %v1844
        %v1849 = vadd.f32 %v1811, %v1842
        %v1850 = vadd.f32 %v1812, %v1845
        %v1851 = vadd.f32 %v1813, %v1844
        %1852 = vset.pattern.permute.xlu0 14
        %1853 = vperm.xlu0 %1852, %v492
        %v1854 = vpop.permute.xlu0 %1853
        %v1856 = vmul.f32 %v486, %v1854
        %v1857 = vmul.f32 %v487, %v1854
        %v1858 = vmul.f32 %v1854, 0.0
        %1862 = vrot.lane.b32.xlu0 %v1856, 96
        %v1863 = vpop.permute.xlu0 %1862
        %1864 = vrot.lane.b32.xlu0 %v1857, 96
        %v1865 = vpop.permute.xlu0 %1864
        %1866 = vrot.lane.b32.xlu0 %v1858, 96
        %v1867 = vpop.permute.xlu0 %1866
        %v1868 = vsel %vm647, %v1863, %v1865
        %v1869 = vsel %vm647, %v1865, %v1867
        %v1873 = vadd.f32 %v1830, %v1863
        %v1874 = vadd.f32 %v1831, %v1868
        %v1875 = vadd.f32 %v1832, %v1869
        %1876 = vset.pattern.permute.xlu0 15
        %1877 = vperm.xlu0 %1876, %v492
        %v1878 = vpop.permute.xlu0 %1877
        %v1880 = vmul.f32 %v486, %v1878
        %v1881 = vmul.f32 %v487, %v1878
        %v1882 = vmul.f32 %v1878, 0.0
        %1886 = vrot.lane.b32.xlu0 %v1880, 96
        %v1887 = vpop.permute.xlu0 %1886
        %1888 = vrot.lane.b32.xlu0 %v1881, 96
        %v1889 = vpop.permute.xlu0 %1888
        %1890 = vrot.lane.b32.xlu0 %v1882, 96
        %v1891 = vpop.permute.xlu0 %1890
        %v1892 = vsel %vm647, %v1887, %v1889
        %v1893 = vsel %vm647, %v1889, %v1891
        %v1897 = vadd.f32 %v1849, %v1887
        %v1898 = vadd.f32 %v1850, %v1892
        %v1899 = vadd.f32 %v1851, %v1893
        %v1900 = vsel %vm1063, %v1873, 0.0
        %v1901 = vrot.slane %v1900, 4
        %v1902 = vadd.f32 %v1900, %v1901
        %v1903 = vrot.slane %v1902, 2
        %v1904 = vadd.f32 %v1902, %v1903
        %v1905 = vrot.slane %v1904, 1
        %v1906 = vadd.f32 %v1904, %v1905
        %v1907 = vrot.slane %v1874, 4
        %v1908 = vadd.f32 %v1874, %v1907
        %v1909 = vrot.slane %v1908, 2
        %v1910 = vadd.f32 %v1908, %v1909
        %v1911 = vrot.slane %v1910, 1
        %v1912 = vadd.f32 %v1910, %v1911
        %v1913 = vsel %vm550, %v1875, 0.0
        %v1914 = vrot.slane %v1913, 4
        %v1915 = vadd.f32 %v1913, %v1914
        %v1916 = vrot.slane %v1915, 2
        %v1917 = vadd.f32 %v1915, %v1916
        %v1918 = vrot.slane %v1917, 1
        %v1919 = vadd.f32 %v1917, %v1918
        %1923 = vrot.lane.b32.xlu0 %v1906, 127
        %v1924 = vpop.permute.xlu0 %1923
        %1925 = vrot.lane.b32.xlu0 %v1912, 127
        %v1926 = vpop.permute.xlu0 %1925
        %1927 = vrot.lane.b32.xlu0 %v1919, 127
        %v1928 = vpop.permute.xlu0 %1927
        %v1929 = vsel %vm1093, %v1924, %v1926
        %v1930 = vsel %vm1093, %v1926, %v1928
        %v1934 = vadd.f32 %v1765, %v1929
        %v1935 = vadd.f32 %v1766, %v1930
        %v1936 = vadd.f32 %v1767, %v1928
        %v1937 = vsel %vm1063, %v1897, 0.0
        %v1938 = vrot.slane %v1937, 4
        %v1939 = vadd.f32 %v1937, %v1938
        %v1940 = vrot.slane %v1939, 2
        %v1941 = vadd.f32 %v1939, %v1940
        %v1942 = vrot.slane %v1941, 1
        %v1943 = vadd.f32 %v1941, %v1942
        %v1944 = vrot.slane %v1898, 4
        %v1945 = vadd.f32 %v1898, %v1944
        %v1946 = vrot.slane %v1945, 2
        %v1947 = vadd.f32 %v1945, %v1946
        %v1948 = vrot.slane %v1947, 1
        %v1949 = vadd.f32 %v1947, %v1948
        %v1950 = vsel %vm550, %v1899, 0.0
        %v1951 = vrot.slane %v1950, 4
        %v1952 = vadd.f32 %v1950, %v1951
        %v1953 = vrot.slane %v1952, 2
        %v1954 = vadd.f32 %v1952, %v1953
        %v1955 = vrot.slane %v1954, 1
        %v1956 = vadd.f32 %v1954, %v1955
        %1960 = vrot.lane.b32.xlu0 %v1943, 127
        %v1961 = vpop.permute.xlu0 %1960
        %1962 = vrot.lane.b32.xlu0 %v1949, 127
        %v1963 = vpop.permute.xlu0 %1962
        %1964 = vrot.lane.b32.xlu0 %v1956, 127
        %v1965 = vpop.permute.xlu0 %1964
        %v1966 = vsel %vm1093, %v1961, %v1963
        %v1967 = vsel %vm1093, %v1963, %v1965
        %v1971 = vadd.f32 %v1791, %v1966
        %v1972 = vadd.f32 %v1792, %v1967
        %v1973 = vadd.f32 %v1793, %v1965
        %1974 = vset.pattern.permute.xlu0 4
        %1975 = vperm.xlu0 %1974, %v492
        %v1976 = vpop.permute.xlu0 %1975
        %v1978 = vmul.f32 %v1976, 0.0
        %v1979 = vmul.f32 %v486, %v1976
        %v1980 = vmul.f32 %v487, %v1976
        %v1981 = vadd.f32 %v1978, 0.0
        %v1982 = vadd.f32 %v1979, 0.0
        %v1983 = vadd.f32 %v1980, 0.0
        %1984 = vset.pattern.permute.xlu0 5
        %1985 = vperm.xlu0 %1984, %v492
        %v1986 = vpop.permute.xlu0 %1985
        %v1988 = vmul.f32 %v1986, 0.0
        %v1989 = vmul.f32 %v486, %v1986
        %v1990 = vmul.f32 %v487, %v1986
        %v1991 = vadd.f32 %v1988, 0.0
        %v1992 = vadd.f32 %v1989, 0.0
        %v1993 = vadd.f32 %v1990, 0.0
        %1994 = vset.pattern.permute.xlu0 10
        %1995 = vperm.xlu0 %1994, %v492
        %v1996 = vpop.permute.xlu0 %1995
        %v1998 = vmul.f32 %v486, %v1996
        %v1999 = vmul.f32 %v487, %v1996
        %v2000 = vmul.f32 %v1996, 0.0
        %2004 = vrot.lane.b32.xlu0 %v1998, 112
        %v2005 = vpop.permute.xlu0 %2004
        %2006 = vrot.lane.b32.xlu0 %v1999, 112
        %v2007 = vpop.permute.xlu0 %2006
        %2008 = vrot.lane.b32.xlu0 %v2000, 112
        %v2009 = vpop.permute.xlu0 %2008
        %v2010 = vsel %vm550, %v2005, %v2007
        %v2011 = vsel %vm550, %v2007, %v2009
        %v2015 = vadd.f32 %v1981, %v2005
        %v2016 = vadd.f32 %v1982, %v2010
        %v2017 = vadd.f32 %v1983, %v2011
        %2018 = vset.pattern.permute.xlu0 11
        %2019 = vperm.xlu0 %2018, %v492
        %v2020 = vpop.permute.xlu0 %2019
        %v2022 = vmul.f32 %v486, %v2020
        %v2023 = vmul.f32 %v487, %v2020
        %v2024 = vmul.f32 %v2020, 0.0
        %2028 = vrot.lane.b32.xlu0 %v2022, 112
        %v2029 = vpop.permute.xlu0 %2028
        %2030 = vrot.lane.b32.xlu0 %v2023, 112
        %v2031 = vpop.permute.xlu0 %2030
        %2032 = vrot.lane.b32.xlu0 %v2024, 112
        %v2033 = vpop.permute.xlu0 %2032
        %v2034 = vsel %vm550, %v2029, %v2031
        %v2035 = vsel %vm550, %v2031, %v2033
        %v2039 = vadd.f32 %v1991, %v2029
        %v2040 = vadd.f32 %v1992, %v2034
        %v2041 = vadd.f32 %v1993, %v2035
        %2042 = vset.pattern.permute.xlu0 16
        %2043 = vperm.xlu0 %2042, %v492
        %v2044 = vpop.permute.xlu0 %2043
        %v2046 = vmul.f32 %v486, %v2044
        %v2047 = vmul.f32 %v487, %v2044
        %v2048 = vmul.f32 %v2044, 0.0
        %2052 = vrot.lane.b32.xlu0 %v2046, 96
        %v2053 = vpop.permute.xlu0 %2052
        %2054 = vrot.lane.b32.xlu0 %v2047, 96
        %v2055 = vpop.permute.xlu0 %2054
        %2056 = vrot.lane.b32.xlu0 %v2048, 96
        %v2057 = vpop.permute.xlu0 %2056
        %v2058 = vsel %vm647, %v2053, %v2055
        %v2059 = vsel %vm647, %v2055, %v2057
        %v2063 = vadd.f32 %v2015, %v2053
        %v2064 = vadd.f32 %v2016, %v2058
        %v2065 = vadd.f32 %v2017, %v2059
        %2066 = vset.pattern.permute.xlu0 17
        %2067 = vperm.xlu0 %2066, %v492
        %v2068 = vpop.permute.xlu0 %2067
        %v2070 = vmul.f32 %v486, %v2068
        %v2071 = vmul.f32 %v487, %v2068
        %v2072 = vmul.f32 %v2068, 0.0
        %2076 = vrot.lane.b32.xlu0 %v2070, 96
        %v2077 = vpop.permute.xlu0 %2076
        %2078 = vrot.lane.b32.xlu0 %v2071, 96
        %v2079 = vpop.permute.xlu0 %2078
        %2080 = vrot.lane.b32.xlu0 %v2072, 96
        %v2081 = vpop.permute.xlu0 %2080
        %v2082 = vsel %vm647, %v2077, %v2079
        %v2083 = vsel %vm647, %v2079, %v2081
        %v2087 = vadd.f32 %v2039, %v2077
        %v2088 = vadd.f32 %v2040, %v2082
        %v2089 = vadd.f32 %v2041, %v2083
        %v2090 = vsel %vm1445, %v2063, 0.0
        %v2091 = vrot.slane %v2090, 4
        %v2092 = vadd.f32 %v2090, %v2091
        %v2093 = vrot.slane %v2092, 2
        %v2094 = vadd.f32 %v2092, %v2093
        %v2095 = vrot.slane %v2094, 1
        %v2096 = vadd.f32 %v2094, %v2095
        %v2097 = vrot.slane %v2064, 4
        %v2098 = vadd.f32 %v2064, %v2097
        %v2099 = vrot.slane %v2098, 2
        %v2100 = vadd.f32 %v2098, %v2099
        %v2101 = vrot.slane %v2100, 1
        %v2102 = vadd.f32 %v2100, %v2101
        %v2103 = vsel %vm1459, %v2065, 0.0
        %v2104 = vrot.slane %v2103, 4
        %v2105 = vadd.f32 %v2103, %v2104
        %v2106 = vrot.slane %v2105, 2
        %v2107 = vadd.f32 %v2105, %v2106
        %v2108 = vrot.slane %v2107, 1
        %v2109 = vadd.f32 %v2107, %v2108
        %v2110 = vmul.f32 %v2096, %v1477
        %v2111 = vmul.f32 %v2102, %v1480
        %v2112 = vmul.f32 %v2109, %v1479
        %2116 = vrot.lane.b32.xlu0 %v2110, 126
        %v2117 = vpop.permute.xlu0 %2116
        %2118 = vrot.lane.b32.xlu0 %v2111, 126
        %v2119 = vpop.permute.xlu0 %2118
        %2120 = vrot.lane.b32.xlu0 %v2112, 126
        %v2121 = vpop.permute.xlu0 %2120
        %v2122 = vsel %vm1496, %v2117, %v2119
        %v2123 = vsel %vm1496, %v2119, %v2121
        %v2127 = vadd.f32 %v1934, %v2122
        %v2128 = vadd.f32 %v1935, %v2123
        %v2129 = vadd.f32 %v1936, %v2121
        %v2130 = vsel %vm1445, %v2087, 0.0
        %v2131 = vrot.slane %v2130, 4
        %v2132 = vadd.f32 %v2130, %v2131
        %v2133 = vrot.slane %v2132, 2
        %v2134 = vadd.f32 %v2132, %v2133
        %v2135 = vrot.slane %v2134, 1
        %v2136 = vadd.f32 %v2134, %v2135
        %v2137 = vrot.slane %v2088, 4
        %v2138 = vadd.f32 %v2088, %v2137
        %v2139 = vrot.slane %v2138, 2
        %v2140 = vadd.f32 %v2138, %v2139
        %v2141 = vrot.slane %v2140, 1
        %v2142 = vadd.f32 %v2140, %v2141
        %v2143 = vsel %vm1459, %v2089, 0.0
        %v2144 = vrot.slane %v2143, 4
        %v2145 = vadd.f32 %v2143, %v2144
        %v2146 = vrot.slane %v2145, 2
        %v2147 = vadd.f32 %v2145, %v2146
        %v2148 = vrot.slane %v2147, 1
        %v2149 = vadd.f32 %v2147, %v2148
        %v2150 = vmul.f32 %v2136, %v1477
        %v2151 = vmul.f32 %v2142, %v1480
        %v2152 = vmul.f32 %v2149, %v1479
        %2156 = vrot.lane.b32.xlu0 %v2150, 126
        %v2157 = vpop.permute.xlu0 %2156
        %2158 = vrot.lane.b32.xlu0 %v2151, 126
        %v2159 = vpop.permute.xlu0 %2158
        %2160 = vrot.lane.b32.xlu0 %v2152, 126
        %v2161 = vpop.permute.xlu0 %2160
        %v2162 = vsel %vm1496, %v2157, %v2159
        %v2163 = vsel %vm1496, %v2159, %v2161
        %v2167 = vadd.f32 %v1971, %v2162
        %v2168 = vadd.f32 %v1972, %v2163
        %v2169 = vadd.f32 %v1973, %v2161
        %s2170 = sld [smem:[#allocation12]]
        %v2171 = vstv %s2170
        %v2172 = vadd.f32 %v1502, %v2171
        %v2173 = vadd.f32 %v1503, %v2171
        %v2174 = vadd.f32 %v1504, %v2171
        %v2175 = vmax.f32 %v2172, 0.0
        %v2176 = vmax.f32 %v2173, 0.0
        %v2177 = vmax.f32 %v2174, 0.0
        %s2178 = sld [smem:[#allocation12 + $0x1]]
        %v2179 = vstv %s2178
        %v2180 = vadd.f32 %v1542, %v2179
        %v2181 = vadd.f32 %v1543, %v2179
        %v2182 = vadd.f32 %v1544, %v2179
        %v2183 = vmax.f32 %v2180, 0.0
        %v2184 = vmax.f32 %v2181, 0.0
        %v2185 = vmax.f32 %v2182, 0.0
        %s2186 = sld [smem:[#allocation12 + $0x2]]
        %v2187 = vstv %s2186
        %v2188 = vadd.f32 %v1582, %v2187
        %v2189 = vadd.f32 %v1583, %v2187
        %v2190 = vadd.f32 %v1584, %v2187
        %v2191 = vmax.f32 %v2188, 0.0
        %v2192 = vmax.f32 %v2189, 0.0
        %v2193 = vmax.f32 %v2190, 0.0
        %s2194 = sld [smem:[#allocation12 + $0x3]]
        %v2195 = vstv %s2194
        %v2196 = vadd.f32 %v1622, %v2195
        %v2197 = vadd.f32 %v1623, %v2195
        %v2198 = vadd.f32 %v1624, %v2195
        %v2199 = vmax.f32 %v2196, 0.0
        %v2200 = vmax.f32 %v2197, 0.0
        %v2201 = vmax.f32 %v2198, 0.0
        %v2205 = vrot.slane %v2183, 7
        %v2206 = vrot.slane %v2184, 7
        %v2207 = vrot.slane %v2185, 7
        %v2214 = vrot.slane %v2191, 6
        %v2215 = vrot.slane %v2192, 6
        %v2216 = vrot.slane %v2193, 6
        %v2223 = vrot.slane %v2199, 5
        %v2224 = vrot.slane %v2200, 5
        %v2225 = vrot.slane %v2201, 5
        %vm2229 = vcmask 1040384
        %v2230 = vsel %vm2229, %v2175, %v2205
        %v2231 = vsel %vm2229, %v2176, %v2206
        %v2232 = vsel %vm2229, %v2177, %v2207
        %vm2233 = vcmask 1041408
        %v2234 = vsel %vm2233, %v2230, %v2214
        %v2235 = vsel %vm2233, %v2231, %v2215
        %v2236 = vsel %vm2233, %v2232, %v2216
        %vm2237 = vcmask 1042432
        %v2238 = vsel %vm2237, %v2234, %v2223
        %v2239 = vsel %vm2237, %v2235, %v2224
        %v2240 = vsel %vm2237, %v2236, %v2225
        %v2244 = vcombine.low %v2238, %v2239
        %2245 = vrot.lane.b32.xlu0 %v2244, 17
        %v2246 = vpop.permute.xlu0 %2245
        %2247 = vrot.lane.b32.xlu0 %v2240, 17
        %v2248 = vpop.permute.xlu0 %2247
        %v2249 = vrot.slane %v2246, 4
        %v2250 = vrot.slane %v2248, 4
        %v2251 = vsel %vm473, %v2249, %v2250
        %vm2252 = vcmask 138240
        %v2253 = vsel %vm2252, %v2246, %v2251
        %2255 = vst [vmem:[%s450] sm:$0xff] %v2253
        %s2256 = sld [smem:[#allocation13]]
        %v2257 = vstv %s2256
        %v2258 = vadd.f32 %v2127, %v2257
        %v2259 = vadd.f32 %v2128, %v2257
        %v2260 = vadd.f32 %v2129, %v2257
        %s2261 = sld [smem:[#allocation13 + $0x1]]
        %v2262 = vstv %s2261
        %v2263 = vadd.f32 %v2167, %v2262
        %v2264 = vadd.f32 %v2168, %v2262
        %v2265 = vadd.f32 %v2169, %v2262
        %v2266 = vadd.f32 %v2258, 1.0
        %v2267 = vadd.f32 %v2259, 1.0
        %v2268 = vadd.f32 %v2260, 1.0
        %v2269 = vmul.f32 %v2266, 8.0
        %v2270 = vmul.f32 %v2267, 8.0
        %v2271 = vmul.f32 %v2268, 8.0
        %v2272 = vsub.f32 %v2269, 0.5
        %v2273 = vsub.f32 %v2270, 0.5
        %v2274 = vsub.f32 %v2271, 0.5
        %v2275 = vadd.f32 %v2263, 1.0
        %v2276 = vadd.f32 %v2264, 1.0
        %v2277 = vadd.f32 %v2265, 1.0
        %v2278 = vmul.f32 %v2275, 8.0
        %v2279 = vmul.f32 %v2276, 8.0
        %v2280 = vmul.f32 %v2277, 8.0
        %v2281 = vsub.f32 %v2278, 0.5
        %v2282 = vsub.f32 %v2279, 0.5
        %v2283 = vsub.f32 %v2280, 0.5
        %v2284 = vfloor.f32 %v2272
        %v2285 = vfloor.f32 %v2273
        %v2286 = vfloor.f32 %v2274
        %v2287 = vfloor.f32 %v2281
        %v2288 = vfloor.f32 %v2282
        %v2289 = vfloor.f32 %v2283
        %v2290 = vsub.f32 %v2272, %v2284
        %v2291 = vsub.f32 %v2273, %v2285
        %v2292 = vsub.f32 %v2274, %v2286
        %v2293 = vsub.f32 1.0, %v2290
        %v2294 = vsub.f32 1.0, %v2291
        %v2295 = vsub.f32 1.0, %v2292
        %v2296 = vsub.f32 %v2281, %v2287
        %v2297 = vsub.f32 %v2282, %v2288
        %v2298 = vsub.f32 %v2283, %v2289
        %v2299 = vsub.f32 1.0, %v2296
        %v2300 = vsub.f32 1.0, %v2297
        %v2301 = vsub.f32 1.0, %v2298
        %v2302 = vcvt.f32.s32.to.zero.pseudo %v2284
        %v2303 = vcvt.f32.s32.to.zero.pseudo %v2285
        %v2304 = vcvt.f32.s32.to.zero.pseudo %v2286
        %v2305 = vcvt.f32.s32.to.zero.pseudo %v2287
        %v2306 = vcvt.f32.s32.to.zero.pseudo %v2288
        %v2307 = vcvt.f32.s32.to.zero.pseudo %v2289
        %v2308 = vadd.s32 %v2302, 1
        %v2309 = vadd.s32 %v2303, 1
        %v2310 = vadd.s32 %v2304, 1
        %v2311 = vadd.s32 %v2305, 1
        %v2312 = vadd.s32 %v2306, 1
        %v2313 = vadd.s32 %v2307, 1
        %v2314 = vmul.f32 %v2299, %v2293
        %v2315 = vmul.f32 %v2300, %v2294
        %v2316 = vmul.f32 %v2301, %v2295
        %vm2317 = vcmp.ge.s32.totalorder %v2302, 0
        %vm2318 = vcmp.ge.s32.totalorder %v2303, 0
        %vm2319 = vcmp.ge.s32.totalorder %v2304, 0
        %vm2320 = vcmp.lt.s32.totalorder %v2302, 16
        %vm2321 = vcmp.lt.s32.totalorder %v2303, 16
        %vm2322 = vcmp.lt.s32.totalorder %v2304, 16
        %vm2323 = vmand %vm2317, %vm2320
        %vm2324 = vmand %vm2318, %vm2321
        %vm2325 = vmand %vm2319, %vm2322
        %vm2326 = vcmp.ge.s32.totalorder %v2305, 0
        %vm2327 = vcmp.ge.s32.totalorder %v2306, 0
        %vm2328 = vcmp.ge.s32.totalorder %v2307, 0
        %vm2329 = vmand %vm2323, %vm2326
        %vm2330 = vmand %vm2324, %vm2327
        %vm2331 = vmand %vm2325, %vm2328
        %vm2332 = vcmp.lt.s32.totalorder %v2305, 16
        %vm2333 = vcmp.lt.s32.totalorder %v2306, 16
        %vm2334 = vcmp.lt.s32.totalorder %v2307, 16
        %vm2335 = vmand %vm2329, %vm2332
        %vm2336 = vmand %vm2330, %vm2333
        %vm2337 = vmand %vm2331, %vm2334
        %vm2338 = vcmp.gt.s32.totalorder %v2305, 0
        %v2339 = vsel %vm2338, %v2305, 0
        %vm2340 = vcmp.gt.s32.totalorder %v2306, 0
        %v2341 = vsel %vm2340, %v2306, 0
        %vm2342 = vcmp.gt.s32.totalorder %v2307, 0
        %v2343 = vsel %vm2342, %v2307, 0
        %vm2344 = vcmp.lt.s32.totalorder %v2339, 15
        %v2345 = vsel %vm2344, %v2339, 15
        %vm2346 = vcmp.lt.s32.totalorder %v2341, 15
        %v2347 = vsel %vm2346, %v2341, 15
        %vm2348 = vcmp.lt.s32.totalorder %v2343, 15
        %v2349 = vsel %vm2348, %v2343, 15
        %v2350 = vmul.u32 %v2345, 16
        %v2351 = vmul.u32 %v2347, 16
        %v2352 = vmul.u32 %v2349, 16
        %vm2353 = vcmp.gt.s32.totalorder %v2302, 0
        %v2354 = vsel %vm2353, %v2302, 0
        %vm2355 = vcmp.gt.s32.totalorder %v2303, 0
        %v2356 = vsel %vm2355, %v2303, 0
        %vm2357 = vcmp.gt.s32.totalorder %v2304, 0
        %v2358 = vsel %vm2357, %v2304, 0
        %vm2359 = vcmp.lt.s32.totalorder %v2354, 15
        %v2360 = vsel %vm2359, %v2354, 15
        %vm2361 = vcmp.lt.s32.totalorder %v2356, 15
        %v2362 = vsel %vm2361, %v2356, 15
        %vm2363 = vcmp.lt.s32.totalorder %v2358, 15
        %v2364 = vsel %vm2363, %v2358, 15
        %v2365 = vadd.s32 %v2350, %v2360
        %v2366 = vadd.s32 %v2351, %v2362
        %v2367 = vadd.s32 %v2352, %v2364
        %v2368 = vsel %vm2335, %v2314, 0.0
        %v2369 = vsel %vm2336, %v2315, 0.0
        %v2370 = vsel %vm2337, %v2316, 0.0
        %v2371 = vmul.f32 %v2299, %v2290
        %v2372 = vmul.f32 %v2300, %v2291
        %v2373 = vmul.f32 %v2301, %v2292
        %vm2374 = vcmp.ge.s32.totalorder %v2308, 0
        %vm2375 = vcmp.ge.s32.totalorder %v2309, 0
        %vm2376 = vcmp.ge.s32.totalorder %v2310, 0
        %vm2377 = vcmp.lt.s32.totalorder %v2308, 16
        %vm2378 = vcmp.lt.s32.totalorder %v2309, 16
        %vm2379 = vcmp.lt.s32.totalorder %v2310, 16
        %vm2380 = vmand %vm2374, %vm2377
        %vm2381 = vmand %vm2375, %vm2378
        %vm2382 = vmand %vm2376, %vm2379
        %vm2383 = vmand %vm2380, %vm2326
        %vm2384 = vmand %vm2381, %vm2327
        %vm2385 = vmand %vm2382, %vm2328
        %vm2386 = vmand %vm2383, %vm2332
        %vm2387 = vmand %vm2384, %vm2333
        %vm2388 = vmand %vm2385, %vm2334
        %vm2389 = vcmp.gt.s32.totalorder %v2308, 0
        %v2390 = vsel %vm2389, %v2308, 0
        %vm2391 = vcmp.gt.s32.totalorder %v2309, 0
        %v2392 = vsel %vm2391, %v2309, 0
        %vm2393 = vcmp.gt.s32.totalorder %v2310, 0
        %v2394 = vsel %vm2393, %v2310, 0
        %vm2395 = vcmp.lt.s32.totalorder %v2390, 15
        %v2396 = vsel %vm2395, %v2390, 15
        %vm2397 = vcmp.lt.s32.totalorder %v2392, 15
        %v2398 = vsel %vm2397, %v2392, 15
        %vm2399 = vcmp.lt.s32.totalorder %v2394, 15
        %v2400 = vsel %vm2399, %v2394, 15
        %v2401 = vadd.s32 %v2350, %v2396
        %v2402 = vadd.s32 %v2351, %v2398
        %v2403 = vadd.s32 %v2352, %v2400
        %v2404 = vsel %vm2386, %v2371, 0.0
        %v2405 = vsel %vm2387, %v2372, 0.0
        %v2406 = vsel %vm2388, %v2373, 0.0
        %v2407 = vmul.f32 %v2296, %v2293
        %v2408 = vmul.f32 %v2297, %v2294
        %v2409 = vmul.f32 %v2298, %v2295
        %vm2410 = vcmp.ge.s32.totalorder %v2311, 0
        %vm2411 = vcmp.ge.s32.totalorder %v2312, 0
        %vm2412 = vcmp.ge.s32.totalorder %v2313, 0
        %vm2413 = vmand %vm2323, %vm2410
        %vm2414 = vmand %vm2324, %vm2411
        %vm2415 = vmand %vm2325, %vm2412
        %vm2416 = vcmp.lt.s32.totalorder %v2311, 16
        %vm2417 = vcmp.lt.s32.totalorder %v2312, 16
        %vm2418 = vcmp.lt.s32.totalorder %v2313, 16
        %vm2419 = vmand %vm2413, %vm2416
        %vm2420 = vmand %vm2414, %vm2417
        %vm2421 = vmand %vm2415, %vm2418
        %vm2422 = vcmp.gt.s32.totalorder %v2311, 0
        %v2423 = vsel %vm2422, %v2311, 0
        %vm2424 = vcmp.gt.s32.totalorder %v2312, 0
        %v2425 = vsel %vm2424, %v2312, 0
        %vm2426 = vcmp.gt.s32.totalorder %v2313, 0
        %v2427 = vsel %vm2426, %v2313, 0
        %vm2428 = vcmp.lt.s32.totalorder %v2423, 15
        %v2429 = vsel %vm2428, %v2423, 15
        %vm2430 = vcmp.lt.s32.totalorder %v2425, 15
        %v2431 = vsel %vm2430, %v2425, 15
        %vm2432 = vcmp.lt.s32.totalorder %v2427, 15
        %v2433 = vsel %vm2432, %v2427, 15
        %v2434 = vmul.u32 %v2429, 16
        %v2435 = vmul.u32 %v2431, 16
        %v2436 = vmul.u32 %v2433, 16
        %v2437 = vadd.s32 %v2434, %v2360
        %v2438 = vadd.s32 %v2435, %v2362
        %v2439 = vadd.s32 %v2436, %v2364
        %v2440 = vsel %vm2419, %v2407, 0.0
        %v2441 = vsel %vm2420, %v2408, 0.0
        %v2442 = vsel %vm2421, %v2409, 0.0
        %v2443 = vmul.f32 %v2296, %v2290
        %v2444 = vmul.f32 %v2297, %v2291
        %v2445 = vmul.f32 %v2298, %v2292
        %vm2446 = vmand %vm2380, %vm2410
        %vm2447 = vmand %vm2381, %vm2411
        %vm2448 = vmand %vm2382, %vm2412
        %vm2449 = vmand %vm2446, %vm2416
        %vm2450 = vmand %vm2447, %vm2417
        %vm2451 = vmand %vm2448, %vm2418
        %v2452 = vadd.s32 %v2434, %v2396
        %v2453 = vadd.s32 %v2435, %v2398
        %v2454 = vadd.s32 %v2436, %v2400
        %v2455 = vsel %vm2449, %v2443, 0.0
        %v2456 = vsel %vm2450, %v2444, 0.0
        %v2457 = vsel %vm2451, %v2445, 0.0
        %v2458 = vrot.slane %v2401, 7
        %v2459 = vrot.slane %v2402, 7
        %v2460 = vrot.slane %v2403, 7
        %v2461 = vrot.slane %v2437, 6
        %v2462 = vrot.slane %v2438, 6
        %v2463 = vrot.slane %v2439, 6
        %v2464 = vrot.slane %v2452, 5
        %v2465 = vrot.slane %v2453, 5
        %v2466 = vrot.slane %v2454, 5
        %v2467 = vsel %vm2229, %v2365, %v2458
        %v2468 = vsel %vm2229, %v2366, %v2459
        %v2469 = vsel %vm2229, %v2367, %v2460
        %v2470 = vsel %vm2233, %v2467, %v2461
        %v2471 = vsel %vm2233, %v2468, %v2462
        %v2472 = vsel %vm2233, %v2469, %v2463
        %v2473 = vsel %vm2237, %v2470, %v2464
        %v2474 = vsel %vm2237, %v2471, %v2465
        %v2475 = vsel %vm2237, %v2472, %v2466
        %v2476 = vcombine.low %v2473, %v2474
        %2477 = vrot.lane.b32.xlu0 %v2476, 17
        %v2478 = vpop.permute.xlu0 %2477
        %2479 = vrot.lane.b32.xlu0 %v2475, 17
        %v2480 = vpop.permute.xlu0 %2479
        %v2481 = vrot.slane %v2478, 4
        %v2482 = vrot.slane %v2480, 4
        %v2483 = vsel %vm473, %v2481, %v2482
        %v2484 = vsel %vm2252, %v2478, %v2483
        %2485 = vst [vmem:[%s457] sm:$0xff] %v2484
        %v2489 = vrot.slane %v2404, 7
        %v2490 = vrot.slane %v2405, 7
        %v2491 = vrot.slane %v2406, 7
        %v2498 = vrot.slane %v2440, 6
        %v2499 = vrot.slane %v2441, 6
        %v2500 = vrot.slane %v2442, 6
        %v2507 = vrot.slane %v2455, 5
        %v2508 = vrot.slane %v2456, 5
        %v2509 = vrot.slane %v2457, 5
        %v2513 = vsel %vm2229, %v2368, %v2489
        %v2514 = vsel %vm2229, %v2369, %v2490
        %v2515 = vsel %vm2229, %v2370, %v2491
        %v2516 = vsel %vm2233, %v2513, %v2498
        %v2517 = vsel %vm2233, %v2514, %v2499
        %v2518 = vsel %vm2233, %v2515, %v2500
        %v2519 = vsel %vm2237, %v2516, %v2507
        %v2520 = vsel %vm2237, %v2517, %v2508
        %v2521 = vsel %vm2237, %v2518, %v2509
        %v2525 = vcombine.low %v2519, %v2520
        %2526 = vrot.lane.b32.xlu0 %v2525, 17
        %v2527 = vpop.permute.xlu0 %2526
        %2528 = vrot.lane.b32.xlu0 %v2521, 17
        %v2529 = vpop.permute.xlu0 %2528
        %v2530 = vrot.slane %v2527, 4
        %v2531 = vrot.slane %v2529, 4
        %v2532 = vsel %vm473, %v2530, %v2531
        %v2533 = vsel %vm2252, %v2527, %v2532
        %2535 = vst [vmem:[%s464] sm:$0xff] %v2533
        %s2536 = sand.u32 %s201, 1
        %s2537 = scalar_lea.sflag [#allocation4], %s2536
        %s2538 = sand.u32 %s201, 1
        %s2539 = smul.addr %s2538, 8
        %s2540 = scalar_lea.vmem [#allocation15], %s2539
        %s2541 = sand.u32 %s36, 1
        %s2542 = scalar_lea.sflag [#allocation17], %s2541
        %s2543 = sand.u32 %s227, 1
        %s2544 = smul.addr %s2543, 8
        %s2545 = scalar_lea.vmem [#allocation16], %s2544
        %s2546 = sand.u32 %s36, 1
        %s2547 = scalar_lea.sflag [#allocation17], %s2546
        %s2548 = sand.u32 %s253, 1
        %s2549 = smul.addr %s2548, 8
        %s2550 = scalar_lea.vmem [#allocation18], %s2549
        // Predicated region
        $region77: #{tpu_custom_call.1} parent=47 // pred_check
          %p2551 = pneg %p211
        $region78: #{tpu_custom_call.1} parent=47 // pred_check_branch
          %2553 = sbr.rel (%p2551) target = $region80
        $region79: #{tpu_custom_call.1} parent=47 // pred_region
          %s2555 = ssub.s32 128, 128
          %2556 = vsyncadd %s2537, %s2555
          %s2557 = smul.addr %s36, 2
          %s2558 = smul.addr %s2557, 64
          %s2559 = scalar_lea.hbm %s7, %s2558
          %s2561 = sshll.u32 %s2540, 4
          %s2562 = int_to_ptr.vmem [resolvable:$true] %s2561
          %2564 = dma.vmem_to_hbm [thread:$0]  %s2562, 128, %s2559, %s2537
        $region80: #{tpu_custom_call.1} parent=47 // pred_fallthru
          _
        // Predicated region
        $region81: #{tpu_custom_call.1} parent=47 // pred_check
          %p2565 = pneg %p237
        $region82: #{tpu_custom_call.1} parent=47 // pred_check_branch
          %2567 = sbr.rel (%p2565) target = $region84
        $region83: #{tpu_custom_call.1} parent=47 // pred_region
          %s2569 = ssub.s32 128, 128
          %2570 = vsyncadd %s2542, %s2569
          %s2571 = smul.addr %s36, 2
          %s2572 = smul.addr %s2571, 64
          %s2573 = scalar_lea.hbm %s8, %s2572
          %s2575 = sshll.u32 %s2545, 4
          %s2576 = int_to_ptr.vmem [resolvable:$true] %s2575
          %2578 = dma.vmem_to_hbm [thread:$0]  %s2576, 128, %s2573, %s2542
        $region84: #{tpu_custom_call.1} parent=47 // pred_fallthru
          _
        // Predicated region
        $region85: #{tpu_custom_call.1} parent=47 // pred_check
          %p2579 = pneg %p263
        $region86: #{tpu_custom_call.1} parent=47 // pred_check_branch
          %2581 = sbr.rel (%p2579) target = $region88
        $region87: #{tpu_custom_call.1} parent=47 // pred_region
          %s2583 = ssub.s32 128, 128
          %2584 = vsyncadd %s2547, %s2583
          %s2585 = smul.addr %s36, 2
          %s2586 = smul.addr %s2585, 64
          %s2587 = scalar_lea.hbm %s9, %s2586
          %s2589 = sshll.u32 %s2550, 4
          %s2590 = int_to_ptr.vmem [resolvable:$true] %s2589
          %2592 = dma.vmem_to_hbm [thread:$0]  %s2590, 128, %s2587, %s2547
        $region88: #{tpu_custom_call.1} parent=47 // pred_fallthru
          _
      $region48: #{tpu_custom_call.1} parent=5 // pred_fallthru
        _
      %p2593 = scmp.le.s32.totalorder 2, %s31
      // Predicated region
      $region89: #{tpu_custom_call.1} parent=5 // pred_check
        %p2594 = pneg %p2593
      $region90: #{tpu_custom_call.1} parent=5 // pred_check_branch
        %2596 = sbr.rel (%p2594) target = $region92
      $region91: #{tpu_custom_call.1} parent=5 // pred_region
        %s2597 = ssub.s32 %s31, 2
        // Predicated region
        $region93: #{tpu_custom_call.1} parent=91 // pred_check
          %p2598 = pneg %p217
        $region94: #{tpu_custom_call.1} parent=91 // pred_check_branch
          %2600 = sbr.rel (%p2598) target = $region96
        $region95: #{tpu_custom_call.1} parent=91 // pred_region
          %s2601 = sand.u32 %s202, 1
          %s2602 = scalar_lea.sflag [#allocation4], %s2601
          %s2603 = sand.u32 %s202, 1
          %s2604 = smul.addr %s2603, 8
          %s2605 = scalar_lea.vmem [#allocation15], %s2604
          %2606 = dma.done %s2602, 128
        $region96: #{tpu_custom_call.1} parent=91 // pred_fallthru
          _
        // Predicated region
        $region97: #{tpu_custom_call.1} parent=91 // pred_check
          %p2607 = pneg %p243
        $region98: #{tpu_custom_call.1} parent=91 // pred_check_branch
          %2609 = sbr.rel (%p2607) target = $region100
        $region99: #{tpu_custom_call.1} parent=91 // pred_region
          %s2610 = sand.u32 %s37, 1
          %s2611 = scalar_lea.sflag [#allocation17], %s2610
          %s2612 = sand.u32 %s228, 1
          %s2613 = smul.addr %s2612, 8
          %s2614 = scalar_lea.vmem [#allocation16], %s2613
          %2615 = dma.done %s2611, 128
        $region100: #{tpu_custom_call.1} parent=91 // pred_fallthru
          _
        // Predicated region
        $region101: #{tpu_custom_call.1} parent=91 // pred_check
          %p2616 = pneg %p269
        $region102: #{tpu_custom_call.1} parent=91 // pred_check_branch
          %2618 = sbr.rel (%p2616) target = $region104
        $region103: #{tpu_custom_call.1} parent=91 // pred_region
          %s2619 = sand.u32 %s37, 1
          %s2620 = scalar_lea.sflag [#allocation17], %s2619
          %s2621 = sand.u32 %s254, 1
          %s2622 = smul.addr %s2621, 8
          %s2623 = scalar_lea.vmem [#allocation18], %s2622
          %2624 = dma.done %s2620, 128
        $region104: #{tpu_custom_call.1} parent=91 // pred_fallthru
          _
      $region92: #{tpu_custom_call.1} parent=5 // pred_fallthru
        _
    $region6: #{tpu_custom_call.1} parent=1 // loop_footer
      %s35 = sadd.s32 1, %s31
    $region7: #{tpu_custom_call.1} parent=1 // loop_footer_branch
      %30 = sbr.rel target = $region3
    $region8: #{tpu_custom_call.1} parent=1 // loop_exit
      _
    %2625 = vsyncpa [#allocation3], 1
    %s2626 = scalar_lea.sflag [#allocation3], 1
    %2627 = vsyncpa %s2626, 1
    %2628 = vsyncpa [#allocation7], 1
    %s2629 = scalar_lea.sflag [#allocation7], 1
    %2630 = vsyncpa %s2629, 1
    %2631 = vsyncpa [#allocation10], 1
    %2632 = vsyncpa [#allocation4], 1
    %s2633 = scalar_lea.sflag [#allocation4], 1
    %2634 = vsyncpa %s2633, 1
    %2635 = vsyncpa [#allocation17], 1
    %s2636 = scalar_lea.sflag [#allocation17], 1
    %2637 = vsyncpa %s2636, 1
    %2638 = vsyncpa [#allocation5], 1
    %s2639 = scalar_lea.sflag [#allocation5], 1
    %2640 = vsyncpa %s2639, 1
    %2641 = vsyncpa [#allocation14], 1

</llo_original>
